<compile_context>
chip_gen: v7x
topology: tpu7x:2x2x1
jax: 0.10.0
libtpu: 0.0.40
codegen_flags: <defaults>
</compile_context>

<pallas_src>
import functools

import jax
import jax.numpy as jnp
import numpy as np
from jax import lax
from jax.experimental import pallas as pl
from jax.experimental.pallas import tpu as pltpu


# ---------------------------------------------------------------------------
# In-kernel helpers (operate on values)
# ---------------------------------------------------------------------------

def _rot(x, s, size):
    """out[..., p] = x[..., (p + s) % size] along the last axis (static s)."""
    if s % size == 0:
        return x
    # pltpu.roll follows np.roll semantics: roll(x, k)[p] == x[(p - k) % size].
    return pltpu.roll(x, shift=(-s) % size, axis=x.ndim - 1)


def _border_masks(col_left, width, hw):
    """Row/column validity masks (f32, (1, hw)) for 3x3 zero padding.

    col_left comes from the host (1.0 where col != 0); the row masks are
    iota compares and the right column mask is one lane roll — no 9xHW mask
    tensor is ever DMA'd.
    """
    idx = lax.broadcasted_iota(jnp.int32, (1, hw), 1)
    row_up = (idx >= width).astype(jnp.float32)       # source row h-1 valid
    row_dn = (idx < hw - width).astype(jnp.float32)   # source row h+1 valid
    col_lt = col_left.astype(jnp.float32)             # source col w-1 valid
    col_rt = _rot(col_lt, 1, hw)                      # source col w+1 valid
    rmask = {-1: row_up, 0: None, 1: row_dn}
    cmask = {-1: col_lt, 0: None, 1: col_rt}
    return rmask, cmask


def _conv3x3(x, w9, rmask, cmask, width, mxu_dtype):
    """3x3 / stride 1 / pad 1 cross-correlation on a flat (Cin, H*W) image.

    x  : (Cin, H*W) f32 (lane-dense spatial axis)
    w9 : (9, Cout, Cin) in mxu_dtype, tap index = kh*3 + kw
    returns (Cout, H*W) f32 — 9 accumulating MXU dots, no im2col patch.
    """
    hw = x.shape[-1]
    acc = None
    for kh in range(3):
        dy = kh - 1
        for kw in range(3):
            dx = kw - 1
            t = _rot(x, dy * width + dx, hw)
            if rmask[dy] is not None:
                t = t * rmask[dy]
            if cmask[dx] is not None:
                t = t * cmask[dx]
            p = jnp.dot(w9[kh * 3 + kw], t.astype(mxu_dtype),
                        preferred_element_type=jnp.float32)
            acc = p if acc is None else acc + p
    return acc


# ---------------------------------------------------------------------------
# Kernels
# ---------------------------------------------------------------------------

def _stage1_kernel(*refs, width, mxu_dtype, shared_view):
    """High-frequency 3x3 conv + fused 2x2 average pool for one batch block."""
    if shared_view:
        xf_ref, w9_ref, colm_ref, pg_ref, oh_ref, pool_ref = refs
        xp_ref = None
    else:
        xf_ref, xp_ref, w9_ref, colm_ref, pg_ref, oh_ref, pool_ref = refs

    hw = xf_ref.shape[-1]
    w9 = w9_ref[...].astype(mxu_dtype)            # (9, C_high, Cin)
    pg = pg_ref[...].astype(mxu_dtype)            # (g*2W, g*Wh) block-diag pool
    rmask, cmask = _border_masks(colm_ref[...], width, hw)

    for b in range(xf_ref.shape[0]):              # small unrolled batch block
        x = xf_ref[b].astype(jnp.float32)         # (Cin, H*W) lane-dense
        oh = _conv3x3(x, w9, rmask, cmask, width, mxu_dtype)
        oh_ref[b] = oh.astype(oh_ref.dtype)

        if shared_view:
            xp = x.astype(mxu_dtype)              # reuse the loaded block
        else:
            xp = xp_ref[b].astype(mxu_dtype)      # (Cin*Hh/g, g*2W)
        pooled = jnp.dot(xp, pg, preferred_element_type=jnp.float32)
        pool_ref[b] = pooled.astype(pool_ref.dtype)


def _conv_kernel(xf_ref, w9_ref, colm_ref, o_ref, *, width, mxu_dtype):
    """Plain 3x3 / pad 1 conv on flat images (low-frequency branch)."""
    hw = xf_ref.shape[-1]
    w9 = w9_ref[...].astype(mxu_dtype)
    rmask, cmask = _border_masks(colm_ref[...], width, hw)
    for b in range(xf_ref.shape[0]):
        x = xf_ref[b].astype(jnp.float32)
        o = _conv3x3(x, w9, rmask, cmask, width, mxu_dtype)
        o_ref[b] = o.astype(o_ref.dtype)


# ---------------------------------------------------------------------------
# Host-side constant builders (tiny)
# ---------------------------------------------------------------------------

def _w_tap_major(w_oihw):
    """PyTorch OIHW weight -> (9, O, I), tap index = kh*3 + kw."""
    O, I, KH, KW = w_oihw.shape
    return jnp.transpose(w_oihw, (2, 3, 0, 1)).reshape(KH * KW, O, I)


def _col_left_mask(H, W, dtype):
    m = (np.arange(H * W) % W != 0).astype(np.float32).reshape(1, H * W)
    return jnp.asarray(m, dtype=dtype)


def _grouped_pool_matrix(W, g, dtype):
    """Block-diagonal pool matrix (g*2W, g*Wh): 2x2 average per output col."""
    Wh = W // 2
    P = np.zeros((g * 2 * W, g * Wh), np.float32)
    for j in range(g):
        for b in range(Wh):
            for u in (0, W):                       # first / second row of pair
                P[j * 2 * W + u + 2 * b, j * Wh + b] = 0.25
                P[j * 2 * W + u + 2 * b + 1, j * Wh + b] = 0.25
    return jnp.asarray(P, dtype=dtype)


def _pool_group(Hh, Wh):
    """Smallest divisor g of Hh with g*Wh >= 128 (lane-dense pooled store)."""
    for g in range(1, Hh + 1):
        if Hh % g == 0 and g * Wh >= 128:
            return g
    return Hh


def _batch_block(n, hw, target_lanes=2048):
    """Largest divisor of n whose block still moves <= ~target_lanes lanes."""
    cap = max(1, target_lanes // max(hw, 1))
    best = 1
    for b in range(1, n + 1):
        if n % b == 0 and b <= cap:
            best = b
    return best


def _compiler_params(est_bytes):
    kwargs = dict(dimension_semantics=("parallel",))
    # Only raise the scoped-VMEM limit when the working set actually needs it
    # (keeps default behaviour — and small-VMEM compatibility — otherwise).
    if est_bytes > 30 * 1024 * 1024:
        kwargs["vmem_limit_bytes"] = min(int(est_bytes * 1.25),
                                         100 * 1024 * 1024)
    return pltpu.CompilerParams(**kwargs)


# ---------------------------------------------------------------------------
# pallas_call wrappers
# ---------------------------------------------------------------------------

def _stage1_call(x, w9_h, mxu_dtype):
    """One call per batch block: X_h (flat) + AvgPool2d(2,2)(x) (lane-dense)."""
    N, Cin, H, W = x.shape
    C_high = w9_h.shape[1]
    Hh, Wh = H // 2, W // 2
    HW = H * W
    g = _pool_group(Hh, Wh)
    rows_p = (Cin * Hh) // g                     # pooled sublane rows / image
    lanes_p = g * Wh                             # pooled lane width
    B = _batch_block(N, HW)
    shared = (rows_p == Cin and 2 * W * g == HW)  # g == Hh: views coincide

    colm = _col_left_mask(H, W, x.dtype)
    pg = _grouped_pool_matrix(W, g, x.dtype)

    xf = x.reshape(N, Cin, HW)                   # free views of contiguous NCHW
    operands = [xf]
    in_specs = [pl.BlockSpec((B, Cin, HW), lambda n: (n, 0, 0))]
    if not shared:
        xp = x.reshape(N, rows_p, 2 * W * g)
        operands.append(xp)
        in_specs.append(pl.BlockSpec((B, rows_p, 2 * W * g),
                                     lambda n: (n, 0, 0)))
    # Grid-invariant operands (weights / mask row / pool matrix) are tiny, so
    # their default double-buffering is negligible.
    in_specs += [
        pl.BlockSpec((9, C_high, Cin), lambda n: (0, 0, 0)),
        pl.BlockSpec((1, HW), lambda n: (0, 0)),
        pl.BlockSpec((2 * W * g, lanes_p), lambda n: (0, 0)),
    ]

    itm = x.dtype.itemsize
    est = (2 * B * ((1 if shared else 2) * Cin * HW
                    + C_high * HW + rows_p * lanes_p) * itm
           + 2 * (9 * C_high * Cin + HW + 2 * W * g * lanes_p) * itm
           + 4 * (C_high + 4 * Cin) * HW)        # f32 acc + roll temporaries

    kernel = functools.partial(_stage1_kernel, width=W, mxu_dtype=mxu_dtype,
                               shared_view=shared)
    return pl.pallas_call(
        kernel,
        out_shape=(jax.ShapeDtypeStruct((N, C_high, HW), x.dtype),
                   jax.ShapeDtypeStruct((N, rows_p, lanes_p), x.dtype)),
        grid_spec=pltpu.PrefetchScalarGridSpec(
            num_scalar_prefetch=0,
            grid=(N // B,),
            in_specs=in_specs,
            out_specs=[
                pl.BlockSpec((B, C_high, HW), lambda n: (n, 0, 0)),
                pl.BlockSpec((B, rows_p, lanes_p), lambda n: (n, 0, 0)),
            ],
        ),
        compiler_params=_compiler_params(est),
    )(*operands, w9_h, colm, pg)


def _lowconv_call(pooled_flat, w9_l, width, mxu_dtype):
    """3x3/pad1 conv on the flat pooled tensor -> (N, C_low, Hh*Wh)."""
    N, Cin, HW2 = pooled_flat.shape
    C_low = w9_l.shape[1]
    B = _batch_block(N, HW2)
    colm = _col_left_mask(HW2 // width, width, pooled_flat.dtype)

    itm = pooled_flat.dtype.itemsize
    est = (2 * B * (Cin + C_low) * HW2 * itm
           + 2 * (9 * C_low * Cin + HW2) * itm
           + 4 * (C_low + 4 * Cin) * HW2)

    kernel = functools.partial(_conv_kernel, width=width, mxu_dtype=mxu_dtype)
    return pl.pallas_call(
        kernel,
        out_shape=jax.ShapeDtypeStruct((N, C_low, HW2), pooled_flat.dtype),
        grid_spec=pltpu.PrefetchScalarGridSpec(
            num_scalar_prefetch=0,
            grid=(N // B,),
            in_specs=[
                pl.BlockSpec((B, Cin, HW2), lambda n: (n, 0, 0)),
                pl.BlockSpec((9, C_low, Cin), lambda n: (0, 0, 0)),
                pl.BlockSpec((1, HW2), lambda n: (0, 0)),
            ],
            out_specs=pl.BlockSpec((B, C_low, HW2), lambda n: (n, 0, 0)),
        ),
        compiler_params=_compiler_params(est),
    )(pooled_flat, w9_l, colm)


def first_octave_conv(x, w_h2h, w_h2l, *, mxu_bf16=None):
    """Pallas FirstOctaveConv.forward: NCHW in, (X_h, X_l) NCHW out.

    mxu_bf16: None  -> bf16 MXU operands iff the input is bf16,
              True  -> force the v6e/v7x bf16 fast path (f32 accumulation),
              False -> force f32 MXU operands (exact path for f32 inputs).
    """
    N, Cin, H, W = x.shape
    assert H % 2 == 0 and W % 2 == 0, "AvgPool2d(2,2) path assumes even H, W"
    C_high = w_h2h.shape[0]
    C_low = w_h2l.shape[0]
    Hh, Wh = H // 2, W // 2

    if mxu_bf16 is None:
        mxu_bf16 = (x.dtype == jnp.bfloat16)
    mxu_dtype = jnp.bfloat16 if mxu_bf16 else jnp.float32

    w9_h = _w_tap_major(w_h2h).astype(mxu_dtype)   # (9, C_high, Cin)
    w9_l = _w_tap_major(w_h2l).astype(mxu_dtype)   # (9, C_low,  Cin)

    xh_flat, pooled_sr = _stage1_call(x, w9_h, mxu_dtype)
    # grouped stacked-row (N, Cin*Hh/g, g*Wh) -> flat (N, Cin, Hh*Wh):
    # identical HBM byte order, so this reshape is a free bitcast.
    pooled_flat = pooled_sr.reshape(N, Cin, Hh * Wh)
    xl_flat = _lowconv_call(pooled_flat, w9_l, Wh, mxu_dtype)

    return (xh_flat.reshape(N, C_high, H, W),
            xl_flat.reshape(N, C_low, Hh, Wh))


# ---------------------------------------------------------------------------
# Pure-JAX reference + self-check
# ---------------------------------------------------------------------------

def _reference(x_nchw, w_h2h, w_h2l):
    dn = ("NCHW", "OIHW", "NCHW")
    xh = lax.conv_general_dilated(x_nchw, w_h2h, (1, 1), ((1, 1), (1, 1)),
                                  dimension_numbers=dn)
    pooled = lax.reduce_window(x_nchw, 0.0, lax.add,
                               (1, 1, 2, 2), (1, 1, 2, 2), "VALID") * 0.25
    xl = lax.conv_general_dilated(pooled, w_h2l, (1, 1), ((1, 1), (1, 1)),
                                  dimension_numbers=dn)
    return xh, xl


if __name__ == "__main__":
    # FirstOctaveConv(in_ch=4, out_ch=8, kernel_size=(3, 3), alpha=0.5, bias=False)
    N, Cin, H, W = 2, 4, 16, 16
    out_ch, alpha = 8, 0.5
    c_low = int(alpha * out_ch)        # h2l output channels = 4
    c_high = out_ch - c_low            # h2h output channels = 4

    key = jax.random.PRNGKey(0)
    kx, kh, kl = jax.random.split(key, 3)
    x = jax.random.normal(kx, (N, Cin, H, W), jnp.float32)
    w_h2h = jax.random.normal(kh, (c_high, Cin, 3, 3), jnp.float32) * 0.1
    w_h2l = jax.random.normal(kl, (c_low, Cin, 3, 3), jnp.float32) * 0.1

    ref_h, ref_l = _reference(x, w_h2h, w_h2l)

    # Exact (f32 MXU) path — strict check.
    fwd = jax.jit(functools.partial(first_octave_conv, mxu_bf16=False))
    X_h, X_l = jax.block_until_ready(fwd(x, w_h2h, w_h2l))
    assert X_h.shape == (N, c_high, H, W)
    assert X_l.shape == (N, c_low, H // 2, W // 2)
    np.testing.assert_allclose(np.asarray(X_h), np.asarray(ref_h),
                               atol=1e-4, rtol=1e-4)
    np.testing.assert_allclose(np.asarray(X_l), np.asarray(ref_l),
                               atol=1e-4, rtol=1e-4)

    # bf16-operand MXU fast path (v6e/v7x) — loose check, f32 accumulation.
    fwd_bf16 = jax.jit(functools.partial(first_octave_conv, mxu_bf16=True))
    X_h2, X_l2 = jax.block_until_ready(fwd_bf16(x, w_h2h, w_h2l))
    np.testing.assert_allclose(np.asarray(X_h2), np.asarray(ref_h),
                               atol=5e-2, rtol=5e-2)
    np.testing.assert_allclose(np.asarray(X_l2), np.asarray(ref_l),
                               atol=5e-2, rtol=5e-2)

    print("KERNEL_OK")
</pallas_src>

<mosaic_0001>
module attributes {stable_mosaic.version = 11 : i64} {
  func.func @_stage1_kernel(%arg0: i32, %arg1: memref<2x4x256xf32, #tpu.memory_space<vmem>>, %arg2: memref<9x4x4xf32, #tpu.memory_space<vmem>>, %arg3: memref<1x256xf32, #tpu.memory_space<vmem>>, %arg4: memref<256x64xf32, #tpu.memory_space<vmem>>, %arg5: memref<2x4x256xf32, #tpu.memory_space<vmem>>, %arg6: memref<2x4x64xf32, #tpu.memory_space<vmem>>) attributes {dimension_semantics = [#tpu.dimension_semantics<parallel>], iteration_bounds = array<i64: 1>, scalar_prefetch = 0 : i64, scratch_operands = 0 : i64, tpu.core_type = #tpu.core_type<tc>, window_params = [{transform_indices = @transform_0, window_bounds = array<i64: 2, 4, 256>}, {pipeline_mode = #tpu.pipeline_mode<synchronous>, transform_indices = @transform_1, window_bounds = array<i64: 9, 4, 4>}, {pipeline_mode = #tpu.pipeline_mode<synchronous>, transform_indices = @transform_2, window_bounds = array<i64: 1, 256>}, {pipeline_mode = #tpu.pipeline_mode<synchronous>, transform_indices = @transform_3, window_bounds = array<i64: 256, 64>}, {transform_indices = @transform_4, window_bounds = array<i64: 2, 4, 256>}, {transform_indices = @transform_5, window_bounds = array<i64: 2, 4, 64>}]} {
    %c0 = arith.constant 0 : index
    %c0_0 = arith.constant 0 : index
    %c0_1 = arith.constant 0 : index
    %0 = vector.load %arg2[%c0, %c0_0, %c0_1] : memref<9x4x4xf32, #tpu.memory_space<vmem>>, vector<9x4x4xf32>
    %c0_2 = arith.constant 0 : index
    %c0_3 = arith.constant 0 : index
    %1 = vector.load %arg4[%c0_2, %c0_3] : memref<256x64xf32, #tpu.memory_space<vmem>>, vector<256x64xf32>
    %c0_4 = arith.constant 0 : index
    %c0_5 = arith.constant 0 : index
    %2 = vector.load %arg3[%c0_4, %c0_5] : memref<1x256xf32, #tpu.memory_space<vmem>>, vector<1x256xf32>
    %3 = tpu.iota {dimensions = array<i32: 1>} : vector<1x256xi32>
    %c16_i32 = arith.constant 16 : i32
    %4 = vector.broadcast %c16_i32 : i32 to vector<1x256xi32>
    %5 = arith.cmpi sge, %3, %4 : vector<1x256xi32>
    %6 = arith.extui %5 : vector<1x256xi1> to vector<1x256xi32>
    %7 = arith.sitofp %6 : vector<1x256xi32> to vector<1x256xf32>
    %c240_i32 = arith.constant 240 : i32
    %8 = vector.broadcast %c240_i32 : i32 to vector<1x256xi32>
    %9 = arith.cmpi slt, %3, %8 : vector<1x256xi32>
    %10 = arith.extui %9 : vector<1x256xi1> to vector<1x256xi32>
    %11 = arith.sitofp %10 : vector<1x256xi32> to vector<1x256xf32>
    %c255_i32 = arith.constant 255 : i32
    %12 = tpu.dynamic_rotate %2 by %c255_i32 dim 1 : vector<1x256xf32>, i32 -> vector<1x256xf32>
    %c0_6 = arith.constant 0 : index
    %c0_7 = arith.constant 0 : index
    %c0_8 = arith.constant 0 : index
    %13 = vector.load %arg1[%c0_6, %c0_7, %c0_8] : memref<2x4x256xf32, #tpu.memory_space<vmem>>, vector<1x4x256xf32>
    %14 = vector.shape_cast %13 : vector<1x4x256xf32> to vector<4x256xf32>
    %c17_i32 = arith.constant 17 : i32
    %15 = tpu.dynamic_rotate %14 by %c17_i32 dim 1 : vector<4x256xf32>, i32 -> vector<4x256xf32>
    %16 = vector.broadcast %7 : vector<1x256xf32> to vector<4x256xf32>
    %17 = arith.mulf %15, %16 : vector<4x256xf32>
    %18 = vector.broadcast %2 : vector<1x256xf32> to vector<4x256xf32>
    %19 = arith.mulf %17, %18 : vector<4x256xf32>
    %20 = vector.extract_strided_slice %0 {offsets = [0, 0, 0], sizes = [1, 4, 4], strides = [1, 1, 1]} : vector<9x4x4xf32> to vector<1x4x4xf32>
    %21 = vector.shape_cast %20 : vector<1x4x4xf32> to vector<4x4xf32>
    %cst = arith.constant dense<0.000000e+00> : vector<4x256xf32>
    %22 = tpu.matmul %21, %19, %cst {dimension_numbers = #tpu.dot_dimension_numbers<[1], [0], [0], [1], [0, 0, 1, 1], [], []>} : vector<4x4xf32>, vector<4x256xf32>, vector<4x256xf32> -> vector<4x256xf32>
    %c16_i32_9 = arith.constant 16 : i32
    %23 = tpu.dynamic_rotate %14 by %c16_i32_9 dim 1 : vector<4x256xf32>, i32 -> vector<4x256xf32>
    %24 = vector.broadcast %7 : vector<1x256xf32> to vector<4x256xf32>
    %25 = arith.mulf %23, %24 : vector<4x256xf32>
    %26 = vector.extract_strided_slice %0 {offsets = [1, 0, 0], sizes = [1, 4, 4], strides = [1, 1, 1]} : vector<9x4x4xf32> to vector<1x4x4xf32>
    %27 = vector.shape_cast %26 : vector<1x4x4xf32> to vector<4x4xf32>
    %cst_10 = arith.constant dense<0.000000e+00> : vector<4x256xf32>
    %28 = tpu.matmul %27, %25, %cst_10 {dimension_numbers = #tpu.dot_dimension_numbers<[1], [0], [0], [1], [0, 0, 1, 1], [], []>} : vector<4x4xf32>, vector<4x256xf32>, vector<4x256xf32> -> vector<4x256xf32>
    %29 = arith.addf %22, %28 : vector<4x256xf32>
    %c15_i32 = arith.constant 15 : i32
    %30 = tpu.dynamic_rotate %14 by %c15_i32 dim 1 : vector<4x256xf32>, i32 -> vector<4x256xf32>
    %31 = vector.broadcast %7 : vector<1x256xf32> to vector<4x256xf32>
    %32 = arith.mulf %30, %31 : vector<4x256xf32>
    %33 = vector.broadcast %12 : vector<1x256xf32> to vector<4x256xf32>
    %34 = arith.mulf %32, %33 : vector<4x256xf32>
    %35 = vector.extract_strided_slice %0 {offsets = [2, 0, 0], sizes = [1, 4, 4], strides = [1, 1, 1]} : vector<9x4x4xf32> to vector<1x4x4xf32>
    %36 = vector.shape_cast %35 : vector<1x4x4xf32> to vector<4x4xf32>
    %cst_11 = arith.constant dense<0.000000e+00> : vector<4x256xf32>
    %37 = tpu.matmul %36, %34, %cst_11 {dimension_numbers = #tpu.dot_dimension_numbers<[1], [0], [0], [1], [0, 0, 1, 1], [], []>} : vector<4x4xf32>, vector<4x256xf32>, vector<4x256xf32> -> vector<4x256xf32>
    %38 = arith.addf %29, %37 : vector<4x256xf32>
    %c1_i32 = arith.constant 1 : i32
    %39 = tpu.dynamic_rotate %14 by %c1_i32 dim 1 : vector<4x256xf32>, i32 -> vector<4x256xf32>
    %40 = vector.broadcast %2 : vector<1x256xf32> to vector<4x256xf32>
    %41 = arith.mulf %39, %40 : vector<4x256xf32>
    %42 = vector.extract_strided_slice %0 {offsets = [3, 0, 0], sizes = [1, 4, 4], strides = [1, 1, 1]} : vector<9x4x4xf32> to vector<1x4x4xf32>
    %43 = vector.shape_cast %42 : vector<1x4x4xf32> to vector<4x4xf32>
    %cst_12 = arith.constant dense<0.000000e+00> : vector<4x256xf32>
    %44 = tpu.matmul %43, %41, %cst_12 {dimension_numbers = #tpu.dot_dimension_numbers<[1], [0], [0], [1], [0, 0, 1, 1], [], []>} : vector<4x4xf32>, vector<4x256xf32>, vector<4x256xf32> -> vector<4x256xf32>
    %45 = arith.addf %38, %44 : vector<4x256xf32>
    %46 = vector.extract_strided_slice %0 {offsets = [4, 0, 0], sizes = [1, 4, 4], strides = [1, 1, 1]} : vector<9x4x4xf32> to vector<1x4x4xf32>
    %47 = vector.shape_cast %46 : vector<1x4x4xf32> to vector<4x4xf32>
    %cst_13 = arith.constant dense<0.000000e+00> : vector<4x256xf32>
    %48 = tpu.matmul %47, %14, %cst_13 {dimension_numbers = #tpu.dot_dimension_numbers<[1], [0], [0], [1], [0, 0, 1, 1], [], []>} : vector<4x4xf32>, vector<4x256xf32>, vector<4x256xf32> -> vector<4x256xf32>
    %49 = arith.addf %45, %48 : vector<4x256xf32>
    %c255_i32_14 = arith.constant 255 : i32
    %50 = tpu.dynamic_rotate %14 by %c255_i32_14 dim 1 : vector<4x256xf32>, i32 -> vector<4x256xf32>
    %51 = vector.broadcast %12 : vector<1x256xf32> to vector<4x256xf32>
    %52 = arith.mulf %50, %51 : vector<4x256xf32>
    %53 = vector.extract_strided_slice %0 {offsets = [5, 0, 0], sizes = [1, 4, 4], strides = [1, 1, 1]} : vector<9x4x4xf32> to vector<1x4x4xf32>
    %54 = vector.shape_cast %53 : vector<1x4x4xf32> to vector<4x4xf32>
    %cst_15 = arith.constant dense<0.000000e+00> : vector<4x256xf32>
    %55 = tpu.matmul %54, %52, %cst_15 {dimension_numbers = #tpu.dot_dimension_numbers<[1], [0], [0], [1], [0, 0, 1, 1], [], []>} : vector<4x4xf32>, vector<4x256xf32>, vector<4x256xf32> -> vector<4x256xf32>
    %56 = arith.addf %49, %55 : vector<4x256xf32>
    %c241_i32 = arith.constant 241 : i32
    %57 = tpu.dynamic_rotate %14 by %c241_i32 dim 1 : vector<4x256xf32>, i32 -> vector<4x256xf32>
    %58 = vector.broadcast %11 : vector<1x256xf32> to vector<4x256xf32>
    %59 = arith.mulf %57, %58 : vector<4x256xf32>
    %60 = vector.broadcast %2 : vector<1x256xf32> to vector<4x256xf32>
    %61 = arith.mulf %59, %60 : vector<4x256xf32>
    %62 = vector.extract_strided_slice %0 {offsets = [6, 0, 0], sizes = [1, 4, 4], strides = [1, 1, 1]} : vector<9x4x4xf32> to vector<1x4x4xf32>
    %63 = vector.shape_cast %62 : vector<1x4x4xf32> to vector<4x4xf32>
    %cst_16 = arith.constant dense<0.000000e+00> : vector<4x256xf32>
    %64 = tpu.matmul %63, %61, %cst_16 {dimension_numbers = #tpu.dot_dimension_numbers<[1], [0], [0], [1], [0, 0, 1, 1], [], []>} : vector<4x4xf32>, vector<4x256xf32>, vector<4x256xf32> -> vector<4x256xf32>
    %65 = arith.addf %56, %64 : vector<4x256xf32>
    %c240_i32_17 = arith.constant 240 : i32
    %66 = tpu.dynamic_rotate %14 by %c240_i32_17 dim 1 : vector<4x256xf32>, i32 -> vector<4x256xf32>
    %67 = vector.broadcast %11 : vector<1x256xf32> to vector<4x256xf32>
    %68 = arith.mulf %66, %67 : vector<4x256xf32>
    %69 = vector.extract_strided_slice %0 {offsets = [7, 0, 0], sizes = [1, 4, 4], strides = [1, 1, 1]} : vector<9x4x4xf32> to vector<1x4x4xf32>
    %70 = vector.shape_cast %69 : vector<1x4x4xf32> to vector<4x4xf32>
    %cst_18 = arith.constant dense<0.000000e+00> : vector<4x256xf32>
    %71 = tpu.matmul %70, %68, %cst_18 {dimension_numbers = #tpu.dot_dimension_numbers<[1], [0], [0], [1], [0, 0, 1, 1], [], []>} : vector<4x4xf32>, vector<4x256xf32>, vector<4x256xf32> -> vector<4x256xf32>
    %72 = arith.addf %65, %71 : vector<4x256xf32>
    %c239_i32 = arith.constant 239 : i32
    %73 = tpu.dynamic_rotate %14 by %c239_i32 dim 1 : vector<4x256xf32>, i32 -> vector<4x256xf32>
    %74 = vector.broadcast %11 : vector<1x256xf32> to vector<4x256xf32>
    %75 = arith.mulf %73, %74 : vector<4x256xf32>
    %76 = vector.broadcast %12 : vector<1x256xf32> to vector<4x256xf32>
    %77 = arith.mulf %75, %76 : vector<4x256xf32>
    %78 = vector.extract_strided_slice %0 {offsets = [8, 0, 0], sizes = [1, 4, 4], strides = [1, 1, 1]} : vector<9x4x4xf32> to vector<1x4x4xf32>
    %79 = vector.shape_cast %78 : vector<1x4x4xf32> to vector<4x4xf32>
    %cst_19 = arith.constant dense<0.000000e+00> : vector<4x256xf32>
    %80 = tpu.matmul %79, %77, %cst_19 {dimension_numbers = #tpu.dot_dimension_numbers<[1], [0], [0], [1], [0, 0, 1, 1], [], []>} : vector<4x4xf32>, vector<4x256xf32>, vector<4x256xf32> -> vector<4x256xf32>
    %81 = arith.addf %72, %80 : vector<4x256xf32>
    %c0_20 = arith.constant 0 : index
    %c0_21 = arith.constant 0 : index
    %c0_22 = arith.constant 0 : index
    %82 = vector.load %arg5[%c0_20, %c0_21, %c0_22] : memref<2x4x256xf32, #tpu.memory_space<vmem>>, vector<1x4x256xf32>
    %83 = vector.shape_cast %82 : vector<1x4x256xf32> to vector<4x256xf32>
    %84 = vector.shape_cast %81 : vector<4x256xf32> to vector<1x4x256xf32>
    tpu.vector_store %arg5[%c0_20, %c0_21, %c0_22], %84 {strides = array<i32>} : memref<2x4x256xf32, #tpu.memory_space<vmem>>, vector<1x4x256xf32>,
    %cst_23 = arith.constant dense<0.000000e+00> : vector<4x64xf32>
    %85 = tpu.matmul %14, %1, %cst_23 {dimension_numbers = #tpu.dot_dimension_numbers<[1], [0], [0], [1], [0, 0, 1, 1], [], []>} : vector<4x256xf32>, vector<256x64xf32>, vector<4x64xf32> -> vector<4x64xf32>
    %c0_24 = arith.constant 0 : index
    %c0_25 = arith.constant 0 : index
    %c0_26 = arith.constant 0 : index
    %86 = vector.load %arg6[%c0_24, %c0_25, %c0_26] : memref<2x4x64xf32, #tpu.memory_space<vmem>>, vector<1x4x64xf32>
    %87 = vector.shape_cast %86 : vector<1x4x64xf32> to vector<4x64xf32>
    %88 = vector.shape_cast %85 : vector<4x64xf32> to vector<1x4x64xf32>
    tpu.vector_store %arg6[%c0_24, %c0_25, %c0_26], %88 {strides = array<i32>} : memref<2x4x64xf32, #tpu.memory_space<vmem>>, vector<1x4x64xf32>,
    %c1 = arith.constant 1 : index
    %c0_27 = arith.constant 0 : index
    %c0_28 = arith.constant 0 : index
    %89 = vector.load %arg1[%c1, %c0_27, %c0_28] : memref<2x4x256xf32, #tpu.memory_space<vmem>>, vector<1x4x256xf32>
    %90 = vector.shape_cast %89 : vector<1x4x256xf32> to vector<4x256xf32>
    %c17_i32_29 = arith.constant 17 : i32
    %91 = tpu.dynamic_rotate %90 by %c17_i32_29 dim 1 : vector<4x256xf32>, i32 -> vector<4x256xf32>
    %92 = vector.broadcast %7 : vector<1x256xf32> to vector<4x256xf32>
    %93 = arith.mulf %91, %92 : vector<4x256xf32>
    %94 = vector.broadcast %2 : vector<1x256xf32> to vector<4x256xf32>
    %95 = arith.mulf %93, %94 : vector<4x256xf32>
    %96 = vector.extract_strided_slice %0 {offsets = [0, 0, 0], sizes = [1, 4, 4], strides = [1, 1, 1]} : vector<9x4x4xf32> to vector<1x4x4xf32>
    %97 = vector.shape_cast %96 : vector<1x4x4xf32> to vector<4x4xf32>
    %cst_30 = arith.constant dense<0.000000e+00> : vector<4x256xf32>
    %98 = tpu.matmul %97, %95, %cst_30 {dimension_numbers = #tpu.dot_dimension_numbers<[1], [0], [0], [1], [0, 0, 1, 1], [], []>} : vector<4x4xf32>, vector<4x256xf32>, vector<4x256xf32> -> vector<4x256xf32>
    %c16_i32_31 = arith.constant 16 : i32
    %99 = tpu.dynamic_rotate %90 by %c16_i32_31 dim 1 : vector<4x256xf32>, i32 -> vector<4x256xf32>
    %100 = vector.broadcast %7 : vector<1x256xf32> to vector<4x256xf32>
    %101 = arith.mulf %99, %100 : vector<4x256xf32>
    %102 = vector.extract_strided_slice %0 {offsets = [1, 0, 0], sizes = [1, 4, 4], strides = [1, 1, 1]} : vector<9x4x4xf32> to vector<1x4x4xf32>
    %103 = vector.shape_cast %102 : vector<1x4x4xf32> to vector<4x4xf32>
    %cst_32 = arith.constant dense<0.000000e+00> : vector<4x256xf32>
    %104 = tpu.matmul %103, %101, %cst_32 {dimension_numbers = #tpu.dot_dimension_numbers<[1], [0], [0], [1], [0, 0, 1, 1], [], []>} : vector<4x4xf32>, vector<4x256xf32>, vector<4x256xf32> -> vector<4x256xf32>
    %105 = arith.addf %98, %104 : vector<4x256xf32>
    %c15_i32_33 = arith.constant 15 : i32
    %106 = tpu.dynamic_rotate %90 by %c15_i32_33 dim 1 : vector<4x256xf32>, i32 -> vector<4x256xf32>
    %107 = vector.broadcast %7 : vector<1x256xf32> to vector<4x256xf32>
    %108 = arith.mulf %106, %107 : vector<4x256xf32>
    %109 = vector.broadcast %12 : vector<1x256xf32> to vector<4x256xf32>
    %110 = arith.mulf %108, %109 : vector<4x256xf32>
    %111 = vector.extract_strided_slice %0 {offsets = [2, 0, 0], sizes = [1, 4, 4], strides = [1, 1, 1]} : vector<9x4x4xf32> to vector<1x4x4xf32>
    %112 = vector.shape_cast %111 : vector<1x4x4xf32> to vector<4x4xf32>
    %cst_34 = arith.constant dense<0.000000e+00> : vector<4x256xf32>
    %113 = tpu.matmul %112, %110, %cst_34 {dimension_numbers = #tpu.dot_dimension_numbers<[1], [0], [0], [1], [0, 0, 1, 1], [], []>} : vector<4x4xf32>, vector<4x256xf32>, vector<4x256xf32> -> vector<4x256xf32>
    %114 = arith.addf %105, %113 : vector<4x256xf32>
    %c1_i32_35 = arith.constant 1 : i32
    %115 = tpu.dynamic_rotate %90 by %c1_i32_35 dim 1 : vector<4x256xf32>, i32 -> vector<4x256xf32>
    %116 = vector.broadcast %2 : vector<1x256xf32> to vector<4x256xf32>
    %117 = arith.mulf %115, %116 : vector<4x256xf32>
    %118 = vector.extract_strided_slice %0 {offsets = [3, 0, 0], sizes = [1, 4, 4], strides = [1, 1, 1]} : vector<9x4x4xf32> to vector<1x4x4xf32>
    %119 = vector.shape_cast %118 : vector<1x4x4xf32> to vector<4x4xf32>
    %cst_36 = arith.constant dense<0.000000e+00> : vector<4x256xf32>
    %120 = tpu.matmul %119, %117, %cst_36 {dimension_numbers = #tpu.dot_dimension_numbers<[1], [0], [0], [1], [0, 0, 1, 1], [], []>} : vector<4x4xf32>, vector<4x256xf32>, vector<4x256xf32> -> vector<4x256xf32>
    %121 = arith.addf %114, %120 : vector<4x256xf32>
    %122 = vector.extract_strided_slice %0 {offsets = [4, 0, 0], sizes = [1, 4, 4], strides = [1, 1, 1]} : vector<9x4x4xf32> to vector<1x4x4xf32>
    %123 = vector.shape_cast %122 : vector<1x4x4xf32> to vector<4x4xf32>
    %cst_37 = arith.constant dense<0.000000e+00> : vector<4x256xf32>
    %124 = tpu.matmul %123, %90, %cst_37 {dimension_numbers = #tpu.dot_dimension_numbers<[1], [0], [0], [1], [0, 0, 1, 1], [], []>} : vector<4x4xf32>, vector<4x256xf32>, vector<4x256xf32> -> vector<4x256xf32>
    %125 = arith.addf %121, %124 : vector<4x256xf32>
    %c255_i32_38 = arith.constant 255 : i32
    %126 = tpu.dynamic_rotate %90 by %c255_i32_38 dim 1 : vector<4x256xf32>, i32 -> vector<4x256xf32>
    %127 = vector.broadcast %12 : vector<1x256xf32> to vector<4x256xf32>
    %128 = arith.mulf %126, %127 : vector<4x256xf32>
    %129 = vector.extract_strided_slice %0 {offsets = [5, 0, 0], sizes = [1, 4, 4], strides = [1, 1, 1]} : vector<9x4x4xf32> to vector<1x4x4xf32>
    %130 = vector.shape_cast %129 : vector<1x4x4xf32> to vector<4x4xf32>
    %cst_39 = arith.constant dense<0.000000e+00> : vector<4x256xf32>
    %131 = tpu.matmul %130, %128, %cst_39 {dimension_numbers = #tpu.dot_dimension_numbers<[1], [0], [0], [1], [0, 0, 1, 1], [], []>} : vector<4x4xf32>, vector<4x256xf32>, vector<4x256xf32> -> vector<4x256xf32>
    %132 = arith.addf %125, %131 : vector<4x256xf32>
    %c241_i32_40 = arith.constant 241 : i32
    %133 = tpu.dynamic_rotate %90 by %c241_i32_40 dim 1 : vector<4x256xf32>, i32 -> vector<4x256xf32>
    %134 = vector.broadcast %11 : vector<1x256xf32> to vector<4x256xf32>
    %135 = arith.mulf %133, %134 : vector<4x256xf32>
    %136 = vector.broadcast %2 : vector<1x256xf32> to vector<4x256xf32>
    %137 = arith.mulf %135, %136 : vector<4x256xf32>
    %138 = vector.extract_strided_slice %0 {offsets = [6, 0, 0], sizes = [1, 4, 4], strides = [1, 1, 1]} : vector<9x4x4xf32> to vector<1x4x4xf32>
    %139 = vector.shape_cast %138 : vector<1x4x4xf32> to vector<4x4xf32>
    %cst_41 = arith.constant dense<0.000000e+00> : vector<4x256xf32>
    %140 = tpu.matmul %139, %137, %cst_41 {dimension_numbers = #tpu.dot_dimension_numbers<[1], [0], [0], [1], [0, 0, 1, 1], [], []>} : vector<4x4xf32>, vector<4x256xf32>, vector<4x256xf32> -> vector<4x256xf32>
    %141 = arith.addf %132, %140 : vector<4x256xf32>
    %c240_i32_42 = arith.constant 240 : i32
    %142 = tpu.dynamic_rotate %90 by %c240_i32_42 dim 1 : vector<4x256xf32>, i32 -> vector<4x256xf32>
    %143 = vector.broadcast %11 : vector<1x256xf32> to vector<4x256xf32>
    %144 = arith.mulf %142, %143 : vector<4x256xf32>
    %145 = vector.extract_strided_slice %0 {offsets = [7, 0, 0], sizes = [1, 4, 4], strides = [1, 1, 1]} : vector<9x4x4xf32> to vector<1x4x4xf32>
    %146 = vector.shape_cast %145 : vector<1x4x4xf32> to vector<4x4xf32>
    %cst_43 = arith.constant dense<0.000000e+00> : vector<4x256xf32>
    %147 = tpu.matmul %146, %144, %cst_43 {dimension_numbers = #tpu.dot_dimension_numbers<[1], [0], [0], [1], [0, 0, 1, 1], [], []>} : vector<4x4xf32>, vector<4x256xf32>, vector<4x256xf32> -> vector<4x256xf32>
    %148 = arith.addf %141, %147 : vector<4x256xf32>
    %c239_i32_44 = arith.constant 239 : i32
    %149 = tpu.dynamic_rotate %90 by %c239_i32_44 dim 1 : vector<4x256xf32>, i32 -> vector<4x256xf32>
    %150 = vector.broadcast %11 : vector<1x256xf32> to vector<4x256xf32>
    %151 = arith.mulf %149, %150 : vector<4x256xf32>
    %152 = vector.broadcast %12 : vector<1x256xf32> to vector<4x256xf32>
    %153 = arith.mulf %151, %152 : vector<4x256xf32>
    %154 = vector.extract_strided_slice %0 {offsets = [8, 0, 0], sizes = [1, 4, 4], strides = [1, 1, 1]} : vector<9x4x4xf32> to vector<1x4x4xf32>
    %155 = vector.shape_cast %154 : vector<1x4x4xf32> to vector<4x4xf32>
    %cst_45 = arith.constant dense<0.000000e+00> : vector<4x256xf32>
    %156 = tpu.matmul %155, %153, %cst_45 {dimension_numbers = #tpu.dot_dimension_numbers<[1], [0], [0], [1], [0, 0, 1, 1], [], []>} : vector<4x4xf32>, vector<4x256xf32>, vector<4x256xf32> -> vector<4x256xf32>
    %157 = arith.addf %148, %156 : vector<4x256xf32>
    %c1_46 = arith.constant 1 : index
    %c0_47 = arith.constant 0 : index
    %c0_48 = arith.constant 0 : index
    %158 = vector.load %arg5[%c1_46, %c0_47, %c0_48] : memref<2x4x256xf32, #tpu.memory_space<vmem>>, vector<1x4x256xf32>
    %159 = vector.shape_cast %158 : vector<1x4x256xf32> to vector<4x256xf32>
    %160 = vector.shape_cast %157 : vector<4x256xf32> to vector<1x4x256xf32>
    tpu.vector_store %arg5[%c1_46, %c0_47, %c0_48], %160 {strides = array<i32>} : memref<2x4x256xf32, #tpu.memory_space<vmem>>, vector<1x4x256xf32>,
    %cst_49 = arith.constant dense<0.000000e+00> : vector<4x64xf32>
    %161 = tpu.matmul %90, %1, %cst_49 {dimension_numbers = #tpu.dot_dimension_numbers<[1], [0], [0], [1], [0, 0, 1, 1], [], []>} : vector<4x256xf32>, vector<256x64xf32>, vector<4x64xf32> -> vector<4x64xf32>
    %c1_50 = arith.constant 1 : index
    %c0_51 = arith.constant 0 : index
    %c0_52 = arith.constant 0 : index
    %162 = vector.load %arg6[%c1_50, %c0_51, %c0_52] : memref<2x4x64xf32, #tpu.memory_space<vmem>>, vector<1x4x64xf32>
    %163 = vector.shape_cast %162 : vector<1x4x64xf32> to vector<4x64xf32>
    %164 = vector.shape_cast %161 : vector<4x64xf32> to vector<1x4x64xf32>
    tpu.vector_store %arg6[%c1_50, %c0_51, %c0_52], %164 {strides = array<i32>} : memref<2x4x64xf32, #tpu.memory_space<vmem>>, vector<1x4x64xf32>,
    return
  }
  func.func @transform_0(%arg0: i32) -> (i32, i32, i32) {
    %c0_i32 = arith.constant 0 : i32
    %c0_i32_0 = arith.constant 0 : i32
    %c0_i32_1 = arith.constant 0 : i32
    return %arg0, %c0_i32, %c0_i32_0 : i32, i32, i32
  }
  func.func @transform_1(%arg0: i32) -> (i32, i32, i32) {
    %c0_i32 = arith.constant 0 : i32
    %c0_i32_0 = arith.constant 0 : i32
    %c0_i32_1 = arith.constant 0 : i32
    %c0_i32_2 = arith.constant 0 : i32
    return %c0_i32, %c0_i32_0, %c0_i32_1 : i32, i32, i32
  }
  func.func @transform_2(%arg0: i32) -> (i32, i32) {
    %c0_i32 = arith.constant 0 : i32
    %c0_i32_0 = arith.constant 0 : i32
    %c0_i32_1 = arith.constant 0 : i32
    return %c0_i32, %c0_i32_0 : i32, i32
  }
  func.func @transform_3(%arg0: i32) -> (i32, i32) {
    %c0_i32 = arith.constant 0 : i32
    %c0_i32_0 = arith.constant 0 : i32
    %c0_i32_1 = arith.constant 0 : i32
    return %c0_i32, %c0_i32_0 : i32, i32
  }
  func.func @transform_4(%arg0: i32) -> (i32, i32, i32) {
    %c0_i32 = arith.constant 0 : i32
    %c0_i32_0 = arith.constant 0 : i32
    %c0_i32_1 = arith.constant 0 : i32
    return %arg0, %c0_i32, %c0_i32_0 : i32, i32, i32
  }
  func.func @transform_5(%arg0: i32) -> (i32, i32, i32) {
    %c0_i32 = arith.constant 0 : i32
    %c0_i32_0 = arith.constant 0 : i32
    %c0_i32_1 = arith.constant 0 : i32
    return %arg0, %c0_i32, %c0_i32_0 : i32, i32, i32
  }
}

module attributes {stable_mosaic.version = 11 : i64} {
  func.func @_conv_kernel(%arg0: i32, %arg1: memref<2x4x64xf32, #tpu.memory_space<vmem>>, %arg2: memref<9x4x4xf32, #tpu.memory_space<vmem>>, %arg3: memref<1x64xf32, #tpu.memory_space<vmem>>, %arg4: memref<2x4x64xf32, #tpu.memory_space<vmem>>) attributes {dimension_semantics = [#tpu.dimension_semantics<parallel>], iteration_bounds = array<i64: 1>, scalar_prefetch = 0 : i64, scratch_operands = 0 : i64, tpu.core_type = #tpu.core_type<tc>, window_params = [{transform_indices = @transform_0, window_bounds = array<i64: 2, 4, 64>}, {pipeline_mode = #tpu.pipeline_mode<synchronous>, transform_indices = @transform_1, window_bounds = array<i64: 9, 4, 4>}, {pipeline_mode = #tpu.pipeline_mode<synchronous>, transform_indices = @transform_2, window_bounds = array<i64: 1, 64>}, {transform_indices = @transform_3, window_bounds = array<i64: 2, 4, 64>}]} {
    %c0 = arith.constant 0 : index
    %c0_0 = arith.constant 0 : index
    %c0_1 = arith.constant 0 : index
    %0 = vector.load %arg2[%c0, %c0_0, %c0_1] : memref<9x4x4xf32, #tpu.memory_space<vmem>>, vector<9x4x4xf32>
    %c0_2 = arith.constant 0 : index
    %c0_3 = arith.constant 0 : index
    %1 = vector.load %arg3[%c0_2, %c0_3] : memref<1x64xf32, #tpu.memory_space<vmem>>, vector<1x64xf32>
    %2 = tpu.iota {dimensions = array<i32: 1>} : vector<1x64xi32>
    %c8_i32 = arith.constant 8 : i32
    %3 = vector.broadcast %c8_i32 : i32 to vector<1x64xi32>
    %4 = arith.cmpi sge, %2, %3 : vector<1x64xi32>
    %5 = arith.extui %4 : vector<1x64xi1> to vector<1x64xi32>
    %6 = arith.sitofp %5 : vector<1x64xi32> to vector<1x64xf32>
    %c56_i32 = arith.constant 56 : i32
    %7 = vector.broadcast %c56_i32 : i32 to vector<1x64xi32>
    %8 = arith.cmpi slt, %2, %7 : vector<1x64xi32>
    %9 = arith.extui %8 : vector<1x64xi1> to vector<1x64xi32>
    %10 = arith.sitofp %9 : vector<1x64xi32> to vector<1x64xf32>
    %c63_i32 = arith.constant 63 : i32
    %11 = tpu.dynamic_rotate %1 by %c63_i32 dim 1 : vector<1x64xf32>, i32 -> vector<1x64xf32>
    %c0_4 = arith.constant 0 : index
    %c0_5 = arith.constant 0 : index
    %c0_6 = arith.constant 0 : index
    %12 = vector.load %arg1[%c0_4, %c0_5, %c0_6] : memref<2x4x64xf32, #tpu.memory_space<vmem>>, vector<1x4x64xf32>
    %13 = vector.shape_cast %12 : vector<1x4x64xf32> to vector<4x64xf32>
    %c9_i32 = arith.constant 9 : i32
    %14 = tpu.dynamic_rotate %13 by %c9_i32 dim 1 : vector<4x64xf32>, i32 -> vector<4x64xf32>
    %15 = vector.broadcast %6 : vector<1x64xf32> to vector<4x64xf32>
    %16 = arith.mulf %14, %15 : vector<4x64xf32>
    %17 = vector.broadcast %1 : vector<1x64xf32> to vector<4x64xf32>
    %18 = arith.mulf %16, %17 : vector<4x64xf32>
    %19 = vector.extract_strided_slice %0 {offsets = [0, 0, 0], sizes = [1, 4, 4], strides = [1, 1, 1]} : vector<9x4x4xf32> to vector<1x4x4xf32>
    %20 = vector.shape_cast %19 : vector<1x4x4xf32> to vector<4x4xf32>
    %cst = arith.constant dense<0.000000e+00> : vector<4x64xf32>
    %21 = tpu.matmul %20, %18, %cst {dimension_numbers = #tpu.dot_dimension_numbers<[1], [0], [0], [1], [0, 0, 1, 1], [], []>} : vector<4x4xf32>, vector<4x64xf32>, vector<4x64xf32> -> vector<4x64xf32>
    %c8_i32_7 = arith.constant 8 : i32
    %22 = tpu.dynamic_rotate %13 by %c8_i32_7 dim 1 : vector<4x64xf32>, i32 -> vector<4x64xf32>
    %23 = vector.broadcast %6 : vector<1x64xf32> to vector<4x64xf32>
    %24 = arith.mulf %22, %23 : vector<4x64xf32>
    %25 = vector.extract_strided_slice %0 {offsets = [1, 0, 0], sizes = [1, 4, 4], strides = [1, 1, 1]} : vector<9x4x4xf32> to vector<1x4x4xf32>
    %26 = vector.shape_cast %25 : vector<1x4x4xf32> to vector<4x4xf32>
    %cst_8 = arith.constant dense<0.000000e+00> : vector<4x64xf32>
    %27 = tpu.matmul %26, %24, %cst_8 {dimension_numbers = #tpu.dot_dimension_numbers<[1], [0], [0], [1], [0, 0, 1, 1], [], []>} : vector<4x4xf32>, vector<4x64xf32>, vector<4x64xf32> -> vector<4x64xf32>
    %28 = arith.addf %21, %27 : vector<4x64xf32>
    %c7_i32 = arith.constant 7 : i32
    %29 = tpu.dynamic_rotate %13 by %c7_i32 dim 1 : vector<4x64xf32>, i32 -> vector<4x64xf32>
    %30 = vector.broadcast %6 : vector<1x64xf32> to vector<4x64xf32>
    %31 = arith.mulf %29, %30 : vector<4x64xf32>
    %32 = vector.broadcast %11 : vector<1x64xf32> to vector<4x64xf32>
    %33 = arith.mulf %31, %32 : vector<4x64xf32>
    %34 = vector.extract_strided_slice %0 {offsets = [2, 0, 0], sizes = [1, 4, 4], strides = [1, 1, 1]} : vector<9x4x4xf32> to vector<1x4x4xf32>
    %35 = vector.shape_cast %34 : vector<1x4x4xf32> to vector<4x4xf32>
    %cst_9 = arith.constant dense<0.000000e+00> : vector<4x64xf32>
    %36 = tpu.matmul %35, %33, %cst_9 {dimension_numbers = #tpu.dot_dimension_numbers<[1], [0], [0], [1], [0, 0, 1, 1], [], []>} : vector<4x4xf32>, vector<4x64xf32>, vector<4x64xf32> -> vector<4x64xf32>
    %37 = arith.addf %28, %36 : vector<4x64xf32>
    %c1_i32 = arith.constant 1 : i32
    %38 = tpu.dynamic_rotate %13 by %c1_i32 dim 1 : vector<4x64xf32>, i32 -> vector<4x64xf32>
    %39 = vector.broadcast %1 : vector<1x64xf32> to vector<4x64xf32>
    %40 = arith.mulf %38, %39 : vector<4x64xf32>
    %41 = vector.extract_strided_slice %0 {offsets = [3, 0, 0], sizes = [1, 4, 4], strides = [1, 1, 1]} : vector<9x4x4xf32> to vector<1x4x4xf32>
    %42 = vector.shape_cast %41 : vector<1x4x4xf32> to vector<4x4xf32>
    %cst_10 = arith.constant dense<0.000000e+00> : vector<4x64xf32>
    %43 = tpu.matmul %42, %40, %cst_10 {dimension_numbers = #tpu.dot_dimension_numbers<[1], [0], [0], [1], [0, 0, 1, 1], [], []>} : vector<4x4xf32>, vector<4x64xf32>, vector<4x64xf32> -> vector<4x64xf32>
    %44 = arith.addf %37, %43 : vector<4x64xf32>
    %45 = vector.extract_strided_slice %0 {offsets = [4, 0, 0], sizes = [1, 4, 4], strides = [1, 1, 1]} : vector<9x4x4xf32> to vector<1x4x4xf32>
    %46 = vector.shape_cast %45 : vector<1x4x4xf32> to vector<4x4xf32>
    %cst_11 = arith.constant dense<0.000000e+00> : vector<4x64xf32>
    %47 = tpu.matmul %46, %13, %cst_11 {dimension_numbers = #tpu.dot_dimension_numbers<[1], [0], [0], [1], [0, 0, 1, 1], [], []>} : vector<4x4xf32>, vector<4x64xf32>, vector<4x64xf32> -> vector<4x64xf32>
    %48 = arith.addf %44, %47 : vector<4x64xf32>
    %c63_i32_12 = arith.constant 63 : i32
    %49 = tpu.dynamic_rotate %13 by %c63_i32_12 dim 1 : vector<4x64xf32>, i32 -> vector<4x64xf32>
    %50 = vector.broadcast %11 : vector<1x64xf32> to vector<4x64xf32>
    %51 = arith.mulf %49, %50 : vector<4x64xf32>
    %52 = vector.extract_strided_slice %0 {offsets = [5, 0, 0], sizes = [1, 4, 4], strides = [1, 1, 1]} : vector<9x4x4xf32> to vector<1x4x4xf32>
    %53 = vector.shape_cast %52 : vector<1x4x4xf32> to vector<4x4xf32>
    %cst_13 = arith.constant dense<0.000000e+00> : vector<4x64xf32>
    %54 = tpu.matmul %53, %51, %cst_13 {dimension_numbers = #tpu.dot_dimension_numbers<[1], [0], [0], [1], [0, 0, 1, 1], [], []>} : vector<4x4xf32>, vector<4x64xf32>, vector<4x64xf32> -> vector<4x64xf32>
    %55 = arith.addf %48, %54 : vector<4x64xf32>
    %c57_i32 = arith.constant 57 : i32
    %56 = tpu.dynamic_rotate %13 by %c57_i32 dim 1 : vector<4x64xf32>, i32 -> vector<4x64xf32>
    %57 = vector.broadcast %10 : vector<1x64xf32> to vector<4x64xf32>
    %58 = arith.mulf %56, %57 : vector<4x64xf32>
    %59 = vector.broadcast %1 : vector<1x64xf32> to vector<4x64xf32>
    %60 = arith.mulf %58, %59 : vector<4x64xf32>
    %61 = vector.extract_strided_slice %0 {offsets = [6, 0, 0], sizes = [1, 4, 4], strides = [1, 1, 1]} : vector<9x4x4xf32> to vector<1x4x4xf32>
    %62 = vector.shape_cast %61 : vector<1x4x4xf32> to vector<4x4xf32>
    %cst_14 = arith.constant dense<0.000000e+00> : vector<4x64xf32>
    %63 = tpu.matmul %62, %60, %cst_14 {dimension_numbers = #tpu.dot_dimension_numbers<[1], [0], [0], [1], [0, 0, 1, 1], [], []>} : vector<4x4xf32>, vector<4x64xf32>, vector<4x64xf32> -> vector<4x64xf32>
    %64 = arith.addf %55, %63 : vector<4x64xf32>
    %c56_i32_15 = arith.constant 56 : i32
    %65 = tpu.dynamic_rotate %13 by %c56_i32_15 dim 1 : vector<4x64xf32>, i32 -> vector<4x64xf32>
    %66 = vector.broadcast %10 : vector<1x64xf32> to vector<4x64xf32>
    %67 = arith.mulf %65, %66 : vector<4x64xf32>
    %68 = vector.extract_strided_slice %0 {offsets = [7, 0, 0], sizes = [1, 4, 4], strides = [1, 1, 1]} : vector<9x4x4xf32> to vector<1x4x4xf32>
    %69 = vector.shape_cast %68 : vector<1x4x4xf32> to vector<4x4xf32>
    %cst_16 = arith.constant dense<0.000000e+00> : vector<4x64xf32>
    %70 = tpu.matmul %69, %67, %cst_16 {dimension_numbers = #tpu.dot_dimension_numbers<[1], [0], [0], [1], [0, 0, 1, 1], [], []>} : vector<4x4xf32>, vector<4x64xf32>, vector<4x64xf32> -> vector<4x64xf32>
    %71 = arith.addf %64, %70 : vector<4x64xf32>
    %c55_i32 = arith.constant 55 : i32
    %72 = tpu.dynamic_rotate %13 by %c55_i32 dim 1 : vector<4x64xf32>, i32 -> vector<4x64xf32>
    %73 = vector.broadcast %10 : vector<1x64xf32> to vector<4x64xf32>
    %74 = arith.mulf %72, %73 : vector<4x64xf32>
    %75 = vector.broadcast %11 : vector<1x64xf32> to vector<4x64xf32>
    %76 = arith.mulf %74, %75 : vector<4x64xf32>
    %77 = vector.extract_strided_slice %0 {offsets = [8, 0, 0], sizes = [1, 4, 4], strides = [1, 1, 1]} : vector<9x4x4xf32> to vector<1x4x4xf32>
    %78 = vector.shape_cast %77 : vector<1x4x4xf32> to vector<4x4xf32>
    %cst_17 = arith.constant dense<0.000000e+00> : vector<4x64xf32>
    %79 = tpu.matmul %78, %76, %cst_17 {dimension_numbers = #tpu.dot_dimension_numbers<[1], [0], [0], [1], [0, 0, 1, 1], [], []>} : vector<4x4xf32>, vector<4x64xf32>, vector<4x64xf32> -> vector<4x64xf32>
    %80 = arith.addf %71, %79 : vector<4x64xf32>
    %c0_18 = arith.constant 0 : index
    %c0_19 = arith.constant 0 : index
    %c0_20 = arith.constant 0 : index
    %81 = vector.load %arg4[%c0_18, %c0_19, %c0_20] : memref<2x4x64xf32, #tpu.memory_space<vmem>>, vector<1x4x64xf32>
    %82 = vector.shape_cast %81 : vector<1x4x64xf32> to vector<4x64xf32>
    %83 = vector.shape_cast %80 : vector<4x64xf32> to vector<1x4x64xf32>
    tpu.vector_store %arg4[%c0_18, %c0_19, %c0_20], %83 {strides = array<i32>} : memref<2x4x64xf32, #tpu.memory_space<vmem>>, vector<1x4x64xf32>,
    %c1 = arith.constant 1 : index
    %c0_21 = arith.constant 0 : index
    %c0_22 = arith.constant 0 : index
    %84 = vector.load %arg1[%c1, %c0_21, %c0_22] : memref<2x4x64xf32, #tpu.memory_space<vmem>>, vector<1x4x64xf32>
    %85 = vector.shape_cast %84 : vector<1x4x64xf32> to vector<4x64xf32>
    %c9_i32_23 = arith.constant 9 : i32
    %86 = tpu.dynamic_rotate %85 by %c9_i32_23 dim 1 : vector<4x64xf32>, i32 -> vector<4x64xf32>
    %87 = vector.broadcast %6 : vector<1x64xf32> to vector<4x64xf32>
    %88 = arith.mulf %86, %87 : vector<4x64xf32>
    %89 = vector.broadcast %1 : vector<1x64xf32> to vector<4x64xf32>
    %90 = arith.mulf %88, %89 : vector<4x64xf32>
    %91 = vector.extract_strided_slice %0 {offsets = [0, 0, 0], sizes = [1, 4, 4], strides = [1, 1, 1]} : vector<9x4x4xf32> to vector<1x4x4xf32>
    %92 = vector.shape_cast %91 : vector<1x4x4xf32> to vector<4x4xf32>
    %cst_24 = arith.constant dense<0.000000e+00> : vector<4x64xf32>
    %93 = tpu.matmul %92, %90, %cst_24 {dimension_numbers = #tpu.dot_dimension_numbers<[1], [0], [0], [1], [0, 0, 1, 1], [], []>} : vector<4x4xf32>, vector<4x64xf32>, vector<4x64xf32> -> vector<4x64xf32>
    %c8_i32_25 = arith.constant 8 : i32
    %94 = tpu.dynamic_rotate %85 by %c8_i32_25 dim 1 : vector<4x64xf32>, i32 -> vector<4x64xf32>
    %95 = vector.broadcast %6 : vector<1x64xf32> to vector<4x64xf32>
    %96 = arith.mulf %94, %95 : vector<4x64xf32>
    %97 = vector.extract_strided_slice %0 {offsets = [1, 0, 0], sizes = [1, 4, 4], strides = [1, 1, 1]} : vector<9x4x4xf32> to vector<1x4x4xf32>
    %98 = vector.shape_cast %97 : vector<1x4x4xf32> to vector<4x4xf32>
    %cst_26 = arith.constant dense<0.000000e+00> : vector<4x64xf32>
    %99 = tpu.matmul %98, %96, %cst_26 {dimension_numbers = #tpu.dot_dimension_numbers<[1], [0], [0], [1], [0, 0, 1, 1], [], []>} : vector<4x4xf32>, vector<4x64xf32>, vector<4x64xf32> -> vector<4x64xf32>
    %100 = arith.addf %93, %99 : vector<4x64xf32>
    %c7_i32_27 = arith.constant 7 : i32
    %101 = tpu.dynamic_rotate %85 by %c7_i32_27 dim 1 : vector<4x64xf32>, i32 -> vector<4x64xf32>
    %102 = vector.broadcast %6 : vector<1x64xf32> to vector<4x64xf32>
    %103 = arith.mulf %101, %102 : vector<4x64xf32>
    %104 = vector.broadcast %11 : vector<1x64xf32> to vector<4x64xf32>
    %105 = arith.mulf %103, %104 : vector<4x64xf32>
    %106 = vector.extract_strided_slice %0 {offsets = [2, 0, 0], sizes = [1, 4, 4], strides = [1, 1, 1]} : vector<9x4x4xf32> to vector<1x4x4xf32>
    %107 = vector.shape_cast %106 : vector<1x4x4xf32> to vector<4x4xf32>
    %cst_28 = arith.constant dense<0.000000e+00> : vector<4x64xf32>
    %108 = tpu.matmul %107, %105, %cst_28 {dimension_numbers = #tpu.dot_dimension_numbers<[1], [0], [0], [1], [0, 0, 1, 1], [], []>} : vector<4x4xf32>, vector<4x64xf32>, vector<4x64xf32> -> vector<4x64xf32>
    %109 = arith.addf %100, %108 : vector<4x64xf32>
    %c1_i32_29 = arith.constant 1 : i32
    %110 = tpu.dynamic_rotate %85 by %c1_i32_29 dim 1 : vector<4x64xf32>, i32 -> vector<4x64xf32>
    %111 = vector.broadcast %1 : vector<1x64xf32> to vector<4x64xf32>
    %112 = arith.mulf %110, %111 : vector<4x64xf32>
    %113 = vector.extract_strided_slice %0 {offsets = [3, 0, 0], sizes = [1, 4, 4], strides = [1, 1, 1]} : vector<9x4x4xf32> to vector<1x4x4xf32>
    %114 = vector.shape_cast %113 : vector<1x4x4xf32> to vector<4x4xf32>
    %cst_30 = arith.constant dense<0.000000e+00> : vector<4x64xf32>
    %115 = tpu.matmul %114, %112, %cst_30 {dimension_numbers = #tpu.dot_dimension_numbers<[1], [0], [0], [1], [0, 0, 1, 1], [], []>} : vector<4x4xf32>, vector<4x64xf32>, vector<4x64xf32> -> vector<4x64xf32>
    %116 = arith.addf %109, %115 : vector<4x64xf32>
    %117 = vector.extract_strided_slice %0 {offsets = [4, 0, 0], sizes = [1, 4, 4], strides = [1, 1, 1]} : vector<9x4x4xf32> to vector<1x4x4xf32>
    %118 = vector.shape_cast %117 : vector<1x4x4xf32> to vector<4x4xf32>
    %cst_31 = arith.constant dense<0.000000e+00> : vector<4x64xf32>
    %119 = tpu.matmul %118, %85, %cst_31 {dimension_numbers = #tpu.dot_dimension_numbers<[1], [0], [0], [1], [0, 0, 1, 1], [], []>} : vector<4x4xf32>, vector<4x64xf32>, vector<4x64xf32> -> vector<4x64xf32>
    %120 = arith.addf %116, %119 : vector<4x64xf32>
    %c63_i32_32 = arith.constant 63 : i32
    %121 = tpu.dynamic_rotate %85 by %c63_i32_32 dim 1 : vector<4x64xf32>, i32 -> vector<4x64xf32>
    %122 = vector.broadcast %11 : vector<1x64xf32> to vector<4x64xf32>
    %123 = arith.mulf %121, %122 : vector<4x64xf32>
    %124 = vector.extract_strided_slice %0 {offsets = [5, 0, 0], sizes = [1, 4, 4], strides = [1, 1, 1]} : vector<9x4x4xf32> to vector<1x4x4xf32>
    %125 = vector.shape_cast %124 : vector<1x4x4xf32> to vector<4x4xf32>
    %cst_33 = arith.constant dense<0.000000e+00> : vector<4x64xf32>
    %126 = tpu.matmul %125, %123, %cst_33 {dimension_numbers = #tpu.dot_dimension_numbers<[1], [0], [0], [1], [0, 0, 1, 1], [], []>} : vector<4x4xf32>, vector<4x64xf32>, vector<4x64xf32> -> vector<4x64xf32>
    %127 = arith.addf %120, %126 : vector<4x64xf32>
    %c57_i32_34 = arith.constant 57 : i32
    %128 = tpu.dynamic_rotate %85 by %c57_i32_34 dim 1 : vector<4x64xf32>, i32 -> vector<4x64xf32>
    %129 = vector.broadcast %10 : vector<1x64xf32> to vector<4x64xf32>
    %130 = arith.mulf %128, %129 : vector<4x64xf32>
    %131 = vector.broadcast %1 : vector<1x64xf32> to vector<4x64xf32>
    %132 = arith.mulf %130, %131 : vector<4x64xf32>
    %133 = vector.extract_strided_slice %0 {offsets = [6, 0, 0], sizes = [1, 4, 4], strides = [1, 1, 1]} : vector<9x4x4xf32> to vector<1x4x4xf32>
    %134 = vector.shape_cast %133 : vector<1x4x4xf32> to vector<4x4xf32>
    %cst_35 = arith.constant dense<0.000000e+00> : vector<4x64xf32>
    %135 = tpu.matmul %134, %132, %cst_35 {dimension_numbers = #tpu.dot_dimension_numbers<[1], [0], [0], [1], [0, 0, 1, 1], [], []>} : vector<4x4xf32>, vector<4x64xf32>, vector<4x64xf32> -> vector<4x64xf32>
    %136 = arith.addf %127, %135 : vector<4x64xf32>
    %c56_i32_36 = arith.constant 56 : i32
    %137 = tpu.dynamic_rotate %85 by %c56_i32_36 dim 1 : vector<4x64xf32>, i32 -> vector<4x64xf32>
    %138 = vector.broadcast %10 : vector<1x64xf32> to vector<4x64xf32>
    %139 = arith.mulf %137, %138 : vector<4x64xf32>
    %140 = vector.extract_strided_slice %0 {offsets = [7, 0, 0], sizes = [1, 4, 4], strides = [1, 1, 1]} : vector<9x4x4xf32> to vector<1x4x4xf32>
    %141 = vector.shape_cast %140 : vector<1x4x4xf32> to vector<4x4xf32>
    %cst_37 = arith.constant dense<0.000000e+00> : vector<4x64xf32>
    %142 = tpu.matmul %141, %139, %cst_37 {dimension_numbers = #tpu.dot_dimension_numbers<[1], [0], [0], [1], [0, 0, 1, 1], [], []>} : vector<4x4xf32>, vector<4x64xf32>, vector<4x64xf32> -> vector<4x64xf32>
    %143 = arith.addf %136, %142 : vector<4x64xf32>
    %c55_i32_38 = arith.constant 55 : i32
    %144 = tpu.dynamic_rotate %85 by %c55_i32_38 dim 1 : vector<4x64xf32>, i32 -> vector<4x64xf32>
    %145 = vector.broadcast %10 : vector<1x64xf32> to vector<4x64xf32>
    %146 = arith.mulf %144, %145 : vector<4x64xf32>
    %147 = vector.broadcast %11 : vector<1x64xf32> to vector<4x64xf32>
    %148 = arith.mulf %146, %147 : vector<4x64xf32>
    %149 = vector.extract_strided_slice %0 {offsets = [8, 0, 0], sizes = [1, 4, 4], strides = [1, 1, 1]} : vector<9x4x4xf32> to vector<1x4x4xf32>
    %150 = vector.shape_cast %149 : vector<1x4x4xf32> to vector<4x4xf32>
    %cst_39 = arith.constant dense<0.000000e+00> : vector<4x64xf32>
    %151 = tpu.matmul %150, %148, %cst_39 {dimension_numbers = #tpu.dot_dimension_numbers<[1], [0], [0], [1], [0, 0, 1, 1], [], []>} : vector<4x4xf32>, vector<4x64xf32>, vector<4x64xf32> -> vector<4x64xf32>
    %152 = arith.addf %143, %151 : vector<4x64xf32>
    %c1_40 = arith.constant 1 : index
    %c0_41 = arith.constant 0 : index
    %c0_42 = arith.constant 0 : index
    %153 = vector.load %arg4[%c1_40, %c0_41, %c0_42] : memref<2x4x64xf32, #tpu.memory_space<vmem>>, vector<1x4x64xf32>
    %154 = vector.shape_cast %153 : vector<1x4x64xf32> to vector<4x64xf32>
    %155 = vector.shape_cast %152 : vector<4x64xf32> to vector<1x4x64xf32>
    tpu.vector_store %arg4[%c1_40, %c0_41, %c0_42], %155 {strides = array<i32>} : memref<2x4x64xf32, #tpu.memory_space<vmem>>, vector<1x4x64xf32>,
    return
  }
  func.func @transform_0(%arg0: i32) -> (i32, i32, i32) {
    %c0_i32 = arith.constant 0 : i32
    %c0_i32_0 = arith.constant 0 : i32
    %c0_i32_1 = arith.constant 0 : i32
    return %arg0, %c0_i32, %c0_i32_0 : i32, i32, i32
  }
  func.func @transform_1(%arg0: i32) -> (i32, i32, i32) {
    %c0_i32 = arith.constant 0 : i32
    %c0_i32_0 = arith.constant 0 : i32
    %c0_i32_1 = arith.constant 0 : i32
    %c0_i32_2 = arith.constant 0 : i32
    return %c0_i32, %c0_i32_0, %c0_i32_1 : i32, i32, i32
  }
  func.func @transform_2(%arg0: i32) -> (i32, i32) {
    %c0_i32 = arith.constant 0 : i32
    %c0_i32_0 = arith.constant 0 : i32
    %c0_i32_1 = arith.constant 0 : i32
    return %c0_i32, %c0_i32_0 : i32, i32
  }
  func.func @transform_3(%arg0: i32) -> (i32, i32, i32) {
    %c0_i32 = arith.constant 0 : i32
    %c0_i32_0 = arith.constant 0 : i32
    %c0_i32_1 = arith.constant 0 : i32
    return %arg0, %c0_i32, %c0_i32_0 : i32, i32, i32
  }
}

</mosaic_0001>

<llo_original>
// kernel: first_octave_conv.3
$region0: #{first_octave_conv.3}
  #allocation0 [shape = 'u32[]', space=smem, size = 0x4, offset = 0x4, fixed_abs, tag = 'smem constant byte address 0x4 - core index']
  #allocation1 [shape = 'u32[144,128]{1,0:T(1,128)}', space=vmem, size = 0x12000, scoped, tag = 'internal scratch']
  %s0 = inlined_call_operand.vmem [shape: f32[2,4,64], index: 0, kind: input, shape index: {}]
  %s1 = inlined_call_operand.vmem [shape: f32[9,4,4], index: 1, kind: input, shape index: {}]
  %s2 = inlined_call_operand.vmem [shape: f32[1,64], index: 2, kind: input, shape index: {}]
  %s3 = inlined_call_operand.vmem [shape: f32[2,4,64], index: 3, kind: output, shape index: {}]
  %s4 = sld [smem:[#allocation0]]
  $region22: #{first_octave_conv.3} parent=0
    _
  %s6 = ssub.s32 1, %s4
  %s7 = scalar_select 0, %s6, %s4
  // Predicated region
  $region2: #{first_octave_conv.3} parent=0 // pred_check
    _
  $region3: #{first_octave_conv.3} parent=0 // pred_check_branch
    %9 = sbr.rel (0) target = $region5
  $region4: #{first_octave_conv.3} parent=0 // pred_region
    _
  $region5: #{first_octave_conv.3} parent=0 // pred_fallthru
    _
  // Predicated region
  $region6: #{first_octave_conv.3} parent=0 // pred_check
    _
  $region7: #{first_octave_conv.3} parent=0 // pred_check_branch
    %11 = sbr.rel (0) target = $region9
  $region8: #{first_octave_conv.3} parent=0 // pred_region
    _
  $region9: #{first_octave_conv.3} parent=0 // pred_fallthru
    _
  // Predicated region
  $region10: #{first_octave_conv.3} parent=0 // pred_check
    _
  $region11: #{first_octave_conv.3} parent=0 // pred_check_branch
    %13 = sbr.rel (0) target = $region13
  $region12: #{first_octave_conv.3} parent=0 // pred_region
    _
  $region13: #{first_octave_conv.3} parent=0 // pred_fallthru
    _
  %v14 = vld [vmem:[%s1] sm:$0xf]
  %v15 = vld [vmem:[%s1 + $0x4] sm:$0xf]
  %v16 = vld [vmem:[%s1 + $0x8] sm:$0xf]
  %v17 = vld [vmem:[%s1 + $0xc] sm:$0xf]
  %v18 = vld [vmem:[%s1 + $0x10] sm:$0xf]
  %v19 = vld [vmem:[%s1 + $0x14] sm:$0xf]
  %v20 = vld [vmem:[%s1 + $0x18] sm:$0xf]
  %v21 = vld [vmem:[%s1 + $0x1c] sm:$0xf]
  %v22 = vld [vmem:[%s1 + $0x20] sm:$0xf]
  %v23 = vld [vmem:[%s2] sm:$0x1]
  %v24 = vlaneseq
  %v25 = vand.u32 %v24, 127
  %vm26 = vcmp.ge.s32.totalorder %v25, 8
  %v27 = vsel %vm26, 1, 0
  %v28 = vcvt.s32.f32 %v27
  %vm29 = vcmp.lt.s32.totalorder %v25, 56
  %v30 = vsel %vm29, 1, 0
  %v31 = vcvt.s32.f32 %v30
  %vm32 = vcmask 1048064
  %33 = vrot.lane.b32.xlu0 %v23, 64
  %v34 = vpop.permute.xlu0 %33
  %v35 = vsel %vm32, %v34, %v23
  %36 = vrot.lane.b32.xlu0 %v35, 64
  %v37 = vpop.permute.xlu0 %36
  %v38 = vsel %vm32, %v37, %v23
  %v39 = vld [vmem:[%s0] sm:$0xf]
  %40 = vrot.lane.b32.xlu0 %v39, 64
  %v41 = vpop.permute.xlu0 %40
  %v42 = vsel %vm32, %v41, %v39
  %43 = vrot.lane.b32.xlu0 %v42, 64
  %v44 = vpop.permute.xlu0 %43
  %v45 = vsel %vm32, %v44, %v39
  %47 = vrot.lane.b32.xlu0 %v28, 55
  %v48 = vpop.permute.xlu0 %47
  %v50 = vmul.f32 %v45, %v48
  %v52 = vlaneseq
  %v53 = vshrl.u32 %v52, 7
  %v54 = vsub.s32 0, %v53
  %v55 = vrot.slane %v23, %v54
  %56 = vrot.lane.b32.xlu0 %v55, 55
  %v57 = vpop.permute.xlu0 %56
  %v59 = vmul.f32 %v50, %v57
  %60 = vrot.lane.b32.xlu0 %v28, 56
  %v61 = vpop.permute.xlu0 %60
  %v63 = vmul.f32 %v45, %v61
  %65 = vrot.lane.b32.xlu0 %v63, 72
  %v66 = vpop.permute.xlu0 %65
  %vm67 = vcmask 31744
  %v69 = vsel %vm67, %v15, 0
  %vm71 = vcmask 1043456
  %v72 = vsel %vm71, %v66, 0
  %74 = vmatprep.subr.mxu0 0.0
  %75 = vmatpush1.msra.mxu0 %v72
  %76 = vmatprep.subr.mxu0 0.0
  %77 = vmatpush1.msra.mxu0 0.0
  %78 = vmatprep.subr.mxu0 0.0
  %79 = vmatpush1.msra.mxu0 0.0
  %80 = vmatprep.subr.mxu0 0.0
  %81 = vmatpush1.msra.mxu0 0.0
  %82 = vmatprep.subr.mxu0 0.0
  %83 = vmatpush1.msra.mxu0 0.0
  %84 = vmatprep.subr.mxu0 0.0
  %85 = vmatpush1.msra.mxu0 0.0
  %86 = vmatprep.subr.mxu0 0.0
  %87 = vmatpush1.msra.mxu0 0.0
  %88 = vmatprep.subr.mxu0 0.0
  %89 = vmatpush1.msra.mxu0 0.0
  %90 = vmatprep.subr.mxu0 0.0
  %91 = vmatpush1.msra.mxu0 0.0
  %92 = vmatprep.subr.mxu0 0.0
  %93 = vmatpush1.msra.mxu0 0.0
  %94 = vmatprep.subr.mxu0 0.0
  %95 = vmatpush1.msra.mxu0 0.0
  %96 = vmatprep.subr.mxu0 0.0
  %97 = vmatpush1.msra.mxu0 0.0
  %98 = vmatprep.subr.mxu0 0.0
  %99 = vmatpush1.msra.mxu0 0.0
  %100 = vmatprep.subr.mxu0 0.0
  %101 = vmatpush1.msra.mxu0 0.0
  %102 = vmatprep.subr.mxu0 0.0
  %103 = vmatpush1.msra.mxu0 0.0
  %104 = vmatprep.subr.mxu0 0.0
  %105 = vmatpush1.msra.mxu0 0.0
  %106 = vmatprep.subr.mxu0 0.0
  %107 = vmatpush1.msra.mxu0 0.0
  %108 = vmatprep.subr.mxu0 0.0
  %109 = vmatpush1.msra.mxu0 0.0
  %110 = vmatprep.subr.mxu0 0.0
  %111 = vmatpush1.msra.mxu0 0.0
  %112 = vmatprep.subr.mxu0 0.0
  %113 = vmatpush1.msra.mxu0 0.0
  %114 = vmatprep.subr.mxu0 0.0
  %115 = vmatpush1.msra.mxu0 0.0
  %116 = vmatprep.subr.mxu0 0.0
  %117 = vmatpush1.msra.mxu0 0.0
  %118 = vmatprep.subr.mxu0 0.0
  %119 = vmatpush1.msra.mxu0 0.0
  %120 = vmatprep.subr.mxu0 0.0
  %121 = vmatpush1.msra.mxu0 0.0
  %122 = vmatprep.subr.mxu0 0.0
  %123 = vmatpush1.msra.mxu0 0.0
  %124 = vmatprep.subr.mxu0 0.0
  %125 = vmatpush1.msra.mxu0 0.0
  %126 = vmatprep.subr.mxu0 0.0
  %127 = vmatpush1.msra.mxu0 0.0
  %128 = vmatprep.subr.mxu0 0.0
  %129 = vmatpush1.msra.mxu0 0.0
  %130 = vmatprep.subr.mxu0 0.0
  %131 = vmatpush1.msra.mxu0 0.0
  %132 = vmatprep.subr.mxu0 0.0
  %133 = vmatpush1.msra.mxu0 0.0
  %134 = vmatprep.subr.mxu0 0.0
  %135 = vmatpush1.msra.mxu0 0.0
  %136 = vmatprep.subr.mxu0 0.0
  %137 = vmatpush1.msra.mxu0 0.0
  %138 = vmatprep.mubr.f32.mxu0 0.0
  %139 = vmatmul.mubr.f32.gmra.mrb[0].mxu0 %v69
  %v140 = vpop.f32.mrb[0].mxu0
  %v141 = vadd.f32 0.0, %v140
  %v142 = vpop.f32.mrb[0].mxu0
  %143 = vdwg.mxu0
  %145 = vrot.lane.b32.xlu0 %v59, 73
  %v146 = vpop.permute.xlu0 %145
  %v148 = vsel %vm67, %v14, 0
  %v150 = vsel %vm71, %v146, 0
  %152 = vmatprep.subr.mxu0 0.0
  %153 = vmatpush1.msra.mxu0 %v150
  %154 = vmatprep.subr.mxu0 0.0
  %155 = vmatpush1.msra.mxu0 0.0
  %156 = vmatprep.subr.mxu0 0.0
  %157 = vmatpush1.msra.mxu0 0.0
  %158 = vmatprep.subr.mxu0 0.0
  %159 = vmatpush1.msra.mxu0 0.0
  %160 = vmatprep.subr.mxu0 0.0
  %161 = vmatpush1.msra.mxu0 0.0
  %162 = vmatprep.subr.mxu0 0.0
  %163 = vmatpush1.msra.mxu0 0.0
  %164 = vmatprep.subr.mxu0 0.0
  %165 = vmatpush1.msra.mxu0 0.0
  %166 = vmatprep.subr.mxu0 0.0
  %167 = vmatpush1.msra.mxu0 0.0
  %168 = vmatprep.subr.mxu0 0.0
  %169 = vmatpush1.msra.mxu0 0.0
  %170 = vmatprep.subr.mxu0 0.0
  %171 = vmatpush1.msra.mxu0 0.0
  %172 = vmatprep.subr.mxu0 0.0
  %173 = vmatpush1.msra.mxu0 0.0
  %174 = vmatprep.subr.mxu0 0.0
  %175 = vmatpush1.msra.mxu0 0.0
  %176 = vmatprep.subr.mxu0 0.0
  %177 = vmatpush1.msra.mxu0 0.0
  %178 = vmatprep.subr.mxu0 0.0
  %179 = vmatpush1.msra.mxu0 0.0
  %180 = vmatprep.subr.mxu0 0.0
  %181 = vmatpush1.msra.mxu0 0.0
  %182 = vmatprep.subr.mxu0 0.0
  %183 = vmatpush1.msra.mxu0 0.0
  %184 = vmatprep.subr.mxu0 0.0
  %185 = vmatpush1.msra.mxu0 0.0
  %186 = vmatprep.subr.mxu0 0.0
  %187 = vmatpush1.msra.mxu0 0.0
  %188 = vmatprep.subr.mxu0 0.0
  %189 = vmatpush1.msra.mxu0 0.0
  %190 = vmatprep.subr.mxu0 0.0
  %191 = vmatpush1.msra.mxu0 0.0
  %192 = vmatprep.subr.mxu0 0.0
  %193 = vmatpush1.msra.mxu0 0.0
  %194 = vmatprep.subr.mxu0 0.0
  %195 = vmatpush1.msra.mxu0 0.0
  %196 = vmatprep.subr.mxu0 0.0
  %197 = vmatpush1.msra.mxu0 0.0
  %198 = vmatprep.subr.mxu0 0.0
  %199 = vmatpush1.msra.mxu0 0.0
  %200 = vmatprep.subr.mxu0 0.0
  %201 = vmatpush1.msra.mxu0 0.0
  %202 = vmatprep.subr.mxu0 0.0
  %203 = vmatpush1.msra.mxu0 0.0
  %204 = vmatprep.subr.mxu0 0.0
  %205 = vmatpush1.msra.mxu0 0.0
  %206 = vmatprep.subr.mxu0 0.0
  %207 = vmatpush1.msra.mxu0 0.0
  %208 = vmatprep.subr.mxu0 0.0
  %209 = vmatpush1.msra.mxu0 0.0
  %210 = vmatprep.subr.mxu0 0.0
  %211 = vmatpush1.msra.mxu0 0.0
  %212 = vmatprep.subr.mxu0 0.0
  %213 = vmatpush1.msra.mxu0 0.0
  %214 = vmatprep.subr.mxu0 0.0
  %215 = vmatpush1.msra.mxu0 0.0
  %216 = vmatprep.mubr.f32.mxu0 0.0
  %217 = vmatmul.mubr.f32.gmra.mrb[0].mxu0 %v148
  %v218 = vpop.f32.mrb[0].mxu0
  %v219 = vadd.f32 %v141, %v218
  %v220 = vpop.f32.mrb[0].mxu0
  %221 = vdwg.mxu0
  %222 = vrot.lane.b32.xlu0 %v28, 57
  %v223 = vpop.permute.xlu0 %222
  %v225 = vmul.f32 %v45, %v223
  %v226 = vlaneseq
  %v227 = vshrl.u32 %v226, 7
  %v228 = vsub.s32 0, %v227
  %v229 = vrot.slane %v38, %v228
  %231 = vrot.lane.b32.xlu0 %v229, 56
  %v232 = vpop.permute.xlu0 %231
  %v234 = vmul.f32 %v225, %v232
  %236 = vrot.lane.b32.xlu0 %v234, 71
  %v237 = vpop.permute.xlu0 %236
  %v239 = vsel %vm67, %v16, 0
  %v241 = vsel %vm71, %v237, 0
  %243 = vmatprep.subr.mxu0 0.0
  %244 = vmatpush1.msra.mxu0 %v241
  %245 = vmatprep.subr.mxu0 0.0
  %246 = vmatpush1.msra.mxu0 0.0
  %247 = vmatprep.subr.mxu0 0.0
  %248 = vmatpush1.msra.mxu0 0.0
  %249 = vmatprep.subr.mxu0 0.0
  %250 = vmatpush1.msra.mxu0 0.0
  %251 = vmatprep.subr.mxu0 0.0
  %252 = vmatpush1.msra.mxu0 0.0
  %253 = vmatprep.subr.mxu0 0.0
  %254 = vmatpush1.msra.mxu0 0.0
  %255 = vmatprep.subr.mxu0 0.0
  %256 = vmatpush1.msra.mxu0 0.0
  %257 = vmatprep.subr.mxu0 0.0
  %258 = vmatpush1.msra.mxu0 0.0
  %259 = vmatprep.subr.mxu0 0.0
  %260 = vmatpush1.msra.mxu0 0.0
  %261 = vmatprep.subr.mxu0 0.0
  %262 = vmatpush1.msra.mxu0 0.0
  %263 = vmatprep.subr.mxu0 0.0
  %264 = vmatpush1.msra.mxu0 0.0
  %265 = vmatprep.subr.mxu0 0.0
  %266 = vmatpush1.msra.mxu0 0.0
  %267 = vmatprep.subr.mxu0 0.0
  %268 = vmatpush1.msra.mxu0 0.0
  %269 = vmatprep.subr.mxu0 0.0
  %270 = vmatpush1.msra.mxu0 0.0
  %271 = vmatprep.subr.mxu0 0.0
  %272 = vmatpush1.msra.mxu0 0.0
  %273 = vmatprep.subr.mxu0 0.0
  %274 = vmatpush1.msra.mxu0 0.0
  %275 = vmatprep.subr.mxu0 0.0
  %276 = vmatpush1.msra.mxu0 0.0
  %277 = vmatprep.subr.mxu0 0.0
  %278 = vmatpush1.msra.mxu0 0.0
  %279 = vmatprep.subr.mxu0 0.0
  %280 = vmatpush1.msra.mxu0 0.0
  %281 = vmatprep.subr.mxu0 0.0
  %282 = vmatpush1.msra.mxu0 0.0
  %283 = vmatprep.subr.mxu0 0.0
  %284 = vmatpush1.msra.mxu0 0.0
  %285 = vmatprep.subr.mxu0 0.0
  %286 = vmatpush1.msra.mxu0 0.0
  %287 = vmatprep.subr.mxu0 0.0
  %288 = vmatpush1.msra.mxu0 0.0
  %289 = vmatprep.subr.mxu0 0.0
  %290 = vmatpush1.msra.mxu0 0.0
  %291 = vmatprep.subr.mxu0 0.0
  %292 = vmatpush1.msra.mxu0 0.0
  %293 = vmatprep.subr.mxu0 0.0
  %294 = vmatpush1.msra.mxu0 0.0
  %295 = vmatprep.subr.mxu0 0.0
  %296 = vmatpush1.msra.mxu0 0.0
  %297 = vmatprep.subr.mxu0 0.0
  %298 = vmatpush1.msra.mxu0 0.0
  %299 = vmatprep.subr.mxu0 0.0
  %300 = vmatpush1.msra.mxu0 0.0
  %301 = vmatprep.subr.mxu0 0.0
  %302 = vmatpush1.msra.mxu0 0.0
  %303 = vmatprep.subr.mxu0 0.0
  %304 = vmatpush1.msra.mxu0 0.0
  %305 = vmatprep.subr.mxu0 0.0
  %306 = vmatpush1.msra.mxu0 0.0
  %307 = vmatprep.mubr.f32.mxu0 0.0
  %308 = vmatmul.mubr.f32.gmra.mrb[0].mxu0 %v239
  %v309 = vpop.f32.mrb[0].mxu0
  %v310 = vadd.f32 0.0, %v309
  %v311 = vpop.f32.mrb[0].mxu0
  %312 = vdwg.mxu0
  %v313 = vadd.f32 %v219, %v310
  %314 = vrot.lane.b32.xlu0 %v55, 63
  %v315 = vpop.permute.xlu0 %314
  %v317 = vmul.f32 %v45, %v315
  %319 = vrot.lane.b32.xlu0 %v317, 65
  %v320 = vpop.permute.xlu0 %319
  %v322 = vsel %vm67, %v17, 0
  %v324 = vsel %vm71, %v320, 0
  %326 = vmatprep.subr.mxu0 0.0
  %327 = vmatpush1.msra.mxu0 %v324
  %328 = vmatprep.subr.mxu0 0.0
  %329 = vmatpush1.msra.mxu0 0.0
  %330 = vmatprep.subr.mxu0 0.0
  %331 = vmatpush1.msra.mxu0 0.0
  %332 = vmatprep.subr.mxu0 0.0
  %333 = vmatpush1.msra.mxu0 0.0
  %334 = vmatprep.subr.mxu0 0.0
  %335 = vmatpush1.msra.mxu0 0.0
  %336 = vmatprep.subr.mxu0 0.0
  %337 = vmatpush1.msra.mxu0 0.0
  %338 = vmatprep.subr.mxu0 0.0
  %339 = vmatpush1.msra.mxu0 0.0
  %340 = vmatprep.subr.mxu0 0.0
  %341 = vmatpush1.msra.mxu0 0.0
  %342 = vmatprep.subr.mxu0 0.0
  %343 = vmatpush1.msra.mxu0 0.0
  %344 = vmatprep.subr.mxu0 0.0
  %345 = vmatpush1.msra.mxu0 0.0
  %346 = vmatprep.subr.mxu0 0.0
  %347 = vmatpush1.msra.mxu0 0.0
  %348 = vmatprep.subr.mxu0 0.0
  %349 = vmatpush1.msra.mxu0 0.0
  %350 = vmatprep.subr.mxu0 0.0
  %351 = vmatpush1.msra.mxu0 0.0
  %352 = vmatprep.subr.mxu0 0.0
  %353 = vmatpush1.msra.mxu0 0.0
  %354 = vmatprep.subr.mxu0 0.0
  %355 = vmatpush1.msra.mxu0 0.0
  %356 = vmatprep.subr.mxu0 0.0
  %357 = vmatpush1.msra.mxu0 0.0
  %358 = vmatprep.subr.mxu0 0.0
  %359 = vmatpush1.msra.mxu0 0.0
  %360 = vmatprep.subr.mxu0 0.0
  %361 = vmatpush1.msra.mxu0 0.0
  %362 = vmatprep.subr.mxu0 0.0
  %363 = vmatpush1.msra.mxu0 0.0
  %364 = vmatprep.subr.mxu0 0.0
  %365 = vmatpush1.msra.mxu0 0.0
  %366 = vmatprep.subr.mxu0 0.0
  %367 = vmatpush1.msra.mxu0 0.0
  %368 = vmatprep.subr.mxu0 0.0
  %369 = vmatpush1.msra.mxu0 0.0
  %370 = vmatprep.subr.mxu0 0.0
  %371 = vmatpush1.msra.mxu0 0.0
  %372 = vmatprep.subr.mxu0 0.0
  %373 = vmatpush1.msra.mxu0 0.0
  %374 = vmatprep.subr.mxu0 0.0
  %375 = vmatpush1.msra.mxu0 0.0
  %376 = vmatprep.subr.mxu0 0.0
  %377 = vmatpush1.msra.mxu0 0.0
  %378 = vmatprep.subr.mxu0 0.0
  %379 = vmatpush1.msra.mxu0 0.0
  %380 = vmatprep.subr.mxu0 0.0
  %381 = vmatpush1.msra.mxu0 0.0
  %382 = vmatprep.subr.mxu0 0.0
  %383 = vmatpush1.msra.mxu0 0.0
  %384 = vmatprep.subr.mxu0 0.0
  %385 = vmatpush1.msra.mxu0 0.0
  %386 = vmatprep.subr.mxu0 0.0
  %387 = vmatpush1.msra.mxu0 0.0
  %388 = vmatprep.subr.mxu0 0.0
  %389 = vmatpush1.msra.mxu0 0.0
  %390 = vmatprep.mubr.f32.mxu0 0.0
  %391 = vmatmul.mubr.f32.gmra.mrb[0].mxu0 %v322
  %v392 = vpop.f32.mrb[0].mxu0
  %v393 = vadd.f32 0.0, %v392
  %v394 = vpop.f32.mrb[0].mxu0
  %395 = vdwg.mxu0
  %v396 = vadd.f32 %v313, %v393
  %v398 = vsel %vm67, %v18, 0
  %v401 = vsel %vm71, %v39, 0
  %403 = vmatprep.subr.mxu0 0.0
  %404 = vmatpush1.msra.mxu0 %v401
  %405 = vmatprep.subr.mxu0 0.0
  %406 = vmatpush1.msra.mxu0 0.0
  %407 = vmatprep.subr.mxu0 0.0
  %408 = vmatpush1.msra.mxu0 0.0
  %409 = vmatprep.subr.mxu0 0.0
  %410 = vmatpush1.msra.mxu0 0.0
  %411 = vmatprep.subr.mxu0 0.0
  %412 = vmatpush1.msra.mxu0 0.0
  %413 = vmatprep.subr.mxu0 0.0
  %414 = vmatpush1.msra.mxu0 0.0
  %415 = vmatprep.subr.mxu0 0.0
  %416 = vmatpush1.msra.mxu0 0.0
  %417 = vmatprep.subr.mxu0 0.0
  %418 = vmatpush1.msra.mxu0 0.0
  %419 = vmatprep.subr.mxu0 0.0
  %420 = vmatpush1.msra.mxu0 0.0
  %421 = vmatprep.subr.mxu0 0.0
  %422 = vmatpush1.msra.mxu0 0.0
  %423 = vmatprep.subr.mxu0 0.0
  %424 = vmatpush1.msra.mxu0 0.0
  %425 = vmatprep.subr.mxu0 0.0
  %426 = vmatpush1.msra.mxu0 0.0
  %427 = vmatprep.subr.mxu0 0.0
  %428 = vmatpush1.msra.mxu0 0.0
  %429 = vmatprep.subr.mxu0 0.0
  %430 = vmatpush1.msra.mxu0 0.0
  %431 = vmatprep.subr.mxu0 0.0
  %432 = vmatpush1.msra.mxu0 0.0
  %433 = vmatprep.subr.mxu0 0.0
  %434 = vmatpush1.msra.mxu0 0.0
  %435 = vmatprep.subr.mxu0 0.0
  %436 = vmatpush1.msra.mxu0 0.0
  %437 = vmatprep.subr.mxu0 0.0
  %438 = vmatpush1.msra.mxu0 0.0
  %439 = vmatprep.subr.mxu0 0.0
  %440 = vmatpush1.msra.mxu0 0.0
  %441 = vmatprep.subr.mxu0 0.0
  %442 = vmatpush1.msra.mxu0 0.0
  %443 = vmatprep.subr.mxu0 0.0
  %444 = vmatpush1.msra.mxu0 0.0
  %445 = vmatprep.subr.mxu0 0.0
  %446 = vmatpush1.msra.mxu0 0.0
  %447 = vmatprep.subr.mxu0 0.0
  %448 = vmatpush1.msra.mxu0 0.0
  %449 = vmatprep.subr.mxu0 0.0
  %450 = vmatpush1.msra.mxu0 0.0
  %451 = vmatprep.subr.mxu0 0.0
  %452 = vmatpush1.msra.mxu0 0.0
  %453 = vmatprep.subr.mxu0 0.0
  %454 = vmatpush1.msra.mxu0 0.0
  %455 = vmatprep.subr.mxu0 0.0
  %456 = vmatpush1.msra.mxu0 0.0
  %457 = vmatprep.subr.mxu0 0.0
  %458 = vmatpush1.msra.mxu0 0.0
  %459 = vmatprep.subr.mxu0 0.0
  %460 = vmatpush1.msra.mxu0 0.0
  %461 = vmatprep.subr.mxu0 0.0
  %462 = vmatpush1.msra.mxu0 0.0
  %463 = vmatprep.subr.mxu0 0.0
  %464 = vmatpush1.msra.mxu0 0.0
  %465 = vmatprep.subr.mxu0 0.0
  %466 = vmatpush1.msra.mxu0 0.0
  %467 = vmatprep.mubr.f32.mxu0 0.0
  %468 = vmatmul.mubr.f32.gmra.mrb[0].mxu0 %v398
  %v469 = vpop.f32.mrb[0].mxu0
  %v470 = vadd.f32 0.0, %v469
  %v471 = vpop.f32.mrb[0].mxu0
  %472 = vdwg.mxu0
  %v473 = vadd.f32 %v396, %v470
  %v474 = vmul.f32 %v45, %v229
  %476 = vrot.lane.b32.xlu0 %v474, 127
  %v477 = vpop.permute.xlu0 %476
  %v479 = vsel %vm67, %v19, 0
  %v481 = vsel %vm71, %v477, 0
  %483 = vmatprep.subr.mxu0 0.0
  %484 = vmatpush1.msra.mxu0 %v481
  %485 = vmatprep.subr.mxu0 0.0
  %486 = vmatpush1.msra.mxu0 0.0
  %487 = vmatprep.subr.mxu0 0.0
  %488 = vmatpush1.msra.mxu0 0.0
  %489 = vmatprep.subr.mxu0 0.0
  %490 = vmatpush1.msra.mxu0 0.0
  %491 = vmatprep.subr.mxu0 0.0
  %492 = vmatpush1.msra.mxu0 0.0
  %493 = vmatprep.subr.mxu0 0.0
  %494 = vmatpush1.msra.mxu0 0.0
  %495 = vmatprep.subr.mxu0 0.0
  %496 = vmatpush1.msra.mxu0 0.0
  %497 = vmatprep.subr.mxu0 0.0
  %498 = vmatpush1.msra.mxu0 0.0
  %499 = vmatprep.subr.mxu0 0.0
  %500 = vmatpush1.msra.mxu0 0.0
  %501 = vmatprep.subr.mxu0 0.0
  %502 = vmatpush1.msra.mxu0 0.0
  %503 = vmatprep.subr.mxu0 0.0
  %504 = vmatpush1.msra.mxu0 0.0
  %505 = vmatprep.subr.mxu0 0.0
  %506 = vmatpush1.msra.mxu0 0.0
  %507 = vmatprep.subr.mxu0 0.0
  %508 = vmatpush1.msra.mxu0 0.0
  %509 = vmatprep.subr.mxu0 0.0
  %510 = vmatpush1.msra.mxu0 0.0
  %511 = vmatprep.subr.mxu0 0.0
  %512 = vmatpush1.msra.mxu0 0.0
  %513 = vmatprep.subr.mxu0 0.0
  %514 = vmatpush1.msra.mxu0 0.0
  %515 = vmatprep.subr.mxu0 0.0
  %516 = vmatpush1.msra.mxu0 0.0
  %517 = vmatprep.subr.mxu0 0.0
  %518 = vmatpush1.msra.mxu0 0.0
  %519 = vmatprep.subr.mxu0 0.0
  %520 = vmatpush1.msra.mxu0 0.0
  %521 = vmatprep.subr.mxu0 0.0
  %522 = vmatpush1.msra.mxu0 0.0
  %523 = vmatprep.subr.mxu0 0.0
  %524 = vmatpush1.msra.mxu0 0.0
  %525 = vmatprep.subr.mxu0 0.0
  %526 = vmatpush1.msra.mxu0 0.0
  %527 = vmatprep.subr.mxu0 0.0
  %528 = vmatpush1.msra.mxu0 0.0
  %529 = vmatprep.subr.mxu0 0.0
  %530 = vmatpush1.msra.mxu0 0.0
  %531 = vmatprep.subr.mxu0 0.0
  %532 = vmatpush1.msra.mxu0 0.0
  %533 = vmatprep.subr.mxu0 0.0
  %534 = vmatpush1.msra.mxu0 0.0
  %535 = vmatprep.subr.mxu0 0.0
  %536 = vmatpush1.msra.mxu0 0.0
  %537 = vmatprep.subr.mxu0 0.0
  %538 = vmatpush1.msra.mxu0 0.0
  %539 = vmatprep.subr.mxu0 0.0
  %540 = vmatpush1.msra.mxu0 0.0
  %541 = vmatprep.subr.mxu0 0.0
  %542 = vmatpush1.msra.mxu0 0.0
  %543 = vmatprep.subr.mxu0 0.0
  %544 = vmatpush1.msra.mxu0 0.0
  %545 = vmatprep.subr.mxu0 0.0
  %546 = vmatpush1.msra.mxu0 0.0
  %547 = vmatprep.mubr.f32.mxu0 0.0
  %548 = vmatmul.mubr.f32.gmra.mrb[0].mxu0 %v479
  %v549 = vpop.f32.mrb[0].mxu0
  %v550 = vadd.f32 0.0, %v549
  %v551 = vpop.f32.mrb[0].mxu0
  %552 = vdwg.mxu0
  %v553 = vadd.f32 %v473, %v550
  %555 = vrot.lane.b32.xlu0 %v31, 7
  %v556 = vpop.permute.xlu0 %555
  %v558 = vmul.f32 %v45, %v556
  %559 = vrot.lane.b32.xlu0 %v55, 7
  %v560 = vpop.permute.xlu0 %559
  %v562 = vmul.f32 %v558, %v560
  %564 = vrot.lane.b32.xlu0 %v562, 121
  %v565 = vpop.permute.xlu0 %564
  %v567 = vsel %vm67, %v20, 0
  %v569 = vsel %vm71, %v565, 0
  %571 = vmatprep.subr.mxu0 0.0
  %572 = vmatpush1.msra.mxu0 %v569
  %573 = vmatprep.subr.mxu0 0.0
  %574 = vmatpush1.msra.mxu0 0.0
  %575 = vmatprep.subr.mxu0 0.0
  %576 = vmatpush1.msra.mxu0 0.0
  %577 = vmatprep.subr.mxu0 0.0
  %578 = vmatpush1.msra.mxu0 0.0
  %579 = vmatprep.subr.mxu0 0.0
  %580 = vmatpush1.msra.mxu0 0.0
  %581 = vmatprep.subr.mxu0 0.0
  %582 = vmatpush1.msra.mxu0 0.0
  %583 = vmatprep.subr.mxu0 0.0
  %584 = vmatpush1.msra.mxu0 0.0
  %585 = vmatprep.subr.mxu0 0.0
  %586 = vmatpush1.msra.mxu0 0.0
  %587 = vmatprep.subr.mxu0 0.0
  %588 = vmatpush1.msra.mxu0 0.0
  %589 = vmatprep.subr.mxu0 0.0
  %590 = vmatpush1.msra.mxu0 0.0
  %591 = vmatprep.subr.mxu0 0.0
  %592 = vmatpush1.msra.mxu0 0.0
  %593 = vmatprep.subr.mxu0 0.0
  %594 = vmatpush1.msra.mxu0 0.0
  %595 = vmatprep.subr.mxu0 0.0
  %596 = vmatpush1.msra.mxu0 0.0
  %597 = vmatprep.subr.mxu0 0.0
  %598 = vmatpush1.msra.mxu0 0.0
  %599 = vmatprep.subr.mxu0 0.0
  %600 = vmatpush1.msra.mxu0 0.0
  %601 = vmatprep.subr.mxu0 0.0
  %602 = vmatpush1.msra.mxu0 0.0
  %603 = vmatprep.subr.mxu0 0.0
  %604 = vmatpush1.msra.mxu0 0.0
  %605 = vmatprep.subr.mxu0 0.0
  %606 = vmatpush1.msra.mxu0 0.0
  %607 = vmatprep.subr.mxu0 0.0
  %608 = vmatpush1.msra.mxu0 0.0
  %609 = vmatprep.subr.mxu0 0.0
  %610 = vmatpush1.msra.mxu0 0.0
  %611 = vmatprep.subr.mxu0 0.0
  %612 = vmatpush1.msra.mxu0 0.0
  %613 = vmatprep.subr.mxu0 0.0
  %614 = vmatpush1.msra.mxu0 0.0
  %615 = vmatprep.subr.mxu0 0.0
  %616 = vmatpush1.msra.mxu0 0.0
  %617 = vmatprep.subr.mxu0 0.0
  %618 = vmatpush1.msra.mxu0 0.0
  %619 = vmatprep.subr.mxu0 0.0
  %620 = vmatpush1.msra.mxu0 0.0
  %621 = vmatprep.subr.mxu0 0.0
  %622 = vmatpush1.msra.mxu0 0.0
  %623 = vmatprep.subr.mxu0 0.0
  %624 = vmatpush1.msra.mxu0 0.0
  %625 = vmatprep.subr.mxu0 0.0
  %626 = vmatpush1.msra.mxu0 0.0
  %627 = vmatprep.subr.mxu0 0.0
  %628 = vmatpush1.msra.mxu0 0.0
  %629 = vmatprep.subr.mxu0 0.0
  %630 = vmatpush1.msra.mxu0 0.0
  %631 = vmatprep.subr.mxu0 0.0
  %632 = vmatpush1.msra.mxu0 0.0
  %633 = vmatprep.subr.mxu0 0.0
  %634 = vmatpush1.msra.mxu0 0.0
  %635 = vmatprep.mubr.f32.mxu0 0.0
  %636 = vmatmul.mubr.f32.gmra.mrb[0].mxu0 %v567
  %v637 = vpop.f32.mrb[0].mxu0
  %v638 = vadd.f32 0.0, %v637
  %v639 = vpop.f32.mrb[0].mxu0
  %640 = vdwg.mxu0
  %v641 = vadd.f32 %v553, %v638
  %642 = vrot.lane.b32.xlu0 %v31, 8
  %v643 = vpop.permute.xlu0 %642
  %v645 = vmul.f32 %v45, %v643
  %647 = vrot.lane.b32.xlu0 %v645, 120
  %v648 = vpop.permute.xlu0 %647
  %v650 = vsel %vm67, %v21, 0
  %v652 = vsel %vm71, %v648, 0
  %654 = vmatprep.subr.mxu0 0.0
  %655 = vmatpush1.msra.mxu0 %v652
  %656 = vmatprep.subr.mxu0 0.0
  %657 = vmatpush1.msra.mxu0 0.0
  %658 = vmatprep.subr.mxu0 0.0
  %659 = vmatpush1.msra.mxu0 0.0
  %660 = vmatprep.subr.mxu0 0.0
  %661 = vmatpush1.msra.mxu0 0.0
  %662 = vmatprep.subr.mxu0 0.0
  %663 = vmatpush1.msra.mxu0 0.0
  %664 = vmatprep.subr.mxu0 0.0
  %665 = vmatpush1.msra.mxu0 0.0
  %666 = vmatprep.subr.mxu0 0.0
  %667 = vmatpush1.msra.mxu0 0.0
  %668 = vmatprep.subr.mxu0 0.0
  %669 = vmatpush1.msra.mxu0 0.0
  %670 = vmatprep.subr.mxu0 0.0
  %671 = vmatpush1.msra.mxu0 0.0
  %672 = vmatprep.subr.mxu0 0.0
  %673 = vmatpush1.msra.mxu0 0.0
  %674 = vmatprep.subr.mxu0 0.0
  %675 = vmatpush1.msra.mxu0 0.0
  %676 = vmatprep.subr.mxu0 0.0
  %677 = vmatpush1.msra.mxu0 0.0
  %678 = vmatprep.subr.mxu0 0.0
  %679 = vmatpush1.msra.mxu0 0.0
  %680 = vmatprep.subr.mxu0 0.0
  %681 = vmatpush1.msra.mxu0 0.0
  %682 = vmatprep.subr.mxu0 0.0
  %683 = vmatpush1.msra.mxu0 0.0
  %684 = vmatprep.subr.mxu0 0.0
  %685 = vmatpush1.msra.mxu0 0.0
  %686 = vmatprep.subr.mxu0 0.0
  %687 = vmatpush1.msra.mxu0 0.0
  %688 = vmatprep.subr.mxu0 0.0
  %689 = vmatpush1.msra.mxu0 0.0
  %690 = vmatprep.subr.mxu0 0.0
  %691 = vmatpush1.msra.mxu0 0.0
  %692 = vmatprep.subr.mxu0 0.0
  %693 = vmatpush1.msra.mxu0 0.0
  %694 = vmatprep.subr.mxu0 0.0
  %695 = vmatpush1.msra.mxu0 0.0
  %696 = vmatprep.subr.mxu0 0.0
  %697 = vmatpush1.msra.mxu0 0.0
  %698 = vmatprep.subr.mxu0 0.0
  %699 = vmatpush1.msra.mxu0 0.0
  %700 = vmatprep.subr.mxu0 0.0
  %701 = vmatpush1.msra.mxu0 0.0
  %702 = vmatprep.subr.mxu0 0.0
  %703 = vmatpush1.msra.mxu0 0.0
  %704 = vmatprep.subr.mxu0 0.0
  %705 = vmatpush1.msra.mxu0 0.0
  %706 = vmatprep.subr.mxu0 0.0
  %707 = vmatpush1.msra.mxu0 0.0
  %708 = vmatprep.subr.mxu0 0.0
  %709 = vmatpush1.msra.mxu0 0.0
  %710 = vmatprep.subr.mxu0 0.0
  %711 = vmatpush1.msra.mxu0 0.0
  %712 = vmatprep.subr.mxu0 0.0
  %713 = vmatpush1.msra.mxu0 0.0
  %714 = vmatprep.subr.mxu0 0.0
  %715 = vmatpush1.msra.mxu0 0.0
  %716 = vmatprep.subr.mxu0 0.0
  %717 = vmatpush1.msra.mxu0 0.0
  %718 = vmatprep.mubr.f32.mxu0 0.0
  %719 = vmatmul.mubr.f32.gmra.mrb[0].mxu0 %v650
  %v720 = vpop.f32.mrb[0].mxu0
  %v721 = vadd.f32 0.0, %v720
  %v722 = vpop.f32.mrb[0].mxu0
  %723 = vdwg.mxu0
  %v724 = vadd.f32 %v641, %v721
  %725 = vrot.lane.b32.xlu0 %v31, 9
  %v726 = vpop.permute.xlu0 %725
  %v728 = vmul.f32 %v45, %v726
  %729 = vrot.lane.b32.xlu0 %v229, 8
  %v730 = vpop.permute.xlu0 %729
  %v732 = vmul.f32 %v728, %v730
  %734 = vrot.lane.b32.xlu0 %v732, 119
  %v735 = vpop.permute.xlu0 %734
  %v737 = vsel %vm67, %v22, 0
  %v739 = vsel %vm71, %v735, 0
  %741 = vmatprep.subr.mxu0 0.0
  %742 = vmatpush1.msra.mxu0 %v739
  %743 = vmatprep.subr.mxu0 0.0
  %744 = vmatpush1.msra.mxu0 0.0
  %745 = vmatprep.subr.mxu0 0.0
  %746 = vmatpush1.msra.mxu0 0.0
  %747 = vmatprep.subr.mxu0 0.0
  %748 = vmatpush1.msra.mxu0 0.0
  %749 = vmatprep.subr.mxu0 0.0
  %750 = vmatpush1.msra.mxu0 0.0
  %751 = vmatprep.subr.mxu0 0.0
  %752 = vmatpush1.msra.mxu0 0.0
  %753 = vmatprep.subr.mxu0 0.0
  %754 = vmatpush1.msra.mxu0 0.0
  %755 = vmatprep.subr.mxu0 0.0
  %756 = vmatpush1.msra.mxu0 0.0
  %757 = vmatprep.subr.mxu0 0.0
  %758 = vmatpush1.msra.mxu0 0.0
  %759 = vmatprep.subr.mxu0 0.0
  %760 = vmatpush1.msra.mxu0 0.0
  %761 = vmatprep.subr.mxu0 0.0
  %762 = vmatpush1.msra.mxu0 0.0
  %763 = vmatprep.subr.mxu0 0.0
  %764 = vmatpush1.msra.mxu0 0.0
  %765 = vmatprep.subr.mxu0 0.0
  %766 = vmatpush1.msra.mxu0 0.0
  %767 = vmatprep.subr.mxu0 0.0
  %768 = vmatpush1.msra.mxu0 0.0
  %769 = vmatprep.subr.mxu0 0.0
  %770 = vmatpush1.msra.mxu0 0.0
  %771 = vmatprep.subr.mxu0 0.0
  %772 = vmatpush1.msra.mxu0 0.0
  %773 = vmatprep.subr.mxu0 0.0
  %774 = vmatpush1.msra.mxu0 0.0
  %775 = vmatprep.subr.mxu0 0.0
  %776 = vmatpush1.msra.mxu0 0.0
  %777 = vmatprep.subr.mxu0 0.0
  %778 = vmatpush1.msra.mxu0 0.0
  %779 = vmatprep.subr.mxu0 0.0
  %780 = vmatpush1.msra.mxu0 0.0
  %781 = vmatprep.subr.mxu0 0.0
  %782 = vmatpush1.msra.mxu0 0.0
  %783 = vmatprep.subr.mxu0 0.0
  %784 = vmatpush1.msra.mxu0 0.0
  %785 = vmatprep.subr.mxu0 0.0
  %786 = vmatpush1.msra.mxu0 0.0
  %787 = vmatprep.subr.mxu0 0.0
  %788 = vmatpush1.msra.mxu0 0.0
  %789 = vmatprep.subr.mxu0 0.0
  %790 = vmatpush1.msra.mxu0 0.0
  %791 = vmatprep.subr.mxu0 0.0
  %792 = vmatpush1.msra.mxu0 0.0
  %793 = vmatprep.subr.mxu0 0.0
  %794 = vmatpush1.msra.mxu0 0.0
  %795 = vmatprep.subr.mxu0 0.0
  %796 = vmatpush1.msra.mxu0 0.0
  %797 = vmatprep.subr.mxu0 0.0
  %798 = vmatpush1.msra.mxu0 0.0
  %799 = vmatprep.subr.mxu0 0.0
  %800 = vmatpush1.msra.mxu0 0.0
  %801 = vmatprep.subr.mxu0 0.0
  %802 = vmatpush1.msra.mxu0 0.0
  %803 = vmatprep.subr.mxu0 0.0
  %804 = vmatpush1.msra.mxu0 0.0
  %805 = vmatprep.mubr.f32.mxu0 0.0
  %806 = vmatmul.mubr.f32.gmra.mrb[0].mxu0 %v737
  %v807 = vpop.f32.mrb[0].mxu0
  %v808 = vadd.f32 0.0, %v807
  %v809 = vpop.f32.mrb[0].mxu0
  %810 = vdwg.mxu0
  %v811 = vadd.f32 %v724, %v808
  %vm812 = vcmask 519168
  %813 = vst.msk [vmem:[%s3] sm:$0xf] %vm812, %v811
  %s814 = scalar_lea.vmem %s0, 4
  %v815 = vld [vmem:[%s814] sm:$0xf]
  %816 = vrot.lane.b32.xlu0 %v815, 64
  %v817 = vpop.permute.xlu0 %816
  %v818 = vsel %vm32, %v817, %v815
  %819 = vrot.lane.b32.xlu0 %v818, 64
  %v820 = vpop.permute.xlu0 %819
  %v821 = vsel %vm32, %v820, %v815
  %v822 = vmul.f32 %v821, %v48
  %v823 = vmul.f32 %v822, %v57
  %v824 = vmul.f32 %v821, %v61
  %826 = vrot.lane.b32.xlu0 %v824, 72
  %v827 = vpop.permute.xlu0 %826
  %v828 = vsel %vm71, %v827, 0
  %830 = vmatprep.subr.mxu0 0.0
  %831 = vmatpush1.msra.mxu0 %v828
  %832 = vmatprep.subr.mxu0 0.0
  %833 = vmatpush1.msra.mxu0 0.0
  %834 = vmatprep.subr.mxu0 0.0
  %835 = vmatpush1.msra.mxu0 0.0
  %836 = vmatprep.subr.mxu0 0.0
  %837 = vmatpush1.msra.mxu0 0.0
  %838 = vmatprep.subr.mxu0 0.0
  %839 = vmatpush1.msra.mxu0 0.0
  %840 = vmatprep.subr.mxu0 0.0
  %841 = vmatpush1.msra.mxu0 0.0
  %842 = vmatprep.subr.mxu0 0.0
  %843 = vmatpush1.msra.mxu0 0.0
  %844 = vmatprep.subr.mxu0 0.0
  %845 = vmatpush1.msra.mxu0 0.0
  %846 = vmatprep.subr.mxu0 0.0
  %847 = vmatpush1.msra.mxu0 0.0
  %848 = vmatprep.subr.mxu0 0.0
  %849 = vmatpush1.msra.mxu0 0.0
  %850 = vmatprep.subr.mxu0 0.0
  %851 = vmatpush1.msra.mxu0 0.0
  %852 = vmatprep.subr.mxu0 0.0
  %853 = vmatpush1.msra.mxu0 0.0
  %854 = vmatprep.subr.mxu0 0.0
  %855 = vmatpush1.msra.mxu0 0.0
  %856 = vmatprep.subr.mxu0 0.0
  %857 = vmatpush1.msra.mxu0 0.0
  %858 = vmatprep.subr.mxu0 0.0
  %859 = vmatpush1.msra.mxu0 0.0
  %860 = vmatprep.subr.mxu0 0.0
  %861 = vmatpush1.msra.mxu0 0.0
  %862 = vmatprep.subr.mxu0 0.0
  %863 = vmatpush1.msra.mxu0 0.0
  %864 = vmatprep.subr.mxu0 0.0
  %865 = vmatpush1.msra.mxu0 0.0
  %866 = vmatprep.subr.mxu0 0.0
  %867 = vmatpush1.msra.mxu0 0.0
  %868 = vmatprep.subr.mxu0 0.0
  %869 = vmatpush1.msra.mxu0 0.0
  %870 = vmatprep.subr.mxu0 0.0
  %871 = vmatpush1.msra.mxu0 0.0
  %872 = vmatprep.subr.mxu0 0.0
  %873 = vmatpush1.msra.mxu0 0.0
  %874 = vmatprep.subr.mxu0 0.0
  %875 = vmatpush1.msra.mxu0 0.0
  %876 = vmatprep.subr.mxu0 0.0
  %877 = vmatpush1.msra.mxu0 0.0
  %878 = vmatprep.subr.mxu0 0.0
  %879 = vmatpush1.msra.mxu0 0.0
  %880 = vmatprep.subr.mxu0 0.0
  %881 = vmatpush1.msra.mxu0 0.0
  %882 = vmatprep.subr.mxu0 0.0
  %883 = vmatpush1.msra.mxu0 0.0
  %884 = vmatprep.subr.mxu0 0.0
  %885 = vmatpush1.msra.mxu0 0.0
  %886 = vmatprep.subr.mxu0 0.0
  %887 = vmatpush1.msra.mxu0 0.0
  %888 = vmatprep.subr.mxu0 0.0
  %889 = vmatpush1.msra.mxu0 0.0
  %890 = vmatprep.subr.mxu0 0.0
  %891 = vmatpush1.msra.mxu0 0.0
  %892 = vmatprep.subr.mxu0 0.0
  %893 = vmatpush1.msra.mxu0 0.0
  %894 = vmatprep.mubr.f32.mxu0 0.0
  %895 = vmatmul.mubr.f32.gmra.mrb[0].mxu0 %v69
  %v896 = vpop.f32.mrb[0].mxu0
  %v897 = vadd.f32 0.0, %v896
  %v898 = vpop.f32.mrb[0].mxu0
  %899 = vdwg.mxu0
  %901 = vrot.lane.b32.xlu0 %v823, 73
  %v902 = vpop.permute.xlu0 %901
  %v903 = vsel %vm71, %v902, 0
  %905 = vmatprep.subr.mxu0 0.0
  %906 = vmatpush1.msra.mxu0 %v903
  %907 = vmatprep.subr.mxu0 0.0
  %908 = vmatpush1.msra.mxu0 0.0
  %909 = vmatprep.subr.mxu0 0.0
  %910 = vmatpush1.msra.mxu0 0.0
  %911 = vmatprep.subr.mxu0 0.0
  %912 = vmatpush1.msra.mxu0 0.0
  %913 = vmatprep.subr.mxu0 0.0
  %914 = vmatpush1.msra.mxu0 0.0
  %915 = vmatprep.subr.mxu0 0.0
  %916 = vmatpush1.msra.mxu0 0.0
  %917 = vmatprep.subr.mxu0 0.0
  %918 = vmatpush1.msra.mxu0 0.0
  %919 = vmatprep.subr.mxu0 0.0
  %920 = vmatpush1.msra.mxu0 0.0
  %921 = vmatprep.subr.mxu0 0.0
  %922 = vmatpush1.msra.mxu0 0.0
  %923 = vmatprep.subr.mxu0 0.0
  %924 = vmatpush1.msra.mxu0 0.0
  %925 = vmatprep.subr.mxu0 0.0
  %926 = vmatpush1.msra.mxu0 0.0
  %927 = vmatprep.subr.mxu0 0.0
  %928 = vmatpush1.msra.mxu0 0.0
  %929 = vmatprep.subr.mxu0 0.0
  %930 = vmatpush1.msra.mxu0 0.0
  %931 = vmatprep.subr.mxu0 0.0
  %932 = vmatpush1.msra.mxu0 0.0
  %933 = vmatprep.subr.mxu0 0.0
  %934 = vmatpush1.msra.mxu0 0.0
  %935 = vmatprep.subr.mxu0 0.0
  %936 = vmatpush1.msra.mxu0 0.0
  %937 = vmatprep.subr.mxu0 0.0
  %938 = vmatpush1.msra.mxu0 0.0
  %939 = vmatprep.subr.mxu0 0.0
  %940 = vmatpush1.msra.mxu0 0.0
  %941 = vmatprep.subr.mxu0 0.0
  %942 = vmatpush1.msra.mxu0 0.0
  %943 = vmatprep.subr.mxu0 0.0
  %944 = vmatpush1.msra.mxu0 0.0
  %945 = vmatprep.subr.mxu0 0.0
  %946 = vmatpush1.msra.mxu0 0.0
  %947 = vmatprep.subr.mxu0 0.0
  %948 = vmatpush1.msra.mxu0 0.0
  %949 = vmatprep.subr.mxu0 0.0
  %950 = vmatpush1.msra.mxu0 0.0
  %951 = vmatprep.subr.mxu0 0.0
  %952 = vmatpush1.msra.mxu0 0.0
  %953 = vmatprep.subr.mxu0 0.0
  %954 = vmatpush1.msra.mxu0 0.0
  %955 = vmatprep.subr.mxu0 0.0
  %956 = vmatpush1.msra.mxu0 0.0
  %957 = vmatprep.subr.mxu0 0.0
  %958 = vmatpush1.msra.mxu0 0.0
  %959 = vmatprep.subr.mxu0 0.0
  %960 = vmatpush1.msra.mxu0 0.0
  %961 = vmatprep.subr.mxu0 0.0
  %962 = vmatpush1.msra.mxu0 0.0
  %963 = vmatprep.subr.mxu0 0.0
  %964 = vmatpush1.msra.mxu0 0.0
  %965 = vmatprep.subr.mxu0 0.0
  %966 = vmatpush1.msra.mxu0 0.0
  %967 = vmatprep.subr.mxu0 0.0
  %968 = vmatpush1.msra.mxu0 0.0
  %969 = vmatprep.mubr.f32.mxu0 0.0
  %970 = vmatmul.mubr.f32.gmra.mrb[0].mxu0 %v148
  %v971 = vpop.f32.mrb[0].mxu0
  %v972 = vadd.f32 %v897, %v971
  %v973 = vpop.f32.mrb[0].mxu0
  %974 = vdwg.mxu0
  %v975 = vmul.f32 %v821, %v223
  %v976 = vmul.f32 %v975, %v232
  %978 = vrot.lane.b32.xlu0 %v976, 71
  %v979 = vpop.permute.xlu0 %978
  %v980 = vsel %vm71, %v979, 0
  %982 = vmatprep.subr.mxu0 0.0
  %983 = vmatpush1.msra.mxu0 %v980
  %984 = vmatprep.subr.mxu0 0.0
  %985 = vmatpush1.msra.mxu0 0.0
  %986 = vmatprep.subr.mxu0 0.0
  %987 = vmatpush1.msra.mxu0 0.0
  %988 = vmatprep.subr.mxu0 0.0
  %989 = vmatpush1.msra.mxu0 0.0
  %990 = vmatprep.subr.mxu0 0.0
  %991 = vmatpush1.msra.mxu0 0.0
  %992 = vmatprep.subr.mxu0 0.0
  %993 = vmatpush1.msra.mxu0 0.0
  %994 = vmatprep.subr.mxu0 0.0
  %995 = vmatpush1.msra.mxu0 0.0
  %996 = vmatprep.subr.mxu0 0.0
  %997 = vmatpush1.msra.mxu0 0.0
  %998 = vmatprep.subr.mxu0 0.0
  %999 = vmatpush1.msra.mxu0 0.0
  %1000 = vmatprep.subr.mxu0 0.0
  %1001 = vmatpush1.msra.mxu0 0.0
  %1002 = vmatprep.subr.mxu0 0.0
  %1003 = vmatpush1.msra.mxu0 0.0
  %1004 = vmatprep.subr.mxu0 0.0
  %1005 = vmatpush1.msra.mxu0 0.0
  %1006 = vmatprep.subr.mxu0 0.0
  %1007 = vmatpush1.msra.mxu0 0.0
  %1008 = vmatprep.subr.mxu0 0.0
  %1009 = vmatpush1.msra.mxu0 0.0
  %1010 = vmatprep.subr.mxu0 0.0
  %1011 = vmatpush1.msra.mxu0 0.0
  %1012 = vmatprep.subr.mxu0 0.0
  %1013 = vmatpush1.msra.mxu0 0.0
  %1014 = vmatprep.subr.mxu0 0.0
  %1015 = vmatpush1.msra.mxu0 0.0
  %1016 = vmatprep.subr.mxu0 0.0
  %1017 = vmatpush1.msra.mxu0 0.0
  %1018 = vmatprep.subr.mxu0 0.0
  %1019 = vmatpush1.msra.mxu0 0.0
  %1020 = vmatprep.subr.mxu0 0.0
  %1021 = vmatpush1.msra.mxu0 0.0
  %1022 = vmatprep.subr.mxu0 0.0
  %1023 = vmatpush1.msra.mxu0 0.0
  %1024 = vmatprep.subr.mxu0 0.0
  %1025 = vmatpush1.msra.mxu0 0.0
  %1026 = vmatprep.subr.mxu0 0.0
  %1027 = vmatpush1.msra.mxu0 0.0
  %1028 = vmatprep.subr.mxu0 0.0
  %1029 = vmatpush1.msra.mxu0 0.0
  %1030 = vmatprep.subr.mxu0 0.0
  %1031 = vmatpush1.msra.mxu0 0.0
  %1032 = vmatprep.subr.mxu0 0.0
  %1033 = vmatpush1.msra.mxu0 0.0
  %1034 = vmatprep.subr.mxu0 0.0
  %1035 = vmatpush1.msra.mxu0 0.0
  %1036 = vmatprep.subr.mxu0 0.0
  %1037 = vmatpush1.msra.mxu0 0.0
  %1038 = vmatprep.subr.mxu0 0.0
  %1039 = vmatpush1.msra.mxu0 0.0
  %1040 = vmatprep.subr.mxu0 0.0
  %1041 = vmatpush1.msra.mxu0 0.0
  %1042 = vmatprep.subr.mxu0 0.0
  %1043 = vmatpush1.msra.mxu0 0.0
  %1044 = vmatprep.subr.mxu0 0.0
  %1045 = vmatpush1.msra.mxu0 0.0
  %1046 = vmatprep.mubr.f32.mxu0 0.0
  %1047 = vmatmul.mubr.f32.gmra.mrb[0].mxu0 %v239
  %v1048 = vpop.f32.mrb[0].mxu0
  %v1049 = vadd.f32 0.0, %v1048
  %v1050 = vpop.f32.mrb[0].mxu0
  %1051 = vdwg.mxu0
  %v1052 = vadd.f32 %v972, %v1049
  %v1053 = vmul.f32 %v821, %v315
  %1055 = vrot.lane.b32.xlu0 %v1053, 65
  %v1056 = vpop.permute.xlu0 %1055
  %v1057 = vsel %vm71, %v1056, 0
  %1059 = vmatprep.subr.mxu0 0.0
  %1060 = vmatpush1.msra.mxu0 %v1057
  %1061 = vmatprep.subr.mxu0 0.0
  %1062 = vmatpush1.msra.mxu0 0.0
  %1063 = vmatprep.subr.mxu0 0.0
  %1064 = vmatpush1.msra.mxu0 0.0
  %1065 = vmatprep.subr.mxu0 0.0
  %1066 = vmatpush1.msra.mxu0 0.0
  %1067 = vmatprep.subr.mxu0 0.0
  %1068 = vmatpush1.msra.mxu0 0.0
  %1069 = vmatprep.subr.mxu0 0.0
  %1070 = vmatpush1.msra.mxu0 0.0
  %1071 = vmatprep.subr.mxu0 0.0
  %1072 = vmatpush1.msra.mxu0 0.0
  %1073 = vmatprep.subr.mxu0 0.0
  %1074 = vmatpush1.msra.mxu0 0.0
  %1075 = vmatprep.subr.mxu0 0.0
  %1076 = vmatpush1.msra.mxu0 0.0
  %1077 = vmatprep.subr.mxu0 0.0
  %1078 = vmatpush1.msra.mxu0 0.0
  %1079 = vmatprep.subr.mxu0 0.0
  %1080 = vmatpush1.msra.mxu0 0.0
  %1081 = vmatprep.subr.mxu0 0.0
  %1082 = vmatpush1.msra.mxu0 0.0
  %1083 = vmatprep.subr.mxu0 0.0
  %1084 = vmatpush1.msra.mxu0 0.0
  %1085 = vmatprep.subr.mxu0 0.0
  %1086 = vmatpush1.msra.mxu0 0.0
  %1087 = vmatprep.subr.mxu0 0.0
  %1088 = vmatpush1.msra.mxu0 0.0
  %1089 = vmatprep.subr.mxu0 0.0
  %1090 = vmatpush1.msra.mxu0 0.0
  %1091 = vmatprep.subr.mxu0 0.0
  %1092 = vmatpush1.msra.mxu0 0.0
  %1093 = vmatprep.subr.mxu0 0.0
  %1094 = vmatpush1.msra.mxu0 0.0
  %1095 = vmatprep.subr.mxu0 0.0
  %1096 = vmatpush1.msra.mxu0 0.0
  %1097 = vmatprep.subr.mxu0 0.0
  %1098 = vmatpush1.msra.mxu0 0.0
  %1099 = vmatprep.subr.mxu0 0.0
  %1100 = vmatpush1.msra.mxu0 0.0
  %1101 = vmatprep.subr.mxu0 0.0
  %1102 = vmatpush1.msra.mxu0 0.0
  %1103 = vmatprep.subr.mxu0 0.0
  %1104 = vmatpush1.msra.mxu0 0.0
  %1105 = vmatprep.subr.mxu0 0.0
  %1106 = vmatpush1.msra.mxu0 0.0
  %1107 = vmatprep.subr.mxu0 0.0
  %1108 = vmatpush1.msra.mxu0 0.0
  %1109 = vmatprep.subr.mxu0 0.0
  %1110 = vmatpush1.msra.mxu0 0.0
  %1111 = vmatprep.subr.mxu0 0.0
  %1112 = vmatpush1.msra.mxu0 0.0
  %1113 = vmatprep.subr.mxu0 0.0
  %1114 = vmatpush1.msra.mxu0 0.0
  %1115 = vmatprep.subr.mxu0 0.0
  %1116 = vmatpush1.msra.mxu0 0.0
  %1117 = vmatprep.subr.mxu0 0.0
  %1118 = vmatpush1.msra.mxu0 0.0
  %1119 = vmatprep.subr.mxu0 0.0
  %1120 = vmatpush1.msra.mxu0 0.0
  %1121 = vmatprep.subr.mxu0 0.0
  %1122 = vmatpush1.msra.mxu0 0.0
  %1123 = vmatprep.mubr.f32.mxu0 0.0
  %1124 = vmatmul.mubr.f32.gmra.mrb[0].mxu0 %v322
  %v1125 = vpop.f32.mrb[0].mxu0
  %v1126 = vadd.f32 0.0, %v1125
  %v1127 = vpop.f32.mrb[0].mxu0
  %1128 = vdwg.mxu0
  %v1129 = vadd.f32 %v1052, %v1126
  %v1131 = vsel %vm71, %v815, 0
  %1133 = vmatprep.subr.mxu0 0.0
  %1134 = vmatpush1.msra.mxu0 %v1131
  %1135 = vmatprep.subr.mxu0 0.0
  %1136 = vmatpush1.msra.mxu0 0.0
  %1137 = vmatprep.subr.mxu0 0.0
  %1138 = vmatpush1.msra.mxu0 0.0
  %1139 = vmatprep.subr.mxu0 0.0
  %1140 = vmatpush1.msra.mxu0 0.0
  %1141 = vmatprep.subr.mxu0 0.0
  %1142 = vmatpush1.msra.mxu0 0.0
  %1143 = vmatprep.subr.mxu0 0.0
  %1144 = vmatpush1.msra.mxu0 0.0
  %1145 = vmatprep.subr.mxu0 0.0
  %1146 = vmatpush1.msra.mxu0 0.0
  %1147 = vmatprep.subr.mxu0 0.0
  %1148 = vmatpush1.msra.mxu0 0.0
  %1149 = vmatprep.subr.mxu0 0.0
  %1150 = vmatpush1.msra.mxu0 0.0
  %1151 = vmatprep.subr.mxu0 0.0
  %1152 = vmatpush1.msra.mxu0 0.0
  %1153 = vmatprep.subr.mxu0 0.0
  %1154 = vmatpush1.msra.mxu0 0.0
  %1155 = vmatprep.subr.mxu0 0.0
  %1156 = vmatpush1.msra.mxu0 0.0
  %1157 = vmatprep.subr.mxu0 0.0
  %1158 = vmatpush1.msra.mxu0 0.0
  %1159 = vmatprep.subr.mxu0 0.0
  %1160 = vmatpush1.msra.mxu0 0.0
  %1161 = vmatprep.subr.mxu0 0.0
  %1162 = vmatpush1.msra.mxu0 0.0
  %1163 = vmatprep.subr.mxu0 0.0
  %1164 = vmatpush1.msra.mxu0 0.0
  %1165 = vmatprep.subr.mxu0 0.0
  %1166 = vmatpush1.msra.mxu0 0.0
  %1167 = vmatprep.subr.mxu0 0.0
  %1168 = vmatpush1.msra.mxu0 0.0
  %1169 = vmatprep.subr.mxu0 0.0
  %1170 = vmatpush1.msra.mxu0 0.0
  %1171 = vmatprep.subr.mxu0 0.0
  %1172 = vmatpush1.msra.mxu0 0.0
  %1173 = vmatprep.subr.mxu0 0.0
  %1174 = vmatpush1.msra.mxu0 0.0
  %1175 = vmatprep.subr.mxu0 0.0
  %1176 = vmatpush1.msra.mxu0 0.0
  %1177 = vmatprep.subr.mxu0 0.0
  %1178 = vmatpush1.msra.mxu0 0.0
  %1179 = vmatprep.subr.mxu0 0.0
  %1180 = vmatpush1.msra.mxu0 0.0
  %1181 = vmatprep.subr.mxu0 0.0
  %1182 = vmatpush1.msra.mxu0 0.0
  %1183 = vmatprep.subr.mxu0 0.0
  %1184 = vmatpush1.msra.mxu0 0.0
  %1185 = vmatprep.subr.mxu0 0.0
  %1186 = vmatpush1.msra.mxu0 0.0
  %1187 = vmatprep.subr.mxu0 0.0
  %1188 = vmatpush1.msra.mxu0 0.0
  %1189 = vmatprep.subr.mxu0 0.0
  %1190 = vmatpush1.msra.mxu0 0.0
  %1191 = vmatprep.subr.mxu0 0.0
  %1192 = vmatpush1.msra.mxu0 0.0
  %1193 = vmatprep.subr.mxu0 0.0
  %1194 = vmatpush1.msra.mxu0 0.0
  %1195 = vmatprep.subr.mxu0 0.0
  %1196 = vmatpush1.msra.mxu0 0.0
  %1197 = vmatprep.mubr.f32.mxu0 0.0
  %1198 = vmatmul.mubr.f32.gmra.mrb[0].mxu0 %v398
  %v1199 = vpop.f32.mrb[0].mxu0
  %v1200 = vadd.f32 0.0, %v1199
  %v1201 = vpop.f32.mrb[0].mxu0
  %1202 = vdwg.mxu0
  %v1203 = vadd.f32 %v1129, %v1200
  %v1204 = vmul.f32 %v821, %v229
  %1206 = vrot.lane.b32.xlu0 %v1204, 127
  %v1207 = vpop.permute.xlu0 %1206
  %v1208 = vsel %vm71, %v1207, 0
  %1210 = vmatprep.subr.mxu0 0.0
  %1211 = vmatpush1.msra.mxu0 %v1208
  %1212 = vmatprep.subr.mxu0 0.0
  %1213 = vmatpush1.msra.mxu0 0.0
  %1214 = vmatprep.subr.mxu0 0.0
  %1215 = vmatpush1.msra.mxu0 0.0
  %1216 = vmatprep.subr.mxu0 0.0
  %1217 = vmatpush1.msra.mxu0 0.0
  %1218 = vmatprep.subr.mxu0 0.0
  %1219 = vmatpush1.msra.mxu0 0.0
  %1220 = vmatprep.subr.mxu0 0.0
  %1221 = vmatpush1.msra.mxu0 0.0
  %1222 = vmatprep.subr.mxu0 0.0
  %1223 = vmatpush1.msra.mxu0 0.0
  %1224 = vmatprep.subr.mxu0 0.0
  %1225 = vmatpush1.msra.mxu0 0.0
  %1226 = vmatprep.subr.mxu0 0.0
  %1227 = vmatpush1.msra.mxu0 0.0
  %1228 = vmatprep.subr.mxu0 0.0
  %1229 = vmatpush1.msra.mxu0 0.0
  %1230 = vmatprep.subr.mxu0 0.0
  %1231 = vmatpush1.msra.mxu0 0.0
  %1232 = vmatprep.subr.mxu0 0.0
  %1233 = vmatpush1.msra.mxu0 0.0
  %1234 = vmatprep.subr.mxu0 0.0
  %1235 = vmatpush1.msra.mxu0 0.0
  %1236 = vmatprep.subr.mxu0 0.0
  %1237 = vmatpush1.msra.mxu0 0.0
  %1238 = vmatprep.subr.mxu0 0.0
  %1239 = vmatpush1.msra.mxu0 0.0
  %1240 = vmatprep.subr.mxu0 0.0
  %1241 = vmatpush1.msra.mxu0 0.0
  %1242 = vmatprep.subr.mxu0 0.0
  %1243 = vmatpush1.msra.mxu0 0.0
  %1244 = vmatprep.subr.mxu0 0.0
  %1245 = vmatpush1.msra.mxu0 0.0
  %1246 = vmatprep.subr.mxu0 0.0
  %1247 = vmatpush1.msra.mxu0 0.0
  %1248 = vmatprep.subr.mxu0 0.0
  %1249 = vmatpush1.msra.mxu0 0.0
  %1250 = vmatprep.subr.mxu0 0.0
  %1251 = vmatpush1.msra.mxu0 0.0
  %1252 = vmatprep.subr.mxu0 0.0
  %1253 = vmatpush1.msra.mxu0 0.0
  %1254 = vmatprep.subr.mxu0 0.0
  %1255 = vmatpush1.msra.mxu0 0.0
  %1256 = vmatprep.subr.mxu0 0.0
  %1257 = vmatpush1.msra.mxu0 0.0
  %1258 = vmatprep.subr.mxu0 0.0
  %1259 = vmatpush1.msra.mxu0 0.0
  %1260 = vmatprep.subr.mxu0 0.0
  %1261 = vmatpush1.msra.mxu0 0.0
  %1262 = vmatprep.subr.mxu0 0.0
  %1263 = vmatpush1.msra.mxu0 0.0
  %1264 = vmatprep.subr.mxu0 0.0
  %1265 = vmatpush1.msra.mxu0 0.0
  %1266 = vmatprep.subr.mxu0 0.0
  %1267 = vmatpush1.msra.mxu0 0.0
  %1268 = vmatprep.subr.mxu0 0.0
  %1269 = vmatpush1.msra.mxu0 0.0
  %1270 = vmatprep.subr.mxu0 0.0
  %1271 = vmatpush1.msra.mxu0 0.0
  %1272 = vmatprep.subr.mxu0 0.0
  %1273 = vmatpush1.msra.mxu0 0.0
  %1274 = vmatprep.mubr.f32.mxu0 0.0
  %1275 = vmatmul.mubr.f32.gmra.mrb[0].mxu0 %v479
  %v1276 = vpop.f32.mrb[0].mxu0
  %v1277 = vadd.f32 0.0, %v1276
  %v1278 = vpop.f32.mrb[0].mxu0
  %1279 = vdwg.mxu0
  %v1280 = vadd.f32 %v1203, %v1277
  %v1281 = vmul.f32 %v821, %v556
  %v1282 = vmul.f32 %v1281, %v560
  %1284 = vrot.lane.b32.xlu0 %v1282, 121
  %v1285 = vpop.permute.xlu0 %1284
  %v1286 = vsel %vm71, %v1285, 0
  %1288 = vmatprep.subr.mxu0 0.0
  %1289 = vmatpush1.msra.mxu0 %v1286
  %1290 = vmatprep.subr.mxu0 0.0
  %1291 = vmatpush1.msra.mxu0 0.0
  %1292 = vmatprep.subr.mxu0 0.0
  %1293 = vmatpush1.msra.mxu0 0.0
  %1294 = vmatprep.subr.mxu0 0.0
  %1295 = vmatpush1.msra.mxu0 0.0
  %1296 = vmatprep.subr.mxu0 0.0
  %1297 = vmatpush1.msra.mxu0 0.0
  %1298 = vmatprep.subr.mxu0 0.0
  %1299 = vmatpush1.msra.mxu0 0.0
  %1300 = vmatprep.subr.mxu0 0.0
  %1301 = vmatpush1.msra.mxu0 0.0
  %1302 = vmatprep.subr.mxu0 0.0
  %1303 = vmatpush1.msra.mxu0 0.0
  %1304 = vmatprep.subr.mxu0 0.0
  %1305 = vmatpush1.msra.mxu0 0.0
  %1306 = vmatprep.subr.mxu0 0.0
  %1307 = vmatpush1.msra.mxu0 0.0
  %1308 = vmatprep.subr.mxu0 0.0
  %1309 = vmatpush1.msra.mxu0 0.0
  %1310 = vmatprep.subr.mxu0 0.0
  %1311 = vmatpush1.msra.mxu0 0.0
  %1312 = vmatprep.subr.mxu0 0.0
  %1313 = vmatpush1.msra.mxu0 0.0
  %1314 = vmatprep.subr.mxu0 0.0
  %1315 = vmatpush1.msra.mxu0 0.0
  %1316 = vmatprep.subr.mxu0 0.0
  %1317 = vmatpush1.msra.mxu0 0.0
  %1318 = vmatprep.subr.mxu0 0.0
  %1319 = vmatpush1.msra.mxu0 0.0
  %1320 = vmatprep.subr.mxu0 0.0
  %1321 = vmatpush1.msra.mxu0 0.0
  %1322 = vmatprep.subr.mxu0 0.0
  %1323 = vmatpush1.msra.mxu0 0.0
  %1324 = vmatprep.subr.mxu0 0.0
  %1325 = vmatpush1.msra.mxu0 0.0
  %1326 = vmatprep.subr.mxu0 0.0
  %1327 = vmatpush1.msra.mxu0 0.0
  %1328 = vmatprep.subr.mxu0 0.0
  %1329 = vmatpush1.msra.mxu0 0.0
  %1330 = vmatprep.subr.mxu0 0.0
  %1331 = vmatpush1.msra.mxu0 0.0
  %1332 = vmatprep.subr.mxu0 0.0
  %1333 = vmatpush1.msra.mxu0 0.0
  %1334 = vmatprep.subr.mxu0 0.0
  %1335 = vmatpush1.msra.mxu0 0.0
  %1336 = vmatprep.subr.mxu0 0.0
  %1337 = vmatpush1.msra.mxu0 0.0
  %1338 = vmatprep.subr.mxu0 0.0
  %1339 = vmatpush1.msra.mxu0 0.0
  %1340 = vmatprep.subr.mxu0 0.0
  %1341 = vmatpush1.msra.mxu0 0.0
  %1342 = vmatprep.subr.mxu0 0.0
  %1343 = vmatpush1.msra.mxu0 0.0
  %1344 = vmatprep.subr.mxu0 0.0
  %1345 = vmatpush1.msra.mxu0 0.0
  %1346 = vmatprep.subr.mxu0 0.0
  %1347 = vmatpush1.msra.mxu0 0.0
  %1348 = vmatprep.subr.mxu0 0.0
  %1349 = vmatpush1.msra.mxu0 0.0
  %1350 = vmatprep.subr.mxu0 0.0
  %1351 = vmatpush1.msra.mxu0 0.0
  %1352 = vmatprep.mubr.f32.mxu0 0.0
  %1353 = vmatmul.mubr.f32.gmra.mrb[0].mxu0 %v567
  %v1354 = vpop.f32.mrb[0].mxu0
  %v1355 = vadd.f32 0.0, %v1354
  %v1356 = vpop.f32.mrb[0].mxu0
  %1357 = vdwg.mxu0
  %v1358 = vadd.f32 %v1280, %v1355
  %v1359 = vmul.f32 %v821, %v643
  %1361 = vrot.lane.b32.xlu0 %v1359, 120
  %v1362 = vpop.permute.xlu0 %1361
  %v1363 = vsel %vm71, %v1362, 0
  %1365 = vmatprep.subr.mxu0 0.0
  %1366 = vmatpush1.msra.mxu0 %v1363
  %1367 = vmatprep.subr.mxu0 0.0
  %1368 = vmatpush1.msra.mxu0 0.0
  %1369 = vmatprep.subr.mxu0 0.0
  %1370 = vmatpush1.msra.mxu0 0.0
  %1371 = vmatprep.subr.mxu0 0.0
  %1372 = vmatpush1.msra.mxu0 0.0
  %1373 = vmatprep.subr.mxu0 0.0
  %1374 = vmatpush1.msra.mxu0 0.0
  %1375 = vmatprep.subr.mxu0 0.0
  %1376 = vmatpush1.msra.mxu0 0.0
  %1377 = vmatprep.subr.mxu0 0.0
  %1378 = vmatpush1.msra.mxu0 0.0
  %1379 = vmatprep.subr.mxu0 0.0
  %1380 = vmatpush1.msra.mxu0 0.0
  %1381 = vmatprep.subr.mxu0 0.0
  %1382 = vmatpush1.msra.mxu0 0.0
  %1383 = vmatprep.subr.mxu0 0.0
  %1384 = vmatpush1.msra.mxu0 0.0
  %1385 = vmatprep.subr.mxu0 0.0
  %1386 = vmatpush1.msra.mxu0 0.0
  %1387 = vmatprep.subr.mxu0 0.0
  %1388 = vmatpush1.msra.mxu0 0.0
  %1389 = vmatprep.subr.mxu0 0.0
  %1390 = vmatpush1.msra.mxu0 0.0
  %1391 = vmatprep.subr.mxu0 0.0
  %1392 = vmatpush1.msra.mxu0 0.0
  %1393 = vmatprep.subr.mxu0 0.0
  %1394 = vmatpush1.msra.mxu0 0.0
  %1395 = vmatprep.subr.mxu0 0.0
  %1396 = vmatpush1.msra.mxu0 0.0
  %1397 = vmatprep.subr.mxu0 0.0
  %1398 = vmatpush1.msra.mxu0 0.0
  %1399 = vmatprep.subr.mxu0 0.0
  %1400 = vmatpush1.msra.mxu0 0.0
  %1401 = vmatprep.subr.mxu0 0.0
  %1402 = vmatpush1.msra.mxu0 0.0
  %1403 = vmatprep.subr.mxu0 0.0
  %1404 = vmatpush1.msra.mxu0 0.0
  %1405 = vmatprep.subr.mxu0 0.0
  %1406 = vmatpush1.msra.mxu0 0.0
  %1407 = vmatprep.subr.mxu0 0.0
  %1408 = vmatpush1.msra.mxu0 0.0
  %1409 = vmatprep.subr.mxu0 0.0
  %1410 = vmatpush1.msra.mxu0 0.0
  %1411 = vmatprep.subr.mxu0 0.0
  %1412 = vmatpush1.msra.mxu0 0.0
  %1413 = vmatprep.subr.mxu0 0.0
  %1414 = vmatpush1.msra.mxu0 0.0
  %1415 = vmatprep.subr.mxu0 0.0
  %1416 = vmatpush1.msra.mxu0 0.0
  %1417 = vmatprep.subr.mxu0 0.0
  %1418 = vmatpush1.msra.mxu0 0.0
  %1419 = vmatprep.subr.mxu0 0.0
  %1420 = vmatpush1.msra.mxu0 0.0
  %1421 = vmatprep.subr.mxu0 0.0
  %1422 = vmatpush1.msra.mxu0 0.0
  %1423 = vmatprep.subr.mxu0 0.0
  %1424 = vmatpush1.msra.mxu0 0.0
  %1425 = vmatprep.subr.mxu0 0.0
  %1426 = vmatpush1.msra.mxu0 0.0
  %1427 = vmatprep.subr.mxu0 0.0
  %1428 = vmatpush1.msra.mxu0 0.0
  %1429 = vmatprep.mubr.f32.mxu0 0.0
  %1430 = vmatmul.mubr.f32.gmra.mrb[0].mxu0 %v650
  %v1431 = vpop.f32.mrb[0].mxu0
  %v1432 = vadd.f32 0.0, %v1431
  %v1433 = vpop.f32.mrb[0].mxu0
  %1434 = vdwg.mxu0
  %v1435 = vadd.f32 %v1358, %v1432
  %v1436 = vmul.f32 %v821, %v726
  %v1437 = vmul.f32 %v1436, %v730
  %1439 = vrot.lane.b32.xlu0 %v1437, 119
  %v1440 = vpop.permute.xlu0 %1439
  %v1441 = vsel %vm71, %v1440, 0
  %1443 = vmatprep.subr.mxu0 0.0
  %1444 = vmatpush1.msra.mxu0 %v1441
  %1445 = vmatprep.subr.mxu0 0.0
  %1446 = vmatpush1.msra.mxu0 0.0
  %1447 = vmatprep.subr.mxu0 0.0
  %1448 = vmatpush1.msra.mxu0 0.0
  %1449 = vmatprep.subr.mxu0 0.0
  %1450 = vmatpush1.msra.mxu0 0.0
  %1451 = vmatprep.subr.mxu0 0.0
  %1452 = vmatpush1.msra.mxu0 0.0
  %1453 = vmatprep.subr.mxu0 0.0
  %1454 = vmatpush1.msra.mxu0 0.0
  %1455 = vmatprep.subr.mxu0 0.0
  %1456 = vmatpush1.msra.mxu0 0.0
  %1457 = vmatprep.subr.mxu0 0.0
  %1458 = vmatpush1.msra.mxu0 0.0
  %1459 = vmatprep.subr.mxu0 0.0
  %1460 = vmatpush1.msra.mxu0 0.0
  %1461 = vmatprep.subr.mxu0 0.0
  %1462 = vmatpush1.msra.mxu0 0.0
  %1463 = vmatprep.subr.mxu0 0.0
  %1464 = vmatpush1.msra.mxu0 0.0
  %1465 = vmatprep.subr.mxu0 0.0
  %1466 = vmatpush1.msra.mxu0 0.0
  %1467 = vmatprep.subr.mxu0 0.0
  %1468 = vmatpush1.msra.mxu0 0.0
  %1469 = vmatprep.subr.mxu0 0.0
  %1470 = vmatpush1.msra.mxu0 0.0
  %1471 = vmatprep.subr.mxu0 0.0
  %1472 = vmatpush1.msra.mxu0 0.0
  %1473 = vmatprep.subr.mxu0 0.0
  %1474 = vmatpush1.msra.mxu0 0.0
  %1475 = vmatprep.subr.mxu0 0.0
  %1476 = vmatpush1.msra.mxu0 0.0
  %1477 = vmatprep.subr.mxu0 0.0
  %1478 = vmatpush1.msra.mxu0 0.0
  %1479 = vmatprep.subr.mxu0 0.0
  %1480 = vmatpush1.msra.mxu0 0.0
  %1481 = vmatprep.subr.mxu0 0.0
  %1482 = vmatpush1.msra.mxu0 0.0
  %1483 = vmatprep.subr.mxu0 0.0
  %1484 = vmatpush1.msra.mxu0 0.0
  %1485 = vmatprep.subr.mxu0 0.0
  %1486 = vmatpush1.msra.mxu0 0.0
  %1487 = vmatprep.subr.mxu0 0.0
  %1488 = vmatpush1.msra.mxu0 0.0
  %1489 = vmatprep.subr.mxu0 0.0
  %1490 = vmatpush1.msra.mxu0 0.0
  %1491 = vmatprep.subr.mxu0 0.0
  %1492 = vmatpush1.msra.mxu0 0.0
  %1493 = vmatprep.subr.mxu0 0.0
  %1494 = vmatpush1.msra.mxu0 0.0
  %1495 = vmatprep.subr.mxu0 0.0
  %1496 = vmatpush1.msra.mxu0 0.0
  %1497 = vmatprep.subr.mxu0 0.0
  %1498 = vmatpush1.msra.mxu0 0.0
  %1499 = vmatprep.subr.mxu0 0.0
  %1500 = vmatpush1.msra.mxu0 0.0
  %1501 = vmatprep.subr.mxu0 0.0
  %1502 = vmatpush1.msra.mxu0 0.0
  %1503 = vmatprep.subr.mxu0 0.0
  %1504 = vmatpush1.msra.mxu0 0.0
  %1505 = vmatprep.subr.mxu0 0.0
  %1506 = vmatpush1.msra.mxu0 0.0
  %1507 = vmatprep.mubr.f32.mxu0 0.0
  %1508 = vmatmul.mubr.f32.gmra.mrb[0].mxu0 %v737
  %v1509 = vpop.f32.mrb[0].mxu0
  %v1510 = vadd.f32 0.0, %v1509
  %v1511 = vpop.f32.mrb[0].mxu0
  %1512 = vdwg.mxu0
  %v1513 = vadd.f32 %v1435, %v1510
  %s1514 = scalar_lea.vmem %s3, 4
  %1515 = vst.msk [vmem:[%s1514] sm:$0xf] %vm812, %v1513
  // Predicated region
  $region14: #{first_octave_conv.3} parent=0 // pred_check
    _
  $region15: #{first_octave_conv.3} parent=0 // pred_check_branch
    %1517 = sbr.rel (0) target = $region17
  $region16: #{first_octave_conv.3} parent=0 // pred_region
    _
  $region17: #{first_octave_conv.3} parent=0 // pred_fallthru
    _
  // Predicated region
  $region18: #{first_octave_conv.3} parent=0 // pred_check
    _
  $region19: #{first_octave_conv.3} parent=0 // pred_check_branch
    %1519 = sbr.rel (0) target = $region21
  $region20: #{first_octave_conv.3} parent=0 // pred_region
    _
  $region21: #{first_octave_conv.3} parent=0 // pred_fallthru
    _

// kernel: first_octave_conv.2
$region0: #{first_octave_conv.2}
  #allocation0 [shape = 'u32[]', space=smem, size = 0x4, offset = 0x4, fixed_abs, tag = 'smem constant byte address 0x4 - core index']
  #allocation1 [shape = 'u32[144,128]{1,0:T(1,128)}', space=vmem, size = 0x12000, scoped, tag = 'internal scratch']
  %s0 = inlined_call_operand.vmem [shape: f32[2,4,256], index: 0, kind: input, shape index: {}]
  %s1 = inlined_call_operand.vmem [shape: f32[9,4,4], index: 1, kind: input, shape index: {}]
  %s2 = inlined_call_operand.vmem [shape: f32[1,256], index: 2, kind: input, shape index: {}]
  %s3 = inlined_call_operand.hbm [shape: f32[256,64], index: 3, kind: input, shape index: {}]
  %s4 = inlined_call_operand.vmem [shape: f32[2,4,256], index: 4, kind: output, shape index: {0}]
  %s5 = inlined_call_operand.vmem [shape: f32[2,4,64], index: 5, kind: output, shape index: {1}]
  %6 = xla_tuple %s4, %s5
  %s7 = sld [smem:[#allocation0]]
  $region38: #{first_octave_conv.2} parent=0
    _
  %s9 = ssub.s32 1, %s7
  %s10 = scalar_select 0, %s9, %s7
  $region1: #{first_octave_conv.2} parent=0
    #allocation2 [shape = 'u8[131072]{0}', space=vmem, size = 0x20000, scoped, tag = 'input window, operand 3, single buffered']
    #allocation3 [shape = 's32[1]{0}', space=sflag, size = 0x4, scoped, tag = 'scoped memory for first_octave_conv.2']
    %11 = vsyncpa [#allocation3], 0
    // Predicated region
    $region2: #{first_octave_conv.2} parent=1 // pred_check
      _
    $region3: #{first_octave_conv.2} parent=1 // pred_check_branch
      %13 = sbr.rel (0) target = $region5
    $region4: #{first_octave_conv.2} parent=1 // pred_region
      _
    $region5: #{first_octave_conv.2} parent=1 // pred_fallthru
      _
    // Predicated region
    $region6: #{first_octave_conv.2} parent=1 // pred_check
      _
    $region7: #{first_octave_conv.2} parent=1 // pred_check_branch
      %15 = sbr.rel (0) target = $region9
    $region8: #{first_octave_conv.2} parent=1 // pred_region
      _
    $region9: #{first_octave_conv.2} parent=1 // pred_fallthru
      _
    // Predicated region
    $region10: #{first_octave_conv.2} parent=1 // pred_check
      _
    $region11: #{first_octave_conv.2} parent=1 // pred_check_branch
      %17 = sbr.rel (0) target = $region13
    $region12: #{first_octave_conv.2} parent=1 // pred_region
      _
    $region13: #{first_octave_conv.2} parent=1 // pred_fallthru
      _
    // Predicated region
    $region14: #{first_octave_conv.2} parent=1 // pred_check
      _
    $region15: #{first_octave_conv.2} parent=1 // pred_check_branch
      %19 = sbr.rel (0) target = $region17
    $region16: #{first_octave_conv.2} parent=1 // pred_region
      %s21 = ssub.s32 4096, 4096
      %22 = vsyncadd [#allocation3], %s21
      %s23 = sshll.u32 [#allocation2], 4
      %s24 = int_to_ptr.vmem [resolvable:$true] %s23
      %29 = dma.hbm_to_vmem [thread:$0]  %s3, 4096, %s24, [#allocation3], 128, 128, 8
    $region17: #{first_octave_conv.2} parent=1 // pred_fallthru
      _
    // Predicated region
    $region18: #{first_octave_conv.2} parent=1 // pred_check
      _
    $region19: #{first_octave_conv.2} parent=1 // pred_check_branch
      %31 = sbr.rel (0) target = $region21
    $region20: #{first_octave_conv.2} parent=1 // pred_region
      %32 = dma.done [#allocation3], 4096
    $region21: #{first_octave_conv.2} parent=1 // pred_fallthru
      _
    %v33 = vld [vmem:[%s1] sm:$0xf]
    %v34 = vld [vmem:[%s1 + $0x4] sm:$0xf]
    %v35 = vld [vmem:[%s1 + $0x8] sm:$0xf]
    %v36 = vld [vmem:[%s1 + $0xc] sm:$0xf]
    %v37 = vld [vmem:[%s1 + $0x10] sm:$0xf]
    %v38 = vld [vmem:[%s1 + $0x14] sm:$0xf]
    %v39 = vld [vmem:[%s1 + $0x18] sm:$0xf]
    %v40 = vld [vmem:[%s1 + $0x1c] sm:$0xf]
    %v41 = vld [vmem:[%s1 + $0x20] sm:$0xf]
    %v42 = vld [vmem:[#allocation2] sm:$0xff]
    %v43 = vld [vmem:[#allocation2 + $0x8] sm:$0xff]
    %v44 = vld [vmem:[#allocation2 + $0x10] sm:$0xff]
    %v45 = vld [vmem:[#allocation2 + $0x18] sm:$0xff]
    %v46 = vld [vmem:[#allocation2 + $0x20] sm:$0xff]
    %v47 = vld [vmem:[#allocation2 + $0x28] sm:$0xff]
    %v48 = vld [vmem:[#allocation2 + $0x30] sm:$0xff]
    %v49 = vld [vmem:[#allocation2 + $0x38] sm:$0xff]
    %v50 = vld [vmem:[#allocation2 + $0x40] sm:$0xff]
    %v51 = vld [vmem:[#allocation2 + $0x48] sm:$0xff]
    %v52 = vld [vmem:[#allocation2 + $0x50] sm:$0xff]
    %v53 = vld [vmem:[#allocation2 + $0x58] sm:$0xff]
    %v54 = vld [vmem:[#allocation2 + $0x60] sm:$0xff]
    %v55 = vld [vmem:[#allocation2 + $0x68] sm:$0xff]
    %v56 = vld [vmem:[#allocation2 + $0x70] sm:$0xff]
    %v57 = vld [vmem:[#allocation2 + $0x78] sm:$0xff]
    %v58 = vld [vmem:[#allocation2 + $0x80] sm:$0xff]
    %v59 = vld [vmem:[#allocation2 + $0x88] sm:$0xff]
    %v60 = vld [vmem:[#allocation2 + $0x90] sm:$0xff]
    %v61 = vld [vmem:[#allocation2 + $0x98] sm:$0xff]
    %v62 = vld [vmem:[#allocation2 + $0xa0] sm:$0xff]
    %v63 = vld [vmem:[#allocation2 + $0xa8] sm:$0xff]
    %v64 = vld [vmem:[#allocation2 + $0xb0] sm:$0xff]
    %v65 = vld [vmem:[#allocation2 + $0xb8] sm:$0xff]
    %v66 = vld [vmem:[#allocation2 + $0xc0] sm:$0xff]
    %v67 = vld [vmem:[#allocation2 + $0xc8] sm:$0xff]
    %v68 = vld [vmem:[#allocation2 + $0xd0] sm:$0xff]
    %v69 = vld [vmem:[#allocation2 + $0xd8] sm:$0xff]
    %v70 = vld [vmem:[#allocation2 + $0xe0] sm:$0xff]
    %v71 = vld [vmem:[#allocation2 + $0xe8] sm:$0xff]
    %v72 = vld [vmem:[#allocation2 + $0xf0] sm:$0xff]
    %v73 = vld [vmem:[#allocation2 + $0xf8] sm:$0xff]
    %v74 = vld [vmem:[%s2] sm:$0x3]
    %v75 = vlaneseq
    %v76 = vand.u32 %v75, 127
    %v77 = vadd.s32 %v76, 128
    %vm78 = vcmp.ge.s32.totalorder %v76, 16
    %vm79 = vcmp.ge.s32.totalorder %v77, 16
    %v80 = vsel %vm78, 1, 0
    %v81 = vsel %vm79, 1, 0
    %v82 = vcvt.s32.f32 %v80
    %v83 = vcvt.s32.f32 %v81
    %vm84 = vcmp.lt.s32.totalorder %v76, 240
    %vm85 = vcmp.lt.s32.totalorder %v77, 240
    %v86 = vsel %vm84, 1, 0
    %v87 = vsel %vm85, 1, 0
    %v88 = vcvt.s32.f32 %v86
    %v89 = vcvt.s32.f32 %v87
    %v91 = vlaneseq
    %v92 = vshrl.u32 %v91, 7
    %v93 = vsub.s32 0, %v92
    %v94 = vrot.slane %v74, %v93
    %v95 = vlaneseq
    %v96 = vshrl.u32 %v95, 7
    %v97 = vsub.s32 1, %v96
    %v98 = vrot.slane %v74, %v97
    %101 = vrot.lane.b32.xlu0 %v94, 127
    %v102 = vpop.permute.xlu0 %101
    %103 = vrot.lane.b32.xlu0 %v98, 127
    %v104 = vpop.permute.xlu0 %103
    %vm105 = vcmp.lt.s32.totalorder %v76, 127
    %v106 = vsel %vm105, %v102, %v104
    %v107 = vsel %vm105, %v104, %v102
    %v108 = vld [vmem:[%s0] sm:$0xff]
    %v110 = vcombine.high %v108, %v108
    %112 = vrot.lane.b32.xlu0 %v108, 17
    %v113 = vpop.permute.xlu0 %112
    %114 = vrot.lane.b32.xlu0 %v110, 17
    %v115 = vpop.permute.xlu0 %114
    %vm116 = vcmp.lt.s32.totalorder %v76, 17
    %v117 = vsel %vm116, %v113, %v115
    %v118 = vsel %vm116, %v115, %v113
    %v119 = vmul.f32 %v118, %v82
    %v120 = vmul.f32 %v117, %v83
    %v121 = vmul.f32 %v119, %v94
    %v122 = vmul.f32 %v120, %v98
    %123 = vrot.lane.b32.xlu0 %v108, 16
    %v124 = vpop.permute.xlu0 %123
    %125 = vrot.lane.b32.xlu0 %v110, 16
    %v126 = vpop.permute.xlu0 %125
    %vm127 = vcmp.lt.s32.totalorder %v76, 16
    %v128 = vsel %vm127, %v124, %v126
    %v129 = vsel %vm127, %v126, %v124
    %v130 = vmul.f32 %v129, %v82
    %v131 = vmul.f32 %v128, %v83
    %vm132 = vcmask 31744
    %v134 = vsel %vm132, %v34, 0
    %vm136 = vcmask 1043456
    %v138 = vsel %vm136, %v130, 0
    %v141 = vsel %vm136, %v131, 0
    %143 = vmatprep.subr.mxu0 %v141
    %144 = vmatpush1.msra.mxu0 %v138
    %145 = vmatprep.subr.mxu0 0.0
    %146 = vmatpush1.msra.mxu0 0.0
    %147 = vmatprep.subr.mxu0 0.0
    %148 = vmatpush1.msra.mxu0 0.0
    %149 = vmatprep.subr.mxu0 0.0
    %150 = vmatpush1.msra.mxu0 0.0
    %151 = vmatprep.subr.mxu0 0.0
    %152 = vmatpush1.msra.mxu0 0.0
    %153 = vmatprep.subr.mxu0 0.0
    %154 = vmatpush1.msra.mxu0 0.0
    %155 = vmatprep.subr.mxu0 0.0
    %156 = vmatpush1.msra.mxu0 0.0
    %157 = vmatprep.subr.mxu0 0.0
    %158 = vmatpush1.msra.mxu0 0.0
    %159 = vmatprep.subr.mxu0 0.0
    %160 = vmatpush1.msra.mxu0 0.0
    %161 = vmatprep.subr.mxu0 0.0
    %162 = vmatpush1.msra.mxu0 0.0
    %163 = vmatprep.subr.mxu0 0.0
    %164 = vmatpush1.msra.mxu0 0.0
    %165 = vmatprep.subr.mxu0 0.0
    %166 = vmatpush1.msra.mxu0 0.0
    %167 = vmatprep.subr.mxu0 0.0
    %168 = vmatpush1.msra.mxu0 0.0
    %169 = vmatprep.subr.mxu0 0.0
    %170 = vmatpush1.msra.mxu0 0.0
    %171 = vmatprep.subr.mxu0 0.0
    %172 = vmatpush1.msra.mxu0 0.0
    %173 = vmatprep.subr.mxu0 0.0
    %174 = vmatpush1.msra.mxu0 0.0
    %175 = vmatprep.subr.mxu0 0.0
    %176 = vmatpush1.msra.mxu0 0.0
    %177 = vmatprep.subr.mxu0 0.0
    %178 = vmatpush1.msra.mxu0 0.0
    %179 = vmatprep.subr.mxu0 0.0
    %180 = vmatpush1.msra.mxu0 0.0
    %181 = vmatprep.subr.mxu0 0.0
    %182 = vmatpush1.msra.mxu0 0.0
    %183 = vmatprep.subr.mxu0 0.0
    %184 = vmatpush1.msra.mxu0 0.0
    %185 = vmatprep.subr.mxu0 0.0
    %186 = vmatpush1.msra.mxu0 0.0
    %187 = vmatprep.subr.mxu0 0.0
    %188 = vmatpush1.msra.mxu0 0.0
    %189 = vmatprep.subr.mxu0 0.0
    %190 = vmatpush1.msra.mxu0 0.0
    %191 = vmatprep.subr.mxu0 0.0
    %192 = vmatpush1.msra.mxu0 0.0
    %193 = vmatprep.subr.mxu0 0.0
    %194 = vmatpush1.msra.mxu0 0.0
    %195 = vmatprep.subr.mxu0 0.0
    %196 = vmatpush1.msra.mxu0 0.0
    %197 = vmatprep.subr.mxu0 0.0
    %198 = vmatpush1.msra.mxu0 0.0
    %199 = vmatprep.subr.mxu0 0.0
    %200 = vmatpush1.msra.mxu0 0.0
    %201 = vmatprep.subr.mxu0 0.0
    %202 = vmatpush1.msra.mxu0 0.0
    %203 = vmatprep.subr.mxu0 0.0
    %204 = vmatpush1.msra.mxu0 0.0
    %205 = vmatprep.subr.mxu0 0.0
    %206 = vmatpush1.msra.mxu0 0.0
    %207 = vmatprep.mubr.f32.mxu0 0.0
    %208 = vmatmul.mubr.f32.gmra.mrb[0].mxu0 %v134
    %v209 = vpop.f32.mrb[0].mxu0
    %v210 = vadd.f32 0.0, %v209
    %v211 = vpop.f32.mrb[0].mxu0
    %v212 = vadd.f32 0.0, %v211
    %213 = vdwg.mxu0
    %v215 = vsel %vm132, %v33, 0
    %v218 = vsel %vm136, %v121, 0
    %v221 = vsel %vm136, %v122, 0
    %223 = vmatprep.subr.mxu0 %v221
    %224 = vmatpush1.msra.mxu0 %v218
    %225 = vmatprep.subr.mxu0 0.0
    %226 = vmatpush1.msra.mxu0 0.0
    %227 = vmatprep.subr.mxu0 0.0
    %228 = vmatpush1.msra.mxu0 0.0
    %229 = vmatprep.subr.mxu0 0.0
    %230 = vmatpush1.msra.mxu0 0.0
    %231 = vmatprep.subr.mxu0 0.0
    %232 = vmatpush1.msra.mxu0 0.0
    %233 = vmatprep.subr.mxu0 0.0
    %234 = vmatpush1.msra.mxu0 0.0
    %235 = vmatprep.subr.mxu0 0.0
    %236 = vmatpush1.msra.mxu0 0.0
    %237 = vmatprep.subr.mxu0 0.0
    %238 = vmatpush1.msra.mxu0 0.0
    %239 = vmatprep.subr.mxu0 0.0
    %240 = vmatpush1.msra.mxu0 0.0
    %241 = vmatprep.subr.mxu0 0.0
    %242 = vmatpush1.msra.mxu0 0.0
    %243 = vmatprep.subr.mxu0 0.0
    %244 = vmatpush1.msra.mxu0 0.0
    %245 = vmatprep.subr.mxu0 0.0
    %246 = vmatpush1.msra.mxu0 0.0
    %247 = vmatprep.subr.mxu0 0.0
    %248 = vmatpush1.msra.mxu0 0.0
    %249 = vmatprep.subr.mxu0 0.0
    %250 = vmatpush1.msra.mxu0 0.0
    %251 = vmatprep.subr.mxu0 0.0
    %252 = vmatpush1.msra.mxu0 0.0
    %253 = vmatprep.subr.mxu0 0.0
    %254 = vmatpush1.msra.mxu0 0.0
    %255 = vmatprep.subr.mxu0 0.0
    %256 = vmatpush1.msra.mxu0 0.0
    %257 = vmatprep.subr.mxu0 0.0
    %258 = vmatpush1.msra.mxu0 0.0
    %259 = vmatprep.subr.mxu0 0.0
    %260 = vmatpush1.msra.mxu0 0.0
    %261 = vmatprep.subr.mxu0 0.0
    %262 = vmatpush1.msra.mxu0 0.0
    %263 = vmatprep.subr.mxu0 0.0
    %264 = vmatpush1.msra.mxu0 0.0
    %265 = vmatprep.subr.mxu0 0.0
    %266 = vmatpush1.msra.mxu0 0.0
    %267 = vmatprep.subr.mxu0 0.0
    %268 = vmatpush1.msra.mxu0 0.0
    %269 = vmatprep.subr.mxu0 0.0
    %270 = vmatpush1.msra.mxu0 0.0
    %271 = vmatprep.subr.mxu0 0.0
    %272 = vmatpush1.msra.mxu0 0.0
    %273 = vmatprep.subr.mxu0 0.0
    %274 = vmatpush1.msra.mxu0 0.0
    %275 = vmatprep.subr.mxu0 0.0
    %276 = vmatpush1.msra.mxu0 0.0
    %277 = vmatprep.subr.mxu0 0.0
    %278 = vmatpush1.msra.mxu0 0.0
    %279 = vmatprep.subr.mxu0 0.0
    %280 = vmatpush1.msra.mxu0 0.0
    %281 = vmatprep.subr.mxu0 0.0
    %282 = vmatpush1.msra.mxu0 0.0
    %283 = vmatprep.subr.mxu0 0.0
    %284 = vmatpush1.msra.mxu0 0.0
    %285 = vmatprep.subr.mxu0 0.0
    %286 = vmatpush1.msra.mxu0 0.0
    %287 = vmatprep.mubr.f32.mxu0 0.0
    %288 = vmatmul.mubr.f32.gmra.mrb[0].mxu0 %v215
    %v289 = vpop.f32.mrb[0].mxu0
    %v290 = vadd.f32 %v210, %v289
    %v291 = vpop.f32.mrb[0].mxu0
    %v292 = vadd.f32 %v212, %v291
    %293 = vdwg.mxu0
    %294 = vrot.lane.b32.xlu0 %v108, 15
    %v295 = vpop.permute.xlu0 %294
    %296 = vrot.lane.b32.xlu0 %v110, 15
    %v297 = vpop.permute.xlu0 %296
    %vm298 = vcmp.lt.s32.totalorder %v76, 15
    %v299 = vsel %vm298, %v295, %v297
    %v300 = vsel %vm298, %v297, %v295
    %v301 = vmul.f32 %v300, %v82
    %v302 = vmul.f32 %v299, %v83
    %v303 = vlaneseq
    %v304 = vshrl.u32 %v303, 7
    %v305 = vsub.s32 0, %v304
    %v306 = vrot.slane %v106, %v305
    %v307 = vlaneseq
    %v308 = vshrl.u32 %v307, 7
    %v309 = vsub.s32 0, %v308
    %v310 = vrot.slane %v107, %v309
    %v311 = vmul.f32 %v301, %v306
    %v312 = vmul.f32 %v302, %v310
    %v314 = vsel %vm132, %v35, 0
    %v317 = vsel %vm136, %v311, 0
    %v320 = vsel %vm136, %v312, 0
    %322 = vmatprep.subr.mxu0 %v320
    %323 = vmatpush1.msra.mxu0 %v317
    %324 = vmatprep.subr.mxu0 0.0
    %325 = vmatpush1.msra.mxu0 0.0
    %326 = vmatprep.subr.mxu0 0.0
    %327 = vmatpush1.msra.mxu0 0.0
    %328 = vmatprep.subr.mxu0 0.0
    %329 = vmatpush1.msra.mxu0 0.0
    %330 = vmatprep.subr.mxu0 0.0
    %331 = vmatpush1.msra.mxu0 0.0
    %332 = vmatprep.subr.mxu0 0.0
    %333 = vmatpush1.msra.mxu0 0.0
    %334 = vmatprep.subr.mxu0 0.0
    %335 = vmatpush1.msra.mxu0 0.0
    %336 = vmatprep.subr.mxu0 0.0
    %337 = vmatpush1.msra.mxu0 0.0
    %338 = vmatprep.subr.mxu0 0.0
    %339 = vmatpush1.msra.mxu0 0.0
    %340 = vmatprep.subr.mxu0 0.0
    %341 = vmatpush1.msra.mxu0 0.0
    %342 = vmatprep.subr.mxu0 0.0
    %343 = vmatpush1.msra.mxu0 0.0
    %344 = vmatprep.subr.mxu0 0.0
    %345 = vmatpush1.msra.mxu0 0.0
    %346 = vmatprep.subr.mxu0 0.0
    %347 = vmatpush1.msra.mxu0 0.0
    %348 = vmatprep.subr.mxu0 0.0
    %349 = vmatpush1.msra.mxu0 0.0
    %350 = vmatprep.subr.mxu0 0.0
    %351 = vmatpush1.msra.mxu0 0.0
    %352 = vmatprep.subr.mxu0 0.0
    %353 = vmatpush1.msra.mxu0 0.0
    %354 = vmatprep.subr.mxu0 0.0
    %355 = vmatpush1.msra.mxu0 0.0
    %356 = vmatprep.subr.mxu0 0.0
    %357 = vmatpush1.msra.mxu0 0.0
    %358 = vmatprep.subr.mxu0 0.0
    %359 = vmatpush1.msra.mxu0 0.0
    %360 = vmatprep.subr.mxu0 0.0
    %361 = vmatpush1.msra.mxu0 0.0
    %362 = vmatprep.subr.mxu0 0.0
    %363 = vmatpush1.msra.mxu0 0.0
    %364 = vmatprep.subr.mxu0 0.0
    %365 = vmatpush1.msra.mxu0 0.0
    %366 = vmatprep.subr.mxu0 0.0
    %367 = vmatpush1.msra.mxu0 0.0
    %368 = vmatprep.subr.mxu0 0.0
    %369 = vmatpush1.msra.mxu0 0.0
    %370 = vmatprep.subr.mxu0 0.0
    %371 = vmatpush1.msra.mxu0 0.0
    %372 = vmatprep.subr.mxu0 0.0
    %373 = vmatpush1.msra.mxu0 0.0
    %374 = vmatprep.subr.mxu0 0.0
    %375 = vmatpush1.msra.mxu0 0.0
    %376 = vmatprep.subr.mxu0 0.0
    %377 = vmatpush1.msra.mxu0 0.0
    %378 = vmatprep.subr.mxu0 0.0
    %379 = vmatpush1.msra.mxu0 0.0
    %380 = vmatprep.subr.mxu0 0.0
    %381 = vmatpush1.msra.mxu0 0.0
    %382 = vmatprep.subr.mxu0 0.0
    %383 = vmatpush1.msra.mxu0 0.0
    %384 = vmatprep.subr.mxu0 0.0
    %385 = vmatpush1.msra.mxu0 0.0
    %386 = vmatprep.mubr.f32.mxu0 0.0
    %387 = vmatmul.mubr.f32.gmra.mrb[0].mxu0 %v314
    %v388 = vpop.f32.mrb[0].mxu0
    %v389 = vadd.f32 0.0, %v388
    %v390 = vpop.f32.mrb[0].mxu0
    %v391 = vadd.f32 0.0, %v390
    %392 = vdwg.mxu0
    %v393 = vadd.f32 %v290, %v389
    %v394 = vadd.f32 %v292, %v391
    %395 = vrot.lane.b32.xlu0 %v108, 1
    %v396 = vpop.permute.xlu0 %395
    %397 = vrot.lane.b32.xlu0 %v110, 1
    %v398 = vpop.permute.xlu0 %397
    %vm399 = vcmp.lt.s32.totalorder %v76, 1
    %v400 = vsel %vm399, %v396, %v398
    %v401 = vsel %vm399, %v398, %v396
    %v402 = vmul.f32 %v401, %v94
    %v403 = vmul.f32 %v400, %v98
    %v405 = vsel %vm132, %v36, 0
    %v408 = vsel %vm136, %v402, 0
    %v411 = vsel %vm136, %v403, 0
    %413 = vmatprep.subr.mxu0 %v411
    %414 = vmatpush1.msra.mxu0 %v408
    %415 = vmatprep.subr.mxu0 0.0
    %416 = vmatpush1.msra.mxu0 0.0
    %417 = vmatprep.subr.mxu0 0.0
    %418 = vmatpush1.msra.mxu0 0.0
    %419 = vmatprep.subr.mxu0 0.0
    %420 = vmatpush1.msra.mxu0 0.0
    %421 = vmatprep.subr.mxu0 0.0
    %422 = vmatpush1.msra.mxu0 0.0
    %423 = vmatprep.subr.mxu0 0.0
    %424 = vmatpush1.msra.mxu0 0.0
    %425 = vmatprep.subr.mxu0 0.0
    %426 = vmatpush1.msra.mxu0 0.0
    %427 = vmatprep.subr.mxu0 0.0
    %428 = vmatpush1.msra.mxu0 0.0
    %429 = vmatprep.subr.mxu0 0.0
    %430 = vmatpush1.msra.mxu0 0.0
    %431 = vmatprep.subr.mxu0 0.0
    %432 = vmatpush1.msra.mxu0 0.0
    %433 = vmatprep.subr.mxu0 0.0
    %434 = vmatpush1.msra.mxu0 0.0
    %435 = vmatprep.subr.mxu0 0.0
    %436 = vmatpush1.msra.mxu0 0.0
    %437 = vmatprep.subr.mxu0 0.0
    %438 = vmatpush1.msra.mxu0 0.0
    %439 = vmatprep.subr.mxu0 0.0
    %440 = vmatpush1.msra.mxu0 0.0
    %441 = vmatprep.subr.mxu0 0.0
    %442 = vmatpush1.msra.mxu0 0.0
    %443 = vmatprep.subr.mxu0 0.0
    %444 = vmatpush1.msra.mxu0 0.0
    %445 = vmatprep.subr.mxu0 0.0
    %446 = vmatpush1.msra.mxu0 0.0
    %447 = vmatprep.subr.mxu0 0.0
    %448 = vmatpush1.msra.mxu0 0.0
    %449 = vmatprep.subr.mxu0 0.0
    %450 = vmatpush1.msra.mxu0 0.0
    %451 = vmatprep.subr.mxu0 0.0
    %452 = vmatpush1.msra.mxu0 0.0
    %453 = vmatprep.subr.mxu0 0.0
    %454 = vmatpush1.msra.mxu0 0.0
    %455 = vmatprep.subr.mxu0 0.0
    %456 = vmatpush1.msra.mxu0 0.0
    %457 = vmatprep.subr.mxu0 0.0
    %458 = vmatpush1.msra.mxu0 0.0
    %459 = vmatprep.subr.mxu0 0.0
    %460 = vmatpush1.msra.mxu0 0.0
    %461 = vmatprep.subr.mxu0 0.0
    %462 = vmatpush1.msra.mxu0 0.0
    %463 = vmatprep.subr.mxu0 0.0
    %464 = vmatpush1.msra.mxu0 0.0
    %465 = vmatprep.subr.mxu0 0.0
    %466 = vmatpush1.msra.mxu0 0.0
    %467 = vmatprep.subr.mxu0 0.0
    %468 = vmatpush1.msra.mxu0 0.0
    %469 = vmatprep.subr.mxu0 0.0
    %470 = vmatpush1.msra.mxu0 0.0
    %471 = vmatprep.subr.mxu0 0.0
    %472 = vmatpush1.msra.mxu0 0.0
    %473 = vmatprep.subr.mxu0 0.0
    %474 = vmatpush1.msra.mxu0 0.0
    %475 = vmatprep.subr.mxu0 0.0
    %476 = vmatpush1.msra.mxu0 0.0
    %477 = vmatprep.mubr.f32.mxu0 0.0
    %478 = vmatmul.mubr.f32.gmra.mrb[0].mxu0 %v405
    %v479 = vpop.f32.mrb[0].mxu0
    %v480 = vadd.f32 0.0, %v479
    %v481 = vpop.f32.mrb[0].mxu0
    %v482 = vadd.f32 0.0, %v481
    %483 = vdwg.mxu0
    %v484 = vadd.f32 %v393, %v480
    %v485 = vadd.f32 %v394, %v482
    %v487 = vsel %vm132, %v37, 0
    %v489 = vsel %vm136, %v108, 0
    %v491 = vsel %vm136, %v110, 0
    %493 = vmatprep.subr.mxu0 %v491
    %494 = vmatpush1.msra.mxu0 %v489
    %495 = vmatprep.subr.mxu0 0.0
    %496 = vmatpush1.msra.mxu0 0.0
    %497 = vmatprep.subr.mxu0 0.0
    %498 = vmatpush1.msra.mxu0 0.0
    %499 = vmatprep.subr.mxu0 0.0
    %500 = vmatpush1.msra.mxu0 0.0
    %501 = vmatprep.subr.mxu0 0.0
    %502 = vmatpush1.msra.mxu0 0.0
    %503 = vmatprep.subr.mxu0 0.0
    %504 = vmatpush1.msra.mxu0 0.0
    %505 = vmatprep.subr.mxu0 0.0
    %506 = vmatpush1.msra.mxu0 0.0
    %507 = vmatprep.subr.mxu0 0.0
    %508 = vmatpush1.msra.mxu0 0.0
    %509 = vmatprep.subr.mxu0 0.0
    %510 = vmatpush1.msra.mxu0 0.0
    %511 = vmatprep.subr.mxu0 0.0
    %512 = vmatpush1.msra.mxu0 0.0
    %513 = vmatprep.subr.mxu0 0.0
    %514 = vmatpush1.msra.mxu0 0.0
    %515 = vmatprep.subr.mxu0 0.0
    %516 = vmatpush1.msra.mxu0 0.0
    %517 = vmatprep.subr.mxu0 0.0
    %518 = vmatpush1.msra.mxu0 0.0
    %519 = vmatprep.subr.mxu0 0.0
    %520 = vmatpush1.msra.mxu0 0.0
    %521 = vmatprep.subr.mxu0 0.0
    %522 = vmatpush1.msra.mxu0 0.0
    %523 = vmatprep.subr.mxu0 0.0
    %524 = vmatpush1.msra.mxu0 0.0
    %525 = vmatprep.subr.mxu0 0.0
    %526 = vmatpush1.msra.mxu0 0.0
    %527 = vmatprep.subr.mxu0 0.0
    %528 = vmatpush1.msra.mxu0 0.0
    %529 = vmatprep.subr.mxu0 0.0
    %530 = vmatpush1.msra.mxu0 0.0
    %531 = vmatprep.subr.mxu0 0.0
    %532 = vmatpush1.msra.mxu0 0.0
    %533 = vmatprep.subr.mxu0 0.0
    %534 = vmatpush1.msra.mxu0 0.0
    %535 = vmatprep.subr.mxu0 0.0
    %536 = vmatpush1.msra.mxu0 0.0
    %537 = vmatprep.subr.mxu0 0.0
    %538 = vmatpush1.msra.mxu0 0.0
    %539 = vmatprep.subr.mxu0 0.0
    %540 = vmatpush1.msra.mxu0 0.0
    %541 = vmatprep.subr.mxu0 0.0
    %542 = vmatpush1.msra.mxu0 0.0
    %543 = vmatprep.subr.mxu0 0.0
    %544 = vmatpush1.msra.mxu0 0.0
    %545 = vmatprep.subr.mxu0 0.0
    %546 = vmatpush1.msra.mxu0 0.0
    %547 = vmatprep.subr.mxu0 0.0
    %548 = vmatpush1.msra.mxu0 0.0
    %549 = vmatprep.subr.mxu0 0.0
    %550 = vmatpush1.msra.mxu0 0.0
    %551 = vmatprep.subr.mxu0 0.0
    %552 = vmatpush1.msra.mxu0 0.0
    %553 = vmatprep.subr.mxu0 0.0
    %554 = vmatpush1.msra.mxu0 0.0
    %555 = vmatprep.subr.mxu0 0.0
    %556 = vmatpush1.msra.mxu0 0.0
    %557 = vmatprep.mubr.f32.mxu0 0.0
    %558 = vmatmul.mubr.f32.gmra.mrb[0].mxu0 %v487
    %v559 = vpop.f32.mrb[0].mxu0
    %v560 = vadd.f32 0.0, %v559
    %v561 = vpop.f32.mrb[0].mxu0
    %v562 = vadd.f32 0.0, %v561
    %563 = vdwg.mxu0
    %v564 = vadd.f32 %v484, %v560
    %v565 = vadd.f32 %v485, %v562
    %566 = vrot.lane.b32.xlu0 %v108, 127
    %v567 = vpop.permute.xlu0 %566
    %568 = vrot.lane.b32.xlu0 %v110, 127
    %v569 = vpop.permute.xlu0 %568
    %v570 = vsel %vm105, %v567, %v569
    %v571 = vsel %vm105, %v569, %v567
    %v572 = vmul.f32 %v570, %v306
    %v573 = vmul.f32 %v571, %v310
    %v575 = vsel %vm132, %v38, 0
    %v578 = vsel %vm136, %v572, 0
    %v581 = vsel %vm136, %v573, 0
    %583 = vmatprep.subr.mxu0 %v581
    %584 = vmatpush1.msra.mxu0 %v578
    %585 = vmatprep.subr.mxu0 0.0
    %586 = vmatpush1.msra.mxu0 0.0
    %587 = vmatprep.subr.mxu0 0.0
    %588 = vmatpush1.msra.mxu0 0.0
    %589 = vmatprep.subr.mxu0 0.0
    %590 = vmatpush1.msra.mxu0 0.0
    %591 = vmatprep.subr.mxu0 0.0
    %592 = vmatpush1.msra.mxu0 0.0
    %593 = vmatprep.subr.mxu0 0.0
    %594 = vmatpush1.msra.mxu0 0.0
    %595 = vmatprep.subr.mxu0 0.0
    %596 = vmatpush1.msra.mxu0 0.0
    %597 = vmatprep.subr.mxu0 0.0
    %598 = vmatpush1.msra.mxu0 0.0
    %599 = vmatprep.subr.mxu0 0.0
    %600 = vmatpush1.msra.mxu0 0.0
    %601 = vmatprep.subr.mxu0 0.0
    %602 = vmatpush1.msra.mxu0 0.0
    %603 = vmatprep.subr.mxu0 0.0
    %604 = vmatpush1.msra.mxu0 0.0
    %605 = vmatprep.subr.mxu0 0.0
    %606 = vmatpush1.msra.mxu0 0.0
    %607 = vmatprep.subr.mxu0 0.0
    %608 = vmatpush1.msra.mxu0 0.0
    %609 = vmatprep.subr.mxu0 0.0
    %610 = vmatpush1.msra.mxu0 0.0
    %611 = vmatprep.subr.mxu0 0.0
    %612 = vmatpush1.msra.mxu0 0.0
    %613 = vmatprep.subr.mxu0 0.0
    %614 = vmatpush1.msra.mxu0 0.0
    %615 = vmatprep.subr.mxu0 0.0
    %616 = vmatpush1.msra.mxu0 0.0
    %617 = vmatprep.subr.mxu0 0.0
    %618 = vmatpush1.msra.mxu0 0.0
    %619 = vmatprep.subr.mxu0 0.0
    %620 = vmatpush1.msra.mxu0 0.0
    %621 = vmatprep.subr.mxu0 0.0
    %622 = vmatpush1.msra.mxu0 0.0
    %623 = vmatprep.subr.mxu0 0.0
    %624 = vmatpush1.msra.mxu0 0.0
    %625 = vmatprep.subr.mxu0 0.0
    %626 = vmatpush1.msra.mxu0 0.0
    %627 = vmatprep.subr.mxu0 0.0
    %628 = vmatpush1.msra.mxu0 0.0
    %629 = vmatprep.subr.mxu0 0.0
    %630 = vmatpush1.msra.mxu0 0.0
    %631 = vmatprep.subr.mxu0 0.0
    %632 = vmatpush1.msra.mxu0 0.0
    %633 = vmatprep.subr.mxu0 0.0
    %634 = vmatpush1.msra.mxu0 0.0
    %635 = vmatprep.subr.mxu0 0.0
    %636 = vmatpush1.msra.mxu0 0.0
    %637 = vmatprep.subr.mxu0 0.0
    %638 = vmatpush1.msra.mxu0 0.0
    %639 = vmatprep.subr.mxu0 0.0
    %640 = vmatpush1.msra.mxu0 0.0
    %641 = vmatprep.subr.mxu0 0.0
    %642 = vmatpush1.msra.mxu0 0.0
    %643 = vmatprep.subr.mxu0 0.0
    %644 = vmatpush1.msra.mxu0 0.0
    %645 = vmatprep.subr.mxu0 0.0
    %646 = vmatpush1.msra.mxu0 0.0
    %647 = vmatprep.mubr.f32.mxu0 0.0
    %648 = vmatmul.mubr.f32.gmra.mrb[0].mxu0 %v575
    %v649 = vpop.f32.mrb[0].mxu0
    %v650 = vadd.f32 0.0, %v649
    %v651 = vpop.f32.mrb[0].mxu0
    %v652 = vadd.f32 0.0, %v651
    %653 = vdwg.mxu0
    %v654 = vadd.f32 %v564, %v650
    %v655 = vadd.f32 %v565, %v652
    %656 = vrot.lane.b32.xlu0 %v108, 113
    %v657 = vpop.permute.xlu0 %656
    %658 = vrot.lane.b32.xlu0 %v110, 113
    %v659 = vpop.permute.xlu0 %658
    %vm660 = vcmp.lt.s32.totalorder %v76, 113
    %v661 = vsel %vm660, %v657, %v659
    %v662 = vsel %vm660, %v659, %v657
    %v663 = vmul.f32 %v661, %v88
    %v664 = vmul.f32 %v662, %v89
    %v665 = vmul.f32 %v663, %v94
    %v666 = vmul.f32 %v664, %v98
    %v668 = vsel %vm132, %v39, 0
    %v671 = vsel %vm136, %v665, 0
    %v674 = vsel %vm136, %v666, 0
    %676 = vmatprep.subr.mxu0 %v674
    %677 = vmatpush1.msra.mxu0 %v671
    %678 = vmatprep.subr.mxu0 0.0
    %679 = vmatpush1.msra.mxu0 0.0
    %680 = vmatprep.subr.mxu0 0.0
    %681 = vmatpush1.msra.mxu0 0.0
    %682 = vmatprep.subr.mxu0 0.0
    %683 = vmatpush1.msra.mxu0 0.0
    %684 = vmatprep.subr.mxu0 0.0
    %685 = vmatpush1.msra.mxu0 0.0
    %686 = vmatprep.subr.mxu0 0.0
    %687 = vmatpush1.msra.mxu0 0.0
    %688 = vmatprep.subr.mxu0 0.0
    %689 = vmatpush1.msra.mxu0 0.0
    %690 = vmatprep.subr.mxu0 0.0
    %691 = vmatpush1.msra.mxu0 0.0
    %692 = vmatprep.subr.mxu0 0.0
    %693 = vmatpush1.msra.mxu0 0.0
    %694 = vmatprep.subr.mxu0 0.0
    %695 = vmatpush1.msra.mxu0 0.0
    %696 = vmatprep.subr.mxu0 0.0
    %697 = vmatpush1.msra.mxu0 0.0
    %698 = vmatprep.subr.mxu0 0.0
    %699 = vmatpush1.msra.mxu0 0.0
    %700 = vmatprep.subr.mxu0 0.0
    %701 = vmatpush1.msra.mxu0 0.0
    %702 = vmatprep.subr.mxu0 0.0
    %703 = vmatpush1.msra.mxu0 0.0
    %704 = vmatprep.subr.mxu0 0.0
    %705 = vmatpush1.msra.mxu0 0.0
    %706 = vmatprep.subr.mxu0 0.0
    %707 = vmatpush1.msra.mxu0 0.0
    %708 = vmatprep.subr.mxu0 0.0
    %709 = vmatpush1.msra.mxu0 0.0
    %710 = vmatprep.subr.mxu0 0.0
    %711 = vmatpush1.msra.mxu0 0.0
    %712 = vmatprep.subr.mxu0 0.0
    %713 = vmatpush1.msra.mxu0 0.0
    %714 = vmatprep.subr.mxu0 0.0
    %715 = vmatpush1.msra.mxu0 0.0
    %716 = vmatprep.subr.mxu0 0.0
    %717 = vmatpush1.msra.mxu0 0.0
    %718 = vmatprep.subr.mxu0 0.0
    %719 = vmatpush1.msra.mxu0 0.0
    %720 = vmatprep.subr.mxu0 0.0
    %721 = vmatpush1.msra.mxu0 0.0
    %722 = vmatprep.subr.mxu0 0.0
    %723 = vmatpush1.msra.mxu0 0.0
    %724 = vmatprep.subr.mxu0 0.0
    %725 = vmatpush1.msra.mxu0 0.0
    %726 = vmatprep.subr.mxu0 0.0
    %727 = vmatpush1.msra.mxu0 0.0
    %728 = vmatprep.subr.mxu0 0.0
    %729 = vmatpush1.msra.mxu0 0.0
    %730 = vmatprep.subr.mxu0 0.0
    %731 = vmatpush1.msra.mxu0 0.0
    %732 = vmatprep.subr.mxu0 0.0
    %733 = vmatpush1.msra.mxu0 0.0
    %734 = vmatprep.subr.mxu0 0.0
    %735 = vmatpush1.msra.mxu0 0.0
    %736 = vmatprep.subr.mxu0 0.0
    %737 = vmatpush1.msra.mxu0 0.0
    %738 = vmatprep.subr.mxu0 0.0
    %739 = vmatpush1.msra.mxu0 0.0
    %740 = vmatprep.mubr.f32.mxu0 0.0
    %741 = vmatmul.mubr.f32.gmra.mrb[0].mxu0 %v668
    %v742 = vpop.f32.mrb[0].mxu0
    %v743 = vadd.f32 0.0, %v742
    %v744 = vpop.f32.mrb[0].mxu0
    %v745 = vadd.f32 0.0, %v744
    %746 = vdwg.mxu0
    %v747 = vadd.f32 %v654, %v743
    %v748 = vadd.f32 %v655, %v745
    %749 = vrot.lane.b32.xlu0 %v108, 112
    %v750 = vpop.permute.xlu0 %749
    %751 = vrot.lane.b32.xlu0 %v110, 112
    %v752 = vpop.permute.xlu0 %751
    %vm753 = vcmp.lt.s32.totalorder %v76, 112
    %v754 = vsel %vm753, %v750, %v752
    %v755 = vsel %vm753, %v752, %v750
    %v756 = vmul.f32 %v754, %v88
    %v757 = vmul.f32 %v755, %v89
    %v759 = vsel %vm132, %v40, 0
    %v762 = vsel %vm136, %v756, 0
    %v765 = vsel %vm136, %v757, 0
    %767 = vmatprep.subr.mxu0 %v765
    %768 = vmatpush1.msra.mxu0 %v762
    %769 = vmatprep.subr.mxu0 0.0
    %770 = vmatpush1.msra.mxu0 0.0
    %771 = vmatprep.subr.mxu0 0.0
    %772 = vmatpush1.msra.mxu0 0.0
    %773 = vmatprep.subr.mxu0 0.0
    %774 = vmatpush1.msra.mxu0 0.0
    %775 = vmatprep.subr.mxu0 0.0
    %776 = vmatpush1.msra.mxu0 0.0
    %777 = vmatprep.subr.mxu0 0.0
    %778 = vmatpush1.msra.mxu0 0.0
    %779 = vmatprep.subr.mxu0 0.0
    %780 = vmatpush1.msra.mxu0 0.0
    %781 = vmatprep.subr.mxu0 0.0
    %782 = vmatpush1.msra.mxu0 0.0
    %783 = vmatprep.subr.mxu0 0.0
    %784 = vmatpush1.msra.mxu0 0.0
    %785 = vmatprep.subr.mxu0 0.0
    %786 = vmatpush1.msra.mxu0 0.0
    %787 = vmatprep.subr.mxu0 0.0
    %788 = vmatpush1.msra.mxu0 0.0
    %789 = vmatprep.subr.mxu0 0.0
    %790 = vmatpush1.msra.mxu0 0.0
    %791 = vmatprep.subr.mxu0 0.0
    %792 = vmatpush1.msra.mxu0 0.0
    %793 = vmatprep.subr.mxu0 0.0
    %794 = vmatpush1.msra.mxu0 0.0
    %795 = vmatprep.subr.mxu0 0.0
    %796 = vmatpush1.msra.mxu0 0.0
    %797 = vmatprep.subr.mxu0 0.0
    %798 = vmatpush1.msra.mxu0 0.0
    %799 = vmatprep.subr.mxu0 0.0
    %800 = vmatpush1.msra.mxu0 0.0
    %801 = vmatprep.subr.mxu0 0.0
    %802 = vmatpush1.msra.mxu0 0.0
    %803 = vmatprep.subr.mxu0 0.0
    %804 = vmatpush1.msra.mxu0 0.0
    %805 = vmatprep.subr.mxu0 0.0
    %806 = vmatpush1.msra.mxu0 0.0
    %807 = vmatprep.subr.mxu0 0.0
    %808 = vmatpush1.msra.mxu0 0.0
    %809 = vmatprep.subr.mxu0 0.0
    %810 = vmatpush1.msra.mxu0 0.0
    %811 = vmatprep.subr.mxu0 0.0
    %812 = vmatpush1.msra.mxu0 0.0
    %813 = vmatprep.subr.mxu0 0.0
    %814 = vmatpush1.msra.mxu0 0.0
    %815 = vmatprep.subr.mxu0 0.0
    %816 = vmatpush1.msra.mxu0 0.0
    %817 = vmatprep.subr.mxu0 0.0
    %818 = vmatpush1.msra.mxu0 0.0
    %819 = vmatprep.subr.mxu0 0.0
    %820 = vmatpush1.msra.mxu0 0.0
    %821 = vmatprep.subr.mxu0 0.0
    %822 = vmatpush1.msra.mxu0 0.0
    %823 = vmatprep.subr.mxu0 0.0
    %824 = vmatpush1.msra.mxu0 0.0
    %825 = vmatprep.subr.mxu0 0.0
    %826 = vmatpush1.msra.mxu0 0.0
    %827 = vmatprep.subr.mxu0 0.0
    %828 = vmatpush1.msra.mxu0 0.0
    %829 = vmatprep.subr.mxu0 0.0
    %830 = vmatpush1.msra.mxu0 0.0
    %831 = vmatprep.mubr.f32.mxu0 0.0
    %832 = vmatmul.mubr.f32.gmra.mrb[0].mxu0 %v759
    %v833 = vpop.f32.mrb[0].mxu0
    %v834 = vadd.f32 0.0, %v833
    %v835 = vpop.f32.mrb[0].mxu0
    %v836 = vadd.f32 0.0, %v835
    %837 = vdwg.mxu0
    %v838 = vadd.f32 %v747, %v834
    %v839 = vadd.f32 %v748, %v836
    %840 = vrot.lane.b32.xlu0 %v108, 111
    %v841 = vpop.permute.xlu0 %840
    %842 = vrot.lane.b32.xlu0 %v110, 111
    %v843 = vpop.permute.xlu0 %842
    %vm844 = vcmp.lt.s32.totalorder %v76, 111
    %v845 = vsel %vm844, %v841, %v843
    %v846 = vsel %vm844, %v843, %v841
    %v847 = vmul.f32 %v845, %v88
    %v848 = vmul.f32 %v846, %v89
    %v849 = vmul.f32 %v847, %v306
    %v850 = vmul.f32 %v848, %v310
    %v852 = vsel %vm132, %v41, 0
    %v855 = vsel %vm136, %v849, 0
    %v858 = vsel %vm136, %v850, 0
    %860 = vmatprep.subr.mxu0 %v858
    %861 = vmatpush1.msra.mxu0 %v855
    %862 = vmatprep.subr.mxu0 0.0
    %863 = vmatpush1.msra.mxu0 0.0
    %864 = vmatprep.subr.mxu0 0.0
    %865 = vmatpush1.msra.mxu0 0.0
    %866 = vmatprep.subr.mxu0 0.0
    %867 = vmatpush1.msra.mxu0 0.0
    %868 = vmatprep.subr.mxu0 0.0
    %869 = vmatpush1.msra.mxu0 0.0
    %870 = vmatprep.subr.mxu0 0.0
    %871 = vmatpush1.msra.mxu0 0.0
    %872 = vmatprep.subr.mxu0 0.0
    %873 = vmatpush1.msra.mxu0 0.0
    %874 = vmatprep.subr.mxu0 0.0
    %875 = vmatpush1.msra.mxu0 0.0
    %876 = vmatprep.subr.mxu0 0.0
    %877 = vmatpush1.msra.mxu0 0.0
    %878 = vmatprep.subr.mxu0 0.0
    %879 = vmatpush1.msra.mxu0 0.0
    %880 = vmatprep.subr.mxu0 0.0
    %881 = vmatpush1.msra.mxu0 0.0
    %882 = vmatprep.subr.mxu0 0.0
    %883 = vmatpush1.msra.mxu0 0.0
    %884 = vmatprep.subr.mxu0 0.0
    %885 = vmatpush1.msra.mxu0 0.0
    %886 = vmatprep.subr.mxu0 0.0
    %887 = vmatpush1.msra.mxu0 0.0
    %888 = vmatprep.subr.mxu0 0.0
    %889 = vmatpush1.msra.mxu0 0.0
    %890 = vmatprep.subr.mxu0 0.0
    %891 = vmatpush1.msra.mxu0 0.0
    %892 = vmatprep.subr.mxu0 0.0
    %893 = vmatpush1.msra.mxu0 0.0
    %894 = vmatprep.subr.mxu0 0.0
    %895 = vmatpush1.msra.mxu0 0.0
    %896 = vmatprep.subr.mxu0 0.0
    %897 = vmatpush1.msra.mxu0 0.0
    %898 = vmatprep.subr.mxu0 0.0
    %899 = vmatpush1.msra.mxu0 0.0
    %900 = vmatprep.subr.mxu0 0.0
    %901 = vmatpush1.msra.mxu0 0.0
    %902 = vmatprep.subr.mxu0 0.0
    %903 = vmatpush1.msra.mxu0 0.0
    %904 = vmatprep.subr.mxu0 0.0
    %905 = vmatpush1.msra.mxu0 0.0
    %906 = vmatprep.subr.mxu0 0.0
    %907 = vmatpush1.msra.mxu0 0.0
    %908 = vmatprep.subr.mxu0 0.0
    %909 = vmatpush1.msra.mxu0 0.0
    %910 = vmatprep.subr.mxu0 0.0
    %911 = vmatpush1.msra.mxu0 0.0
    %912 = vmatprep.subr.mxu0 0.0
    %913 = vmatpush1.msra.mxu0 0.0
    %914 = vmatprep.subr.mxu0 0.0
    %915 = vmatpush1.msra.mxu0 0.0
    %916 = vmatprep.subr.mxu0 0.0
    %917 = vmatpush1.msra.mxu0 0.0
    %918 = vmatprep.subr.mxu0 0.0
    %919 = vmatpush1.msra.mxu0 0.0
    %920 = vmatprep.subr.mxu0 0.0
    %921 = vmatpush1.msra.mxu0 0.0
    %922 = vmatprep.subr.mxu0 0.0
    %923 = vmatpush1.msra.mxu0 0.0
    %924 = vmatprep.mubr.f32.mxu0 0.0
    %925 = vmatmul.mubr.f32.gmra.mrb[0].mxu0 %v852
    %v926 = vpop.f32.mrb[0].mxu0
    %v927 = vadd.f32 0.0, %v926
    %v928 = vpop.f32.mrb[0].mxu0
    %v929 = vadd.f32 0.0, %v928
    %930 = vdwg.mxu0
    %v931 = vadd.f32 %v838, %v927
    %v932 = vadd.f32 %v839, %v929
    %v935 = vcombine.low %v931, %v932
    %937 = vst [vmem:[%s4] sm:$0xff] %v935
    %938 = vmatprep.subr.mxu0 0.0
    %939 = vmatpush1.msra.mxu0 %v42
    %940 = vmatprep.subr.mxu0 0.0
    %941 = vmatpush1.msra.mxu0 %v43
    %942 = vmatprep.subr.mxu0 0.0
    %943 = vmatpush1.msra.mxu0 %v44
    %944 = vmatprep.subr.mxu0 0.0
    %945 = vmatpush1.msra.mxu0 %v45
    %946 = vmatprep.subr.mxu0 0.0
    %947 = vmatpush1.msra.mxu0 %v46
    %948 = vmatprep.subr.mxu0 0.0
    %949 = vmatpush1.msra.mxu0 %v47
    %950 = vmatprep.subr.mxu0 0.0
    %951 = vmatpush1.msra.mxu0 %v48
    %952 = vmatprep.subr.mxu0 0.0
    %953 = vmatpush1.msra.mxu0 %v49
    %954 = vmatprep.subr.mxu0 0.0
    %955 = vmatpush1.msra.mxu0 %v50
    %956 = vmatprep.subr.mxu0 0.0
    %957 = vmatpush1.msra.mxu0 %v51
    %958 = vmatprep.subr.mxu0 0.0
    %959 = vmatpush1.msra.mxu0 %v52
    %960 = vmatprep.subr.mxu0 0.0
    %961 = vmatpush1.msra.mxu0 %v53
    %962 = vmatprep.subr.mxu0 0.0
    %963 = vmatpush1.msra.mxu0 %v54
    %964 = vmatprep.subr.mxu0 0.0
    %965 = vmatpush1.msra.mxu0 %v55
    %966 = vmatprep.subr.mxu0 0.0
    %967 = vmatpush1.msra.mxu0 %v56
    %968 = vmatprep.subr.mxu0 0.0
    %969 = vmatpush1.msra.mxu0 %v57
    %970 = vmatprep.subr.mxu0 0.0
    %971 = vmatpush1.msra.mxu0 %v58
    %972 = vmatprep.subr.mxu0 0.0
    %973 = vmatpush1.msra.mxu0 %v59
    %974 = vmatprep.subr.mxu0 0.0
    %975 = vmatpush1.msra.mxu0 %v60
    %976 = vmatprep.subr.mxu0 0.0
    %977 = vmatpush1.msra.mxu0 %v61
    %978 = vmatprep.subr.mxu0 0.0
    %979 = vmatpush1.msra.mxu0 %v62
    %980 = vmatprep.subr.mxu0 0.0
    %981 = vmatpush1.msra.mxu0 %v63
    %982 = vmatprep.subr.mxu0 0.0
    %983 = vmatpush1.msra.mxu0 %v64
    %984 = vmatprep.subr.mxu0 0.0
    %985 = vmatpush1.msra.mxu0 %v65
    %986 = vmatprep.subr.mxu0 0.0
    %987 = vmatpush1.msra.mxu0 %v66
    %988 = vmatprep.subr.mxu0 0.0
    %989 = vmatpush1.msra.mxu0 %v67
    %990 = vmatprep.subr.mxu0 0.0
    %991 = vmatpush1.msra.mxu0 %v68
    %992 = vmatprep.subr.mxu0 0.0
    %993 = vmatpush1.msra.mxu0 %v69
    %994 = vmatprep.subr.mxu0 0.0
    %995 = vmatpush1.msra.mxu0 %v70
    %996 = vmatprep.subr.mxu0 0.0
    %997 = vmatpush1.msra.mxu0 %v71
    %998 = vmatprep.subr.mxu0 0.0
    %999 = vmatpush1.msra.mxu0 %v72
    %1000 = vmatprep.subr.mxu0 0.0
    %1001 = vmatpush1.msra.mxu0 %v73
    %1002 = vmatprep.mubr.f32.mxu0 %v110
    %1003 = vmatmul.mubr.f32.gmra.mrb[0].mxu0 %v108
    %v1004 = vpop.f32.mrb[0].mxu0
    %v1005 = vadd.f32 0.0, %v1004
    %v1006 = vpop.f32.mrb[0].mxu0
    %1007 = vdwg.mxu0
    %vm1008 = vcmask 519168
    %1009 = vst.msk [vmem:[%s5] sm:$0xf] %vm1008, %v1005
    %s1010 = scalar_lea.vmem %s0, 8
    %v1011 = vld [vmem:[%s1010] sm:$0xff]
    %v1013 = vcombine.high %v1011, %v1011
    %1015 = vrot.lane.b32.xlu0 %v1011, 17
    %v1016 = vpop.permute.xlu0 %1015
    %1017 = vrot.lane.b32.xlu0 %v1013, 17
    %v1018 = vpop.permute.xlu0 %1017
    %v1019 = vsel %vm116, %v1016, %v1018
    %v1020 = vsel %vm116, %v1018, %v1016
    %v1021 = vmul.f32 %v1020, %v82
    %v1022 = vmul.f32 %v1019, %v83
    %v1023 = vmul.f32 %v1021, %v94
    %v1024 = vmul.f32 %v1022, %v98
    %1025 = vrot.lane.b32.xlu0 %v1011, 16
    %v1026 = vpop.permute.xlu0 %1025
    %1027 = vrot.lane.b32.xlu0 %v1013, 16
    %v1028 = vpop.permute.xlu0 %1027
    %v1029 = vsel %vm127, %v1026, %v1028
    %v1030 = vsel %vm127, %v1028, %v1026
    %v1031 = vmul.f32 %v1030, %v82
    %v1032 = vmul.f32 %v1029, %v83
    %v1034 = vsel %vm136, %v1031, 0
    %v1037 = vsel %vm136, %v1032, 0
    %1039 = vmatprep.subr.mxu0 %v1037
    %1040 = vmatpush1.msra.mxu0 %v1034
    %1041 = vmatprep.subr.mxu0 0.0
    %1042 = vmatpush1.msra.mxu0 0.0
    %1043 = vmatprep.subr.mxu0 0.0
    %1044 = vmatpush1.msra.mxu0 0.0
    %1045 = vmatprep.subr.mxu0 0.0
    %1046 = vmatpush1.msra.mxu0 0.0
    %1047 = vmatprep.subr.mxu0 0.0
    %1048 = vmatpush1.msra.mxu0 0.0
    %1049 = vmatprep.subr.mxu0 0.0
    %1050 = vmatpush1.msra.mxu0 0.0
    %1051 = vmatprep.subr.mxu0 0.0
    %1052 = vmatpush1.msra.mxu0 0.0
    %1053 = vmatprep.subr.mxu0 0.0
    %1054 = vmatpush1.msra.mxu0 0.0
    %1055 = vmatprep.subr.mxu0 0.0
    %1056 = vmatpush1.msra.mxu0 0.0
    %1057 = vmatprep.subr.mxu0 0.0
    %1058 = vmatpush1.msra.mxu0 0.0
    %1059 = vmatprep.subr.mxu0 0.0
    %1060 = vmatpush1.msra.mxu0 0.0
    %1061 = vmatprep.subr.mxu0 0.0
    %1062 = vmatpush1.msra.mxu0 0.0
    %1063 = vmatprep.subr.mxu0 0.0
    %1064 = vmatpush1.msra.mxu0 0.0
    %1065 = vmatprep.subr.mxu0 0.0
    %1066 = vmatpush1.msra.mxu0 0.0
    %1067 = vmatprep.subr.mxu0 0.0
    %1068 = vmatpush1.msra.mxu0 0.0
    %1069 = vmatprep.subr.mxu0 0.0
    %1070 = vmatpush1.msra.mxu0 0.0
    %1071 = vmatprep.subr.mxu0 0.0
    %1072 = vmatpush1.msra.mxu0 0.0
    %1073 = vmatprep.subr.mxu0 0.0
    %1074 = vmatpush1.msra.mxu0 0.0
    %1075 = vmatprep.subr.mxu0 0.0
    %1076 = vmatpush1.msra.mxu0 0.0
    %1077 = vmatprep.subr.mxu0 0.0
    %1078 = vmatpush1.msra.mxu0 0.0
    %1079 = vmatprep.subr.mxu0 0.0
    %1080 = vmatpush1.msra.mxu0 0.0
    %1081 = vmatprep.subr.mxu0 0.0
    %1082 = vmatpush1.msra.mxu0 0.0
    %1083 = vmatprep.subr.mxu0 0.0
    %1084 = vmatpush1.msra.mxu0 0.0
    %1085 = vmatprep.subr.mxu0 0.0
    %1086 = vmatpush1.msra.mxu0 0.0
    %1087 = vmatprep.subr.mxu0 0.0
    %1088 = vmatpush1.msra.mxu0 0.0
    %1089 = vmatprep.subr.mxu0 0.0
    %1090 = vmatpush1.msra.mxu0 0.0
    %1091 = vmatprep.subr.mxu0 0.0
    %1092 = vmatpush1.msra.mxu0 0.0
    %1093 = vmatprep.subr.mxu0 0.0
    %1094 = vmatpush1.msra.mxu0 0.0
    %1095 = vmatprep.subr.mxu0 0.0
    %1096 = vmatpush1.msra.mxu0 0.0
    %1097 = vmatprep.subr.mxu0 0.0
    %1098 = vmatpush1.msra.mxu0 0.0
    %1099 = vmatprep.subr.mxu0 0.0
    %1100 = vmatpush1.msra.mxu0 0.0
    %1101 = vmatprep.subr.mxu0 0.0
    %1102 = vmatpush1.msra.mxu0 0.0
    %1103 = vmatprep.mubr.f32.mxu0 0.0
    %1104 = vmatmul.mubr.f32.gmra.mrb[0].mxu0 %v134
    %v1105 = vpop.f32.mrb[0].mxu0
    %v1106 = vadd.f32 0.0, %v1105
    %v1107 = vpop.f32.mrb[0].mxu0
    %v1108 = vadd.f32 0.0, %v1107
    %1109 = vdwg.mxu0
    %v1111 = vsel %vm136, %v1023, 0
    %v1114 = vsel %vm136, %v1024, 0
    %1116 = vmatprep.subr.mxu0 %v1114
    %1117 = vmatpush1.msra.mxu0 %v1111
    %1118 = vmatprep.subr.mxu0 0.0
    %1119 = vmatpush1.msra.mxu0 0.0
    %1120 = vmatprep.subr.mxu0 0.0
    %1121 = vmatpush1.msra.mxu0 0.0
    %1122 = vmatprep.subr.mxu0 0.0
    %1123 = vmatpush1.msra.mxu0 0.0
    %1124 = vmatprep.subr.mxu0 0.0
    %1125 = vmatpush1.msra.mxu0 0.0
    %1126 = vmatprep.subr.mxu0 0.0
    %1127 = vmatpush1.msra.mxu0 0.0
    %1128 = vmatprep.subr.mxu0 0.0
    %1129 = vmatpush1.msra.mxu0 0.0
    %1130 = vmatprep.subr.mxu0 0.0
    %1131 = vmatpush1.msra.mxu0 0.0
    %1132 = vmatprep.subr.mxu0 0.0
    %1133 = vmatpush1.msra.mxu0 0.0
    %1134 = vmatprep.subr.mxu0 0.0
    %1135 = vmatpush1.msra.mxu0 0.0
    %1136 = vmatprep.subr.mxu0 0.0
    %1137 = vmatpush1.msra.mxu0 0.0
    %1138 = vmatprep.subr.mxu0 0.0
    %1139 = vmatpush1.msra.mxu0 0.0
    %1140 = vmatprep.subr.mxu0 0.0
    %1141 = vmatpush1.msra.mxu0 0.0
    %1142 = vmatprep.subr.mxu0 0.0
    %1143 = vmatpush1.msra.mxu0 0.0
    %1144 = vmatprep.subr.mxu0 0.0
    %1145 = vmatpush1.msra.mxu0 0.0
    %1146 = vmatprep.subr.mxu0 0.0
    %1147 = vmatpush1.msra.mxu0 0.0
    %1148 = vmatprep.subr.mxu0 0.0
    %1149 = vmatpush1.msra.mxu0 0.0
    %1150 = vmatprep.subr.mxu0 0.0
    %1151 = vmatpush1.msra.mxu0 0.0
    %1152 = vmatprep.subr.mxu0 0.0
    %1153 = vmatpush1.msra.mxu0 0.0
    %1154 = vmatprep.subr.mxu0 0.0
    %1155 = vmatpush1.msra.mxu0 0.0
    %1156 = vmatprep.subr.mxu0 0.0
    %1157 = vmatpush1.msra.mxu0 0.0
    %1158 = vmatprep.subr.mxu0 0.0
    %1159 = vmatpush1.msra.mxu0 0.0
    %1160 = vmatprep.subr.mxu0 0.0
    %1161 = vmatpush1.msra.mxu0 0.0
    %1162 = vmatprep.subr.mxu0 0.0
    %1163 = vmatpush1.msra.mxu0 0.0
    %1164 = vmatprep.subr.mxu0 0.0
    %1165 = vmatpush1.msra.mxu0 0.0
    %1166 = vmatprep.subr.mxu0 0.0
    %1167 = vmatpush1.msra.mxu0 0.0
    %1168 = vmatprep.subr.mxu0 0.0
    %1169 = vmatpush1.msra.mxu0 0.0
    %1170 = vmatprep.subr.mxu0 0.0
    %1171 = vmatpush1.msra.mxu0 0.0
    %1172 = vmatprep.subr.mxu0 0.0
    %1173 = vmatpush1.msra.mxu0 0.0
    %1174 = vmatprep.subr.mxu0 0.0
    %1175 = vmatpush1.msra.mxu0 0.0
    %1176 = vmatprep.subr.mxu0 0.0
    %1177 = vmatpush1.msra.mxu0 0.0
    %1178 = vmatprep.subr.mxu0 0.0
    %1179 = vmatpush1.msra.mxu0 0.0
    %1180 = vmatprep.mubr.f32.mxu0 0.0
    %1181 = vmatmul.mubr.f32.gmra.mrb[0].mxu0 %v215
    %v1182 = vpop.f32.mrb[0].mxu0
    %v1183 = vadd.f32 %v1106, %v1182
    %v1184 = vpop.f32.mrb[0].mxu0
    %v1185 = vadd.f32 %v1108, %v1184
    %1186 = vdwg.mxu0
    %1187 = vrot.lane.b32.xlu0 %v1011, 15
    %v1188 = vpop.permute.xlu0 %1187
    %1189 = vrot.lane.b32.xlu0 %v1013, 15
    %v1190 = vpop.permute.xlu0 %1189
    %v1191 = vsel %vm298, %v1188, %v1190
    %v1192 = vsel %vm298, %v1190, %v1188
    %v1193 = vmul.f32 %v1192, %v82
    %v1194 = vmul.f32 %v1191, %v83
    %v1195 = vmul.f32 %v1193, %v306
    %v1196 = vmul.f32 %v1194, %v310
    %v1198 = vsel %vm136, %v1195, 0
    %v1201 = vsel %vm136, %v1196, 0
    %1203 = vmatprep.subr.mxu0 %v1201
    %1204 = vmatpush1.msra.mxu0 %v1198
    %1205 = vmatprep.subr.mxu0 0.0
    %1206 = vmatpush1.msra.mxu0 0.0
    %1207 = vmatprep.subr.mxu0 0.0
    %1208 = vmatpush1.msra.mxu0 0.0
    %1209 = vmatprep.subr.mxu0 0.0
    %1210 = vmatpush1.msra.mxu0 0.0
    %1211 = vmatprep.subr.mxu0 0.0
    %1212 = vmatpush1.msra.mxu0 0.0
    %1213 = vmatprep.subr.mxu0 0.0
    %1214 = vmatpush1.msra.mxu0 0.0
    %1215 = vmatprep.subr.mxu0 0.0
    %1216 = vmatpush1.msra.mxu0 0.0
    %1217 = vmatprep.subr.mxu0 0.0
    %1218 = vmatpush1.msra.mxu0 0.0
    %1219 = vmatprep.subr.mxu0 0.0
    %1220 = vmatpush1.msra.mxu0 0.0
    %1221 = vmatprep.subr.mxu0 0.0
    %1222 = vmatpush1.msra.mxu0 0.0
    %1223 = vmatprep.subr.mxu0 0.0
    %1224 = vmatpush1.msra.mxu0 0.0
    %1225 = vmatprep.subr.mxu0 0.0
    %1226 = vmatpush1.msra.mxu0 0.0
    %1227 = vmatprep.subr.mxu0 0.0
    %1228 = vmatpush1.msra.mxu0 0.0
    %1229 = vmatprep.subr.mxu0 0.0
    %1230 = vmatpush1.msra.mxu0 0.0
    %1231 = vmatprep.subr.mxu0 0.0
    %1232 = vmatpush1.msra.mxu0 0.0
    %1233 = vmatprep.subr.mxu0 0.0
    %1234 = vmatpush1.msra.mxu0 0.0
    %1235 = vmatprep.subr.mxu0 0.0
    %1236 = vmatpush1.msra.mxu0 0.0
    %1237 = vmatprep.subr.mxu0 0.0
    %1238 = vmatpush1.msra.mxu0 0.0
    %1239 = vmatprep.subr.mxu0 0.0
    %1240 = vmatpush1.msra.mxu0 0.0
    %1241 = vmatprep.subr.mxu0 0.0
    %1242 = vmatpush1.msra.mxu0 0.0
    %1243 = vmatprep.subr.mxu0 0.0
    %1244 = vmatpush1.msra.mxu0 0.0
    %1245 = vmatprep.subr.mxu0 0.0
    %1246 = vmatpush1.msra.mxu0 0.0
    %1247 = vmatprep.subr.mxu0 0.0
    %1248 = vmatpush1.msra.mxu0 0.0
    %1249 = vmatprep.subr.mxu0 0.0
    %1250 = vmatpush1.msra.mxu0 0.0
    %1251 = vmatprep.subr.mxu0 0.0
    %1252 = vmatpush1.msra.mxu0 0.0
    %1253 = vmatprep.subr.mxu0 0.0
    %1254 = vmatpush1.msra.mxu0 0.0
    %1255 = vmatprep.subr.mxu0 0.0
    %1256 = vmatpush1.msra.mxu0 0.0
    %1257 = vmatprep.subr.mxu0 0.0
    %1258 = vmatpush1.msra.mxu0 0.0
    %1259 = vmatprep.subr.mxu0 0.0
    %1260 = vmatpush1.msra.mxu0 0.0
    %1261 = vmatprep.subr.mxu0 0.0
    %1262 = vmatpush1.msra.mxu0 0.0
    %1263 = vmatprep.subr.mxu0 0.0
    %1264 = vmatpush1.msra.mxu0 0.0
    %1265 = vmatprep.subr.mxu0 0.0
    %1266 = vmatpush1.msra.mxu0 0.0
    %1267 = vmatprep.mubr.f32.mxu0 0.0
    %1268 = vmatmul.mubr.f32.gmra.mrb[0].mxu0 %v314
    %v1269 = vpop.f32.mrb[0].mxu0
    %v1270 = vadd.f32 0.0, %v1269
    %v1271 = vpop.f32.mrb[0].mxu0
    %v1272 = vadd.f32 0.0, %v1271
    %1273 = vdwg.mxu0
    %v1274 = vadd.f32 %v1183, %v1270
    %v1275 = vadd.f32 %v1185, %v1272
    %1276 = vrot.lane.b32.xlu0 %v1011, 1
    %v1277 = vpop.permute.xlu0 %1276
    %1278 = vrot.lane.b32.xlu0 %v1013, 1
    %v1279 = vpop.permute.xlu0 %1278
    %v1280 = vsel %vm399, %v1277, %v1279
    %v1281 = vsel %vm399, %v1279, %v1277
    %v1282 = vmul.f32 %v1281, %v94
    %v1283 = vmul.f32 %v1280, %v98
    %v1285 = vsel %vm136, %v1282, 0
    %v1288 = vsel %vm136, %v1283, 0
    %1290 = vmatprep.subr.mxu0 %v1288
    %1291 = vmatpush1.msra.mxu0 %v1285
    %1292 = vmatprep.subr.mxu0 0.0
    %1293 = vmatpush1.msra.mxu0 0.0
    %1294 = vmatprep.subr.mxu0 0.0
    %1295 = vmatpush1.msra.mxu0 0.0
    %1296 = vmatprep.subr.mxu0 0.0
    %1297 = vmatpush1.msra.mxu0 0.0
    %1298 = vmatprep.subr.mxu0 0.0
    %1299 = vmatpush1.msra.mxu0 0.0
    %1300 = vmatprep.subr.mxu0 0.0
    %1301 = vmatpush1.msra.mxu0 0.0
    %1302 = vmatprep.subr.mxu0 0.0
    %1303 = vmatpush1.msra.mxu0 0.0
    %1304 = vmatprep.subr.mxu0 0.0
    %1305 = vmatpush1.msra.mxu0 0.0
    %1306 = vmatprep.subr.mxu0 0.0
    %1307 = vmatpush1.msra.mxu0 0.0
    %1308 = vmatprep.subr.mxu0 0.0
    %1309 = vmatpush1.msra.mxu0 0.0
    %1310 = vmatprep.subr.mxu0 0.0
    %1311 = vmatpush1.msra.mxu0 0.0
    %1312 = vmatprep.subr.mxu0 0.0
    %1313 = vmatpush1.msra.mxu0 0.0
    %1314 = vmatprep.subr.mxu0 0.0
    %1315 = vmatpush1.msra.mxu0 0.0
    %1316 = vmatprep.subr.mxu0 0.0
    %1317 = vmatpush1.msra.mxu0 0.0
    %1318 = vmatprep.subr.mxu0 0.0
    %1319 = vmatpush1.msra.mxu0 0.0
    %1320 = vmatprep.subr.mxu0 0.0
    %1321 = vmatpush1.msra.mxu0 0.0
    %1322 = vmatprep.subr.mxu0 0.0
    %1323 = vmatpush1.msra.mxu0 0.0
    %1324 = vmatprep.subr.mxu0 0.0
    %1325 = vmatpush1.msra.mxu0 0.0
    %1326 = vmatprep.subr.mxu0 0.0
    %1327 = vmatpush1.msra.mxu0 0.0
    %1328 = vmatprep.subr.mxu0 0.0
    %1329 = vmatpush1.msra.mxu0 0.0
    %1330 = vmatprep.subr.mxu0 0.0
    %1331 = vmatpush1.msra.mxu0 0.0
    %1332 = vmatprep.subr.mxu0 0.0
    %1333 = vmatpush1.msra.mxu0 0.0
    %1334 = vmatprep.subr.mxu0 0.0
    %1335 = vmatpush1.msra.mxu0 0.0
    %1336 = vmatprep.subr.mxu0 0.0
    %1337 = vmatpush1.msra.mxu0 0.0
    %1338 = vmatprep.subr.mxu0 0.0
    %1339 = vmatpush1.msra.mxu0 0.0
    %1340 = vmatprep.subr.mxu0 0.0
    %1341 = vmatpush1.msra.mxu0 0.0
    %1342 = vmatprep.subr.mxu0 0.0
    %1343 = vmatpush1.msra.mxu0 0.0
    %1344 = vmatprep.subr.mxu0 0.0
    %1345 = vmatpush1.msra.mxu0 0.0
    %1346 = vmatprep.subr.mxu0 0.0
    %1347 = vmatpush1.msra.mxu0 0.0
    %1348 = vmatprep.subr.mxu0 0.0
    %1349 = vmatpush1.msra.mxu0 0.0
    %1350 = vmatprep.subr.mxu0 0.0
    %1351 = vmatpush1.msra.mxu0 0.0
    %1352 = vmatprep.subr.mxu0 0.0
    %1353 = vmatpush1.msra.mxu0 0.0
    %1354 = vmatprep.mubr.f32.mxu0 0.0
    %1355 = vmatmul.mubr.f32.gmra.mrb[0].mxu0 %v405
    %v1356 = vpop.f32.mrb[0].mxu0
    %v1357 = vadd.f32 0.0, %v1356
    %v1358 = vpop.f32.mrb[0].mxu0
    %v1359 = vadd.f32 0.0, %v1358
    %1360 = vdwg.mxu0
    %v1361 = vadd.f32 %v1274, %v1357
    %v1362 = vadd.f32 %v1275, %v1359
    %v1363 = vsel %vm136, %v1011, 0
    %v1365 = vsel %vm136, %v1013, 0
    %1367 = vmatprep.subr.mxu0 %v1365
    %1368 = vmatpush1.msra.mxu0 %v1363
    %1369 = vmatprep.subr.mxu0 0.0
    %1370 = vmatpush1.msra.mxu0 0.0
    %1371 = vmatprep.subr.mxu0 0.0
    %1372 = vmatpush1.msra.mxu0 0.0
    %1373 = vmatprep.subr.mxu0 0.0
    %1374 = vmatpush1.msra.mxu0 0.0
    %1375 = vmatprep.subr.mxu0 0.0
    %1376 = vmatpush1.msra.mxu0 0.0
    %1377 = vmatprep.subr.mxu0 0.0
    %1378 = vmatpush1.msra.mxu0 0.0
    %1379 = vmatprep.subr.mxu0 0.0
    %1380 = vmatpush1.msra.mxu0 0.0
    %1381 = vmatprep.subr.mxu0 0.0
    %1382 = vmatpush1.msra.mxu0 0.0
    %1383 = vmatprep.subr.mxu0 0.0
    %1384 = vmatpush1.msra.mxu0 0.0
    %1385 = vmatprep.subr.mxu0 0.0
    %1386 = vmatpush1.msra.mxu0 0.0
    %1387 = vmatprep.subr.mxu0 0.0
    %1388 = vmatpush1.msra.mxu0 0.0
    %1389 = vmatprep.subr.mxu0 0.0
    %1390 = vmatpush1.msra.mxu0 0.0
    %1391 = vmatprep.subr.mxu0 0.0
    %1392 = vmatpush1.msra.mxu0 0.0
    %1393 = vmatprep.subr.mxu0 0.0
    %1394 = vmatpush1.msra.mxu0 0.0
    %1395 = vmatprep.subr.mxu0 0.0
    %1396 = vmatpush1.msra.mxu0 0.0
    %1397 = vmatprep.subr.mxu0 0.0
    %1398 = vmatpush1.msra.mxu0 0.0
    %1399 = vmatprep.subr.mxu0 0.0
    %1400 = vmatpush1.msra.mxu0 0.0
    %1401 = vmatprep.subr.mxu0 0.0
    %1402 = vmatpush1.msra.mxu0 0.0
    %1403 = vmatprep.subr.mxu0 0.0
    %1404 = vmatpush1.msra.mxu0 0.0
    %1405 = vmatprep.subr.mxu0 0.0
    %1406 = vmatpush1.msra.mxu0 0.0
    %1407 = vmatprep.subr.mxu0 0.0
    %1408 = vmatpush1.msra.mxu0 0.0
    %1409 = vmatprep.subr.mxu0 0.0
    %1410 = vmatpush1.msra.mxu0 0.0
    %1411 = vmatprep.subr.mxu0 0.0
    %1412 = vmatpush1.msra.mxu0 0.0
    %1413 = vmatprep.subr.mxu0 0.0
    %1414 = vmatpush1.msra.mxu0 0.0
    %1415 = vmatprep.subr.mxu0 0.0
    %1416 = vmatpush1.msra.mxu0 0.0
    %1417 = vmatprep.subr.mxu0 0.0
    %1418 = vmatpush1.msra.mxu0 0.0
    %1419 = vmatprep.subr.mxu0 0.0
    %1420 = vmatpush1.msra.mxu0 0.0
    %1421 = vmatprep.subr.mxu0 0.0
    %1422 = vmatpush1.msra.mxu0 0.0
    %1423 = vmatprep.subr.mxu0 0.0
    %1424 = vmatpush1.msra.mxu0 0.0
    %1425 = vmatprep.subr.mxu0 0.0
    %1426 = vmatpush1.msra.mxu0 0.0
    %1427 = vmatprep.subr.mxu0 0.0
    %1428 = vmatpush1.msra.mxu0 0.0
    %1429 = vmatprep.subr.mxu0 0.0
    %1430 = vmatpush1.msra.mxu0 0.0
    %1431 = vmatprep.mubr.f32.mxu0 0.0
    %1432 = vmatmul.mubr.f32.gmra.mrb[0].mxu0 %v487
    %v1433 = vpop.f32.mrb[0].mxu0
    %v1434 = vadd.f32 0.0, %v1433
    %v1435 = vpop.f32.mrb[0].mxu0
    %v1436 = vadd.f32 0.0, %v1435
    %1437 = vdwg.mxu0
    %v1438 = vadd.f32 %v1361, %v1434
    %v1439 = vadd.f32 %v1362, %v1436
    %1440 = vrot.lane.b32.xlu0 %v1011, 127
    %v1441 = vpop.permute.xlu0 %1440
    %1442 = vrot.lane.b32.xlu0 %v1013, 127
    %v1443 = vpop.permute.xlu0 %1442
    %v1444 = vsel %vm105, %v1441, %v1443
    %v1445 = vsel %vm105, %v1443, %v1441
    %v1446 = vmul.f32 %v1444, %v306
    %v1447 = vmul.f32 %v1445, %v310
    %v1449 = vsel %vm136, %v1446, 0
    %v1452 = vsel %vm136, %v1447, 0
    %1454 = vmatprep.subr.mxu0 %v1452
    %1455 = vmatpush1.msra.mxu0 %v1449
    %1456 = vmatprep.subr.mxu0 0.0
    %1457 = vmatpush1.msra.mxu0 0.0
    %1458 = vmatprep.subr.mxu0 0.0
    %1459 = vmatpush1.msra.mxu0 0.0
    %1460 = vmatprep.subr.mxu0 0.0
    %1461 = vmatpush1.msra.mxu0 0.0
    %1462 = vmatprep.subr.mxu0 0.0
    %1463 = vmatpush1.msra.mxu0 0.0
    %1464 = vmatprep.subr.mxu0 0.0
    %1465 = vmatpush1.msra.mxu0 0.0
    %1466 = vmatprep.subr.mxu0 0.0
    %1467 = vmatpush1.msra.mxu0 0.0
    %1468 = vmatprep.subr.mxu0 0.0
    %1469 = vmatpush1.msra.mxu0 0.0
    %1470 = vmatprep.subr.mxu0 0.0
    %1471 = vmatpush1.msra.mxu0 0.0
    %1472 = vmatprep.subr.mxu0 0.0
    %1473 = vmatpush1.msra.mxu0 0.0
    %1474 = vmatprep.subr.mxu0 0.0
    %1475 = vmatpush1.msra.mxu0 0.0
    %1476 = vmatprep.subr.mxu0 0.0
    %1477 = vmatpush1.msra.mxu0 0.0
    %1478 = vmatprep.subr.mxu0 0.0
    %1479 = vmatpush1.msra.mxu0 0.0
    %1480 = vmatprep.subr.mxu0 0.0
    %1481 = vmatpush1.msra.mxu0 0.0
    %1482 = vmatprep.subr.mxu0 0.0
    %1483 = vmatpush1.msra.mxu0 0.0
    %1484 = vmatprep.subr.mxu0 0.0
    %1485 = vmatpush1.msra.mxu0 0.0
    %1486 = vmatprep.subr.mxu0 0.0
    %1487 = vmatpush1.msra.mxu0 0.0
    %1488 = vmatprep.subr.mxu0 0.0
    %1489 = vmatpush1.msra.mxu0 0.0
    %1490 = vmatprep.subr.mxu0 0.0
    %1491 = vmatpush1.msra.mxu0 0.0
    %1492 = vmatprep.subr.mxu0 0.0
    %1493 = vmatpush1.msra.mxu0 0.0
    %1494 = vmatprep.subr.mxu0 0.0
    %1495 = vmatpush1.msra.mxu0 0.0
    %1496 = vmatprep.subr.mxu0 0.0
    %1497 = vmatpush1.msra.mxu0 0.0
    %1498 = vmatprep.subr.mxu0 0.0
    %1499 = vmatpush1.msra.mxu0 0.0
    %1500 = vmatprep.subr.mxu0 0.0
    %1501 = vmatpush1.msra.mxu0 0.0
    %1502 = vmatprep.subr.mxu0 0.0
    %1503 = vmatpush1.msra.mxu0 0.0
    %1504 = vmatprep.subr.mxu0 0.0
    %1505 = vmatpush1.msra.mxu0 0.0
    %1506 = vmatprep.subr.mxu0 0.0
    %1507 = vmatpush1.msra.mxu0 0.0
    %1508 = vmatprep.subr.mxu0 0.0
    %1509 = vmatpush1.msra.mxu0 0.0
    %1510 = vmatprep.subr.mxu0 0.0
    %1511 = vmatpush1.msra.mxu0 0.0
    %1512 = vmatprep.subr.mxu0 0.0
    %1513 = vmatpush1.msra.mxu0 0.0
    %1514 = vmatprep.subr.mxu0 0.0
    %1515 = vmatpush1.msra.mxu0 0.0
    %1516 = vmatprep.subr.mxu0 0.0
    %1517 = vmatpush1.msra.mxu0 0.0
    %1518 = vmatprep.mubr.f32.mxu0 0.0
    %1519 = vmatmul.mubr.f32.gmra.mrb[0].mxu0 %v575
    %v1520 = vpop.f32.mrb[0].mxu0
    %v1521 = vadd.f32 0.0, %v1520
    %v1522 = vpop.f32.mrb[0].mxu0
    %v1523 = vadd.f32 0.0, %v1522
    %1524 = vdwg.mxu0
    %v1525 = vadd.f32 %v1438, %v1521
    %v1526 = vadd.f32 %v1439, %v1523
    %1527 = vrot.lane.b32.xlu0 %v1011, 113
    %v1528 = vpop.permute.xlu0 %1527
    %1529 = vrot.lane.b32.xlu0 %v1013, 113
    %v1530 = vpop.permute.xlu0 %1529
    %v1531 = vsel %vm660, %v1528, %v1530
    %v1532 = vsel %vm660, %v1530, %v1528
    %v1533 = vmul.f32 %v1531, %v88
    %v1534 = vmul.f32 %v1532, %v89
    %v1535 = vmul.f32 %v1533, %v94
    %v1536 = vmul.f32 %v1534, %v98
    %v1538 = vsel %vm136, %v1535, 0
    %v1541 = vsel %vm136, %v1536, 0
    %1543 = vmatprep.subr.mxu0 %v1541
    %1544 = vmatpush1.msra.mxu0 %v1538
    %1545 = vmatprep.subr.mxu0 0.0
    %1546 = vmatpush1.msra.mxu0 0.0
    %1547 = vmatprep.subr.mxu0 0.0
    %1548 = vmatpush1.msra.mxu0 0.0
    %1549 = vmatprep.subr.mxu0 0.0
    %1550 = vmatpush1.msra.mxu0 0.0
    %1551 = vmatprep.subr.mxu0 0.0
    %1552 = vmatpush1.msra.mxu0 0.0
    %1553 = vmatprep.subr.mxu0 0.0
    %1554 = vmatpush1.msra.mxu0 0.0
    %1555 = vmatprep.subr.mxu0 0.0
    %1556 = vmatpush1.msra.mxu0 0.0
    %1557 = vmatprep.subr.mxu0 0.0
    %1558 = vmatpush1.msra.mxu0 0.0
    %1559 = vmatprep.subr.mxu0 0.0
    %1560 = vmatpush1.msra.mxu0 0.0
    %1561 = vmatprep.subr.mxu0 0.0
    %1562 = vmatpush1.msra.mxu0 0.0
    %1563 = vmatprep.subr.mxu0 0.0
    %1564 = vmatpush1.msra.mxu0 0.0
    %1565 = vmatprep.subr.mxu0 0.0
    %1566 = vmatpush1.msra.mxu0 0.0
    %1567 = vmatprep.subr.mxu0 0.0
    %1568 = vmatpush1.msra.mxu0 0.0
    %1569 = vmatprep.subr.mxu0 0.0
    %1570 = vmatpush1.msra.mxu0 0.0
    %1571 = vmatprep.subr.mxu0 0.0
    %1572 = vmatpush1.msra.mxu0 0.0
    %1573 = vmatprep.subr.mxu0 0.0
    %1574 = vmatpush1.msra.mxu0 0.0
    %1575 = vmatprep.subr.mxu0 0.0
    %1576 = vmatpush1.msra.mxu0 0.0
    %1577 = vmatprep.subr.mxu0 0.0
    %1578 = vmatpush1.msra.mxu0 0.0
    %1579 = vmatprep.subr.mxu0 0.0
    %1580 = vmatpush1.msra.mxu0 0.0
    %1581 = vmatprep.subr.mxu0 0.0
    %1582 = vmatpush1.msra.mxu0 0.0
    %1583 = vmatprep.subr.mxu0 0.0
    %1584 = vmatpush1.msra.mxu0 0.0
    %1585 = vmatprep.subr.mxu0 0.0
    %1586 = vmatpush1.msra.mxu0 0.0
    %1587 = vmatprep.subr.mxu0 0.0
    %1588 = vmatpush1.msra.mxu0 0.0
    %1589 = vmatprep.subr.mxu0 0.0
    %1590 = vmatpush1.msra.mxu0 0.0
    %1591 = vmatprep.subr.mxu0 0.0
    %1592 = vmatpush1.msra.mxu0 0.0
    %1593 = vmatprep.subr.mxu0 0.0
    %1594 = vmatpush1.msra.mxu0 0.0
    %1595 = vmatprep.subr.mxu0 0.0
    %1596 = vmatpush1.msra.mxu0 0.0
    %1597 = vmatprep.subr.mxu0 0.0
    %1598 = vmatpush1.msra.mxu0 0.0
    %1599 = vmatprep.subr.mxu0 0.0
    %1600 = vmatpush1.msra.mxu0 0.0
    %1601 = vmatprep.subr.mxu0 0.0
    %1602 = vmatpush1.msra.mxu0 0.0
    %1603 = vmatprep.subr.mxu0 0.0
    %1604 = vmatpush1.msra.mxu0 0.0
    %1605 = vmatprep.subr.mxu0 0.0
    %1606 = vmatpush1.msra.mxu0 0.0
    %1607 = vmatprep.mubr.f32.mxu0 0.0
    %1608 = vmatmul.mubr.f32.gmra.mrb[0].mxu0 %v668
    %v1609 = vpop.f32.mrb[0].mxu0
    %v1610 = vadd.f32 0.0, %v1609
    %v1611 = vpop.f32.mrb[0].mxu0
    %v1612 = vadd.f32 0.0, %v1611
    %1613 = vdwg.mxu0
    %v1614 = vadd.f32 %v1525, %v1610
    %v1615 = vadd.f32 %v1526, %v1612
    %1616 = vrot.lane.b32.xlu0 %v1011, 112
    %v1617 = vpop.permute.xlu0 %1616
    %1618 = vrot.lane.b32.xlu0 %v1013, 112
    %v1619 = vpop.permute.xlu0 %1618
    %v1620 = vsel %vm753, %v1617, %v1619
    %v1621 = vsel %vm753, %v1619, %v1617
    %v1622 = vmul.f32 %v1620, %v88
    %v1623 = vmul.f32 %v1621, %v89
    %v1625 = vsel %vm136, %v1622, 0
    %v1628 = vsel %vm136, %v1623, 0
    %1630 = vmatprep.subr.mxu0 %v1628
    %1631 = vmatpush1.msra.mxu0 %v1625
    %1632 = vmatprep.subr.mxu0 0.0
    %1633 = vmatpush1.msra.mxu0 0.0
    %1634 = vmatprep.subr.mxu0 0.0
    %1635 = vmatpush1.msra.mxu0 0.0
    %1636 = vmatprep.subr.mxu0 0.0
    %1637 = vmatpush1.msra.mxu0 0.0
    %1638 = vmatprep.subr.mxu0 0.0
    %1639 = vmatpush1.msra.mxu0 0.0
    %1640 = vmatprep.subr.mxu0 0.0
    %1641 = vmatpush1.msra.mxu0 0.0
    %1642 = vmatprep.subr.mxu0 0.0
    %1643 = vmatpush1.msra.mxu0 0.0
    %1644 = vmatprep.subr.mxu0 0.0
    %1645 = vmatpush1.msra.mxu0 0.0
    %1646 = vmatprep.subr.mxu0 0.0
    %1647 = vmatpush1.msra.mxu0 0.0
    %1648 = vmatprep.subr.mxu0 0.0
    %1649 = vmatpush1.msra.mxu0 0.0
    %1650 = vmatprep.subr.mxu0 0.0
    %1651 = vmatpush1.msra.mxu0 0.0
    %1652 = vmatprep.subr.mxu0 0.0
    %1653 = vmatpush1.msra.mxu0 0.0
    %1654 = vmatprep.subr.mxu0 0.0
    %1655 = vmatpush1.msra.mxu0 0.0
    %1656 = vmatprep.subr.mxu0 0.0
    %1657 = vmatpush1.msra.mxu0 0.0
    %1658 = vmatprep.subr.mxu0 0.0
    %1659 = vmatpush1.msra.mxu0 0.0
    %1660 = vmatprep.subr.mxu0 0.0
    %1661 = vmatpush1.msra.mxu0 0.0
    %1662 = vmatprep.subr.mxu0 0.0
    %1663 = vmatpush1.msra.mxu0 0.0
    %1664 = vmatprep.subr.mxu0 0.0
    %1665 = vmatpush1.msra.mxu0 0.0
    %1666 = vmatprep.subr.mxu0 0.0
    %1667 = vmatpush1.msra.mxu0 0.0
    %1668 = vmatprep.subr.mxu0 0.0
    %1669 = vmatpush1.msra.mxu0 0.0
    %1670 = vmatprep.subr.mxu0 0.0
    %1671 = vmatpush1.msra.mxu0 0.0
    %1672 = vmatprep.subr.mxu0 0.0
    %1673 = vmatpush1.msra.mxu0 0.0
    %1674 = vmatprep.subr.mxu0 0.0
    %1675 = vmatpush1.msra.mxu0 0.0
    %1676 = vmatprep.subr.mxu0 0.0
    %1677 = vmatpush1.msra.mxu0 0.0
    %1678 = vmatprep.subr.mxu0 0.0
    %1679 = vmatpush1.msra.mxu0 0.0
    %1680 = vmatprep.subr.mxu0 0.0
    %1681 = vmatpush1.msra.mxu0 0.0
    %1682 = vmatprep.subr.mxu0 0.0
    %1683 = vmatpush1.msra.mxu0 0.0
    %1684 = vmatprep.subr.mxu0 0.0
    %1685 = vmatpush1.msra.mxu0 0.0
    %1686 = vmatprep.subr.mxu0 0.0
    %1687 = vmatpush1.msra.mxu0 0.0
    %1688 = vmatprep.subr.mxu0 0.0
    %1689 = vmatpush1.msra.mxu0 0.0
    %1690 = vmatprep.subr.mxu0 0.0
    %1691 = vmatpush1.msra.mxu0 0.0
    %1692 = vmatprep.subr.mxu0 0.0
    %1693 = vmatpush1.msra.mxu0 0.0
    %1694 = vmatprep.mubr.f32.mxu0 0.0
    %1695 = vmatmul.mubr.f32.gmra.mrb[0].mxu0 %v759
    %v1696 = vpop.f32.mrb[0].mxu0
    %v1697 = vadd.f32 0.0, %v1696
    %v1698 = vpop.f32.mrb[0].mxu0
    %v1699 = vadd.f32 0.0, %v1698
    %1700 = vdwg.mxu0
    %v1701 = vadd.f32 %v1614, %v1697
    %v1702 = vadd.f32 %v1615, %v1699
    %1703 = vrot.lane.b32.xlu0 %v1011, 111
    %v1704 = vpop.permute.xlu0 %1703
    %1705 = vrot.lane.b32.xlu0 %v1013, 111
    %v1706 = vpop.permute.xlu0 %1705
    %v1707 = vsel %vm844, %v1704, %v1706
    %v1708 = vsel %vm844, %v1706, %v1704
    %v1709 = vmul.f32 %v1707, %v88
    %v1710 = vmul.f32 %v1708, %v89
    %v1711 = vmul.f32 %v1709, %v306
    %v1712 = vmul.f32 %v1710, %v310
    %v1714 = vsel %vm136, %v1711, 0
    %v1717 = vsel %vm136, %v1712, 0
    %1719 = vmatprep.subr.mxu0 %v1717
    %1720 = vmatpush1.msra.mxu0 %v1714
    %1721 = vmatprep.subr.mxu0 0.0
    %1722 = vmatpush1.msra.mxu0 0.0
    %1723 = vmatprep.subr.mxu0 0.0
    %1724 = vmatpush1.msra.mxu0 0.0
    %1725 = vmatprep.subr.mxu0 0.0
    %1726 = vmatpush1.msra.mxu0 0.0
    %1727 = vmatprep.subr.mxu0 0.0
    %1728 = vmatpush1.msra.mxu0 0.0
    %1729 = vmatprep.subr.mxu0 0.0
    %1730 = vmatpush1.msra.mxu0 0.0
    %1731 = vmatprep.subr.mxu0 0.0
    %1732 = vmatpush1.msra.mxu0 0.0
    %1733 = vmatprep.subr.mxu0 0.0
    %1734 = vmatpush1.msra.mxu0 0.0
    %1735 = vmatprep.subr.mxu0 0.0
    %1736 = vmatpush1.msra.mxu0 0.0
    %1737 = vmatprep.subr.mxu0 0.0
    %1738 = vmatpush1.msra.mxu0 0.0
    %1739 = vmatprep.subr.mxu0 0.0
    %1740 = vmatpush1.msra.mxu0 0.0
    %1741 = vmatprep.subr.mxu0 0.0
    %1742 = vmatpush1.msra.mxu0 0.0
    %1743 = vmatprep.subr.mxu0 0.0
    %1744 = vmatpush1.msra.mxu0 0.0
    %1745 = vmatprep.subr.mxu0 0.0
    %1746 = vmatpush1.msra.mxu0 0.0
    %1747 = vmatprep.subr.mxu0 0.0
    %1748 = vmatpush1.msra.mxu0 0.0
    %1749 = vmatprep.subr.mxu0 0.0
    %1750 = vmatpush1.msra.mxu0 0.0
    %1751 = vmatprep.subr.mxu0 0.0
    %1752 = vmatpush1.msra.mxu0 0.0
    %1753 = vmatprep.subr.mxu0 0.0
    %1754 = vmatpush1.msra.mxu0 0.0
    %1755 = vmatprep.subr.mxu0 0.0
    %1756 = vmatpush1.msra.mxu0 0.0
    %1757 = vmatprep.subr.mxu0 0.0
    %1758 = vmatpush1.msra.mxu0 0.0
    %1759 = vmatprep.subr.mxu0 0.0
    %1760 = vmatpush1.msra.mxu0 0.0
    %1761 = vmatprep.subr.mxu0 0.0
    %1762 = vmatpush1.msra.mxu0 0.0
    %1763 = vmatprep.subr.mxu0 0.0
    %1764 = vmatpush1.msra.mxu0 0.0
    %1765 = vmatprep.subr.mxu0 0.0
    %1766 = vmatpush1.msra.mxu0 0.0
    %1767 = vmatprep.subr.mxu0 0.0
    %1768 = vmatpush1.msra.mxu0 0.0
    %1769 = vmatprep.subr.mxu0 0.0
    %1770 = vmatpush1.msra.mxu0 0.0
    %1771 = vmatprep.subr.mxu0 0.0
    %1772 = vmatpush1.msra.mxu0 0.0
    %1773 = vmatprep.subr.mxu0 0.0
    %1774 = vmatpush1.msra.mxu0 0.0
    %1775 = vmatprep.subr.mxu0 0.0
    %1776 = vmatpush1.msra.mxu0 0.0
    %1777 = vmatprep.subr.mxu0 0.0
    %1778 = vmatpush1.msra.mxu0 0.0
    %1779 = vmatprep.subr.mxu0 0.0
    %1780 = vmatpush1.msra.mxu0 0.0
    %1781 = vmatprep.subr.mxu0 0.0
    %1782 = vmatpush1.msra.mxu0 0.0
    %1783 = vmatprep.mubr.f32.mxu0 0.0
    %1784 = vmatmul.mubr.f32.gmra.mrb[0].mxu0 %v852
    %v1785 = vpop.f32.mrb[0].mxu0
    %v1786 = vadd.f32 0.0, %v1785
    %v1787 = vpop.f32.mrb[0].mxu0
    %v1788 = vadd.f32 0.0, %v1787
    %1789 = vdwg.mxu0
    %v1790 = vadd.f32 %v1701, %v1786
    %v1791 = vadd.f32 %v1702, %v1788
    %v1794 = vcombine.low %v1790, %v1791
    %s1796 = scalar_lea.vmem %s4, 8
    %1797 = vst [vmem:[%s1796] sm:$0xff] %v1794
    %1798 = vmatprep.subr.mxu0 0.0
    %1799 = vmatpush1.msra.mxu0 %v42
    %1800 = vmatprep.subr.mxu0 0.0
    %1801 = vmatpush1.msra.mxu0 %v43
    %1802 = vmatprep.subr.mxu0 0.0
    %1803 = vmatpush1.msra.mxu0 %v44
    %1804 = vmatprep.subr.mxu0 0.0
    %1805 = vmatpush1.msra.mxu0 %v45
    %1806 = vmatprep.subr.mxu0 0.0
    %1807 = vmatpush1.msra.mxu0 %v46
    %1808 = vmatprep.subr.mxu0 0.0
    %1809 = vmatpush1.msra.mxu0 %v47
    %1810 = vmatprep.subr.mxu0 0.0
    %1811 = vmatpush1.msra.mxu0 %v48
    %1812 = vmatprep.subr.mxu0 0.0
    %1813 = vmatpush1.msra.mxu0 %v49
    %1814 = vmatprep.subr.mxu0 0.0
    %1815 = vmatpush1.msra.mxu0 %v50
    %1816 = vmatprep.subr.mxu0 0.0
    %1817 = vmatpush1.msra.mxu0 %v51
    %1818 = vmatprep.subr.mxu0 0.0
    %1819 = vmatpush1.msra.mxu0 %v52
    %1820 = vmatprep.subr.mxu0 0.0
    %1821 = vmatpush1.msra.mxu0 %v53
    %1822 = vmatprep.subr.mxu0 0.0
    %1823 = vmatpush1.msra.mxu0 %v54
    %1824 = vmatprep.subr.mxu0 0.0
    %1825 = vmatpush1.msra.mxu0 %v55
    %1826 = vmatprep.subr.mxu0 0.0
    %1827 = vmatpush1.msra.mxu0 %v56
    %1828 = vmatprep.subr.mxu0 0.0
    %1829 = vmatpush1.msra.mxu0 %v57
    %1830 = vmatprep.subr.mxu0 0.0
    %1831 = vmatpush1.msra.mxu0 %v58
    %1832 = vmatprep.subr.mxu0 0.0
    %1833 = vmatpush1.msra.mxu0 %v59
    %1834 = vmatprep.subr.mxu0 0.0
    %1835 = vmatpush1.msra.mxu0 %v60
    %1836 = vmatprep.subr.mxu0 0.0
    %1837 = vmatpush1.msra.mxu0 %v61
    %1838 = vmatprep.subr.mxu0 0.0
    %1839 = vmatpush1.msra.mxu0 %v62
    %1840 = vmatprep.subr.mxu0 0.0
    %1841 = vmatpush1.msra.mxu0 %v63
    %1842 = vmatprep.subr.mxu0 0.0
    %1843 = vmatpush1.msra.mxu0 %v64
    %1844 = vmatprep.subr.mxu0 0.0
    %1845 = vmatpush1.msra.mxu0 %v65
    %1846 = vmatprep.subr.mxu0 0.0
    %1847 = vmatpush1.msra.mxu0 %v66
    %1848 = vmatprep.subr.mxu0 0.0
    %1849 = vmatpush1.msra.mxu0 %v67
    %1850 = vmatprep.subr.mxu0 0.0
    %1851 = vmatpush1.msra.mxu0 %v68
    %1852 = vmatprep.subr.mxu0 0.0
    %1853 = vmatpush1.msra.mxu0 %v69
    %1854 = vmatprep.subr.mxu0 0.0
    %1855 = vmatpush1.msra.mxu0 %v70
    %1856 = vmatprep.subr.mxu0 0.0
    %1857 = vmatpush1.msra.mxu0 %v71
    %1858 = vmatprep.subr.mxu0 0.0
    %1859 = vmatpush1.msra.mxu0 %v72
    %1860 = vmatprep.subr.mxu0 0.0
    %1861 = vmatpush1.msra.mxu0 %v73
    %1862 = vmatprep.mubr.f32.mxu0 %v1013
    %1863 = vmatmul.mubr.f32.gmra.mrb[0].mxu0 %v1011
    %v1864 = vpop.f32.mrb[0].mxu0
    %v1865 = vadd.f32 0.0, %v1864
    %v1866 = vpop.f32.mrb[0].mxu0
    %1867 = vdwg.mxu0
    %s1868 = scalar_lea.vmem %s5, 4
    %1869 = vst.msk [vmem:[%s1868] sm:$0xf] %vm1008, %v1865
    // Predicated region
    $region22: #{first_octave_conv.2} parent=1 // pred_check
      _
    $region23: #{first_octave_conv.2} parent=1 // pred_check_branch
      %1871 = sbr.rel (0) target = $region25
    $region24: #{first_octave_conv.2} parent=1 // pred_region
      _
    $region25: #{first_octave_conv.2} parent=1 // pred_fallthru
      _
    // Predicated region
    $region26: #{first_octave_conv.2} parent=1 // pred_check
      _
    $region27: #{first_octave_conv.2} parent=1 // pred_check_branch
      %1873 = sbr.rel (0) target = $region29
    $region28: #{first_octave_conv.2} parent=1 // pred_region
      _
    $region29: #{first_octave_conv.2} parent=1 // pred_fallthru
      _
    // Predicated region
    $region30: #{first_octave_conv.2} parent=1 // pred_check
      _
    $region31: #{first_octave_conv.2} parent=1 // pred_check_branch
      %1875 = sbr.rel (0) target = $region33
    $region32: #{first_octave_conv.2} parent=1 // pred_region
      _
    $region33: #{first_octave_conv.2} parent=1 // pred_fallthru
      _
    // Predicated region
    $region34: #{first_octave_conv.2} parent=1 // pred_check
      _
    $region35: #{first_octave_conv.2} parent=1 // pred_check_branch
      %1877 = sbr.rel (0) target = $region37
    $region36: #{first_octave_conv.2} parent=1 // pred_region
      _
    $region37: #{first_octave_conv.2} parent=1 // pred_fallthru
      _
    %1878 = vsyncpa [#allocation3], 1

</llo_original>
